<compile_context>
chip_gen: v7x
topology: tpu7x:2x2x1
jax: 0.10.0
libtpu: 0.0.40
codegen_flags: <defaults>
</compile_context>

<pallas_src>
import jax
import jax.numpy as jnp
import numpy as np
from jax import lax
from jax.experimental import pallas as pl
from jax.experimental.pallas import tpu as pltpu

H = 2                     # EEG electrode rows; depthwise (2,1) collapses them
W = 736                   # true time samples (32 * 1 * 23 = 736 classifier features)
WP = 768                  # time axis zero-padded to 6 full lane tiles
C1, C2 = 16, 32           # channels after firstConv / depthwiseConv
K1, PAD1 = 51, 25         # firstConv kernel / padding
K3, PAD3 = 15, 7          # separableConv kernel / padding
WP4 = W // 4              # 184 valid positions after AvgPool(1,4)
WP8 = WP4 // 8            # 23 after AvgPool(1,8)
NPOOL = 256               # pooled width (incl. 7-left-pad) padded to 2 lane tiles
NSEP = 192                # separable-conv output width kept per sample (>=184)
W_IN = WP + 2 * PAD1      # 818 input width incl. conv halo
BN_EPS = 1e-5
BB = 8                    # batch elements per grid step (M = 32*BB = 256 MXU rows)
OUT_LANES = 128           # lane-padded output block width


def eegnet_kernel(x_ref, we_ref, p4_ref, ws2_ref, wl8_ref, pp_ref, out_ref):
    f32 = jnp.float32
    bf16 = jnp.bfloat16
    Bb = x_ref.shape[1]

    # ---- stage 1: firstConv(1x51) + BN1 + depthwise(2x1) + BN2-scale as ONE matmul.
    # im2col: 102 lane-shifted (Bb, 768) slices stacked along sublanes (each slice
    # is whole f32 sublane tiles, so the concat is tile-aligned).  we_ref is the
    # host block-diagonal expansion of the fused (32,2,51) weight over the batch
    # block -> a single rank-2 (Bb*32, 102*Bb) @ (102*Bb, 768) MXU pass at
    # DEFAULT precision (single bf16 pass, f32 accumulation).
    x0 = x_ref[0]                                                 # (Bb, 818) EEG row 0
    x1 = x_ref[1]                                                 # (Bb, 818) EEG row 1
    cols = ([x0[:, k:k + WP] for k in range(K1)]
            + [x1[:, k:k + WP] for k in range(K1)])
    s_mat = jnp.concatenate(cols, axis=0)                         # (102*Bb, 768)
    dw = jnp.dot(we_ref[...], s_mat,
                 preferred_element_type=f32)                      # (Bb*32, 768)

    # ---- stage 2: BN2 shift + ReLU (BN2 scale already folded into we_ref).
    b2 = pp_ref[:, 0:1]                                           # (32, 1)
    z2 = jnp.maximum(dw.reshape(Bb, C2, WP) + b2[None], 0.0)      # (Bb, 32, 768)

    # ---- stage 3: AvgPool(1,4) + separable-conv left pad + >=184 masking as one
    # small bf16 matmul (768x256 pooling matrix, 0.25 entries are bf16-exact).
    z2f = z2.reshape(Bb * C2, WP).astype(bf16)
    pooled = jnp.dot(z2f, p4_ref[...],
                     preferred_element_type=f32)                  # (Bb*32, 256)
    p1r = pooled.reshape(Bb, C2, NPOOL).astype(bf16)              # (Bb, 32, 256)

    # ---- stage 4: separableConv(1x15) with BN3 scale folded in.  zst stacks the
    # 15 tap-shifted slices along the (tile-aligned) channel axis; each sample is
    # one 2-D (32,480)@(480,192) bf16 dot (no broadcast of the weight).
    zst = jnp.concatenate([p1r[:, :, k:k + NSEP] for k in range(K3)],
                          axis=1)                                 # (Bb, 480, 192) bf16
    ws2 = ws2_ref[...]                                            # (32, 480) bf16
    b3 = pp_ref[:, 1:2]                                           # (32, 1)
    rows = []
    for b in range(Bb):
        acc = jnp.dot(ws2, zst[b], preferred_element_type=f32)    # (32, 192)
        rows.append(jnp.maximum(acc + b3, 0.0))                   # BN3 shift + ReLU
    z3 = jnp.stack(rows, axis=0)                                  # (Bb, 32, 192)

    # ---- stage 5/6: AvgPool(1,8) + Linear folded into wl8 (zero on lanes >= 184,
    # so junk separable-conv lanes never leak in).  Linear bias added on host.
    outs = []
    for j in range(2):
        pj = z3 * wl8_ref[j][None]                                # (Bb, 32, 192)
        t = jnp.sum(pj, axis=1)                                   # (Bb, 192)
        outs.append(jnp.sum(t, axis=1, keepdims=True))            # (Bb, 1)
    o2 = jnp.concatenate(outs, axis=1)                            # (Bb, 2)
    zpad = jnp.zeros((Bb, out_ref.shape[1] - 2), f32)
    out_ref[...] = jnp.concatenate([o2, zpad], axis=1)            # (Bb, 128)


def eegnet_forward(x, kp, min_blocks=1):
    """x: (B, 1, H, W) float32 NCHW like the PyTorch module.

    min_blocks=2 is recommended on v7x so both TensorCores get a grid step."""
    B = x.shape[0]
    Bb = kp["we"].shape[0] // C2
    n_blk = max(min_blocks, pl.cdiv(B, Bb))
    B_pad = n_blk * Bb

    xh = jnp.pad(x[:, 0, :, :], ((0, 0), (0, 0), (PAD1, W_IN - W - PAD1)))  # (B,2,818)
    xh = jnp.transpose(xh, (1, 0, 2))                             # (2, B, 818)
    xh = jnp.pad(xh, ((0, 0), (0, B_pad - B), (0, 0)))            # (2, B_pad, 818)

    args = (xh, kp["we"], kp["p4"], kp["ws2"], kp["wl8"], kp["pp"])

    def whole(a):                                                 # full-array operand
        nd = a.ndim
        return pl.BlockSpec(a.shape, lambda i, nd=nd: (0,) * nd)

    in_specs = [pl.BlockSpec((2, Bb, W_IN), lambda i: (0, i, 0))]
    in_specs += [whole(a) for a in args[1:]]

    out = pl.pallas_call(
        eegnet_kernel,
        out_shape=jax.ShapeDtypeStruct((B_pad, OUT_LANES), jnp.float32),
        grid=(n_blk,),
        in_specs=in_specs,
        out_specs=pl.BlockSpec((Bb, OUT_LANES), lambda i: (i, 0)),
        compiler_params=pltpu.CompilerParams(
            dimension_semantics=("parallel",),
            vmem_limit_bytes=32 * 1024 * 1024),
    )(*args)
    # Linear bias, drop padded batch rows and the lane padding.
    return out[:B, :2] + kp["bl"][None, :]


# ---------------- deterministic parameter construction (synthetic, no checkpoint) ----------------
def make_torch_params(key):
    ks = jax.random.split(key, 17)
    n = lambda i, shape, s=0.1: s * jax.random.normal(ks[i], shape, dtype=jnp.float32)
    u = lambda i, shape: jax.random.uniform(ks[i], shape, jnp.float32, 0.5, 1.5)
    return dict(
        W1=n(0, (16, 1, 1, K1)),                               # Conv2d(1,16,(1,51))
        g1=1.0 + n(1, (16,)), be1=n(2, (16,)), rm1=n(3, (16,)), rv1=u(4, (16,)),
        Wd=n(5, (32, 1, 2, 1)),                                # Conv2d(16,32,(2,1),groups=16)
        g2=1.0 + n(6, (32,)), be2=n(7, (32,)), rm2=n(8, (32,)), rv2=u(9, (32,)),
        Ws=n(10, (32, 32, 1, K3)),                             # Conv2d(32,32,(1,15))
        g3=1.0 + n(11, (32,)), be3=n(12, (32,)), rm3=n(13, (32,)), rv3=u(14, (32,)),
        Wl=n(15, (2, 736)), bl=n(16, (2,)),                    # Linear(736, 2)
    )


def bn_scale_shift(g, be, rm, rv):
    s = g / jnp.sqrt(rv + BN_EPS)
    return s, be - rm * s


def make_kernel_params(tp, Bb=BB):
    s1, t1 = bn_scale_shift(tp["g1"], tp["be1"], tp["rm1"], tp["rv1"])
    s2, t2 = bn_scale_shift(tp["g2"], tp["be2"], tp["rm2"], tp["rv2"])
    s3, t3 = bn_scale_shift(tp["g3"], tp["be3"], tp["rm3"], tp["rv3"])
    s1, t1, s2, t2, s3, t3 = (np.asarray(a, np.float32) for a in (s1, t1, s2, t2, s3, t3))
    W1 = np.asarray(tp["W1"], np.float32)[:, 0, 0, :]          # (16, 51)
    Wd = np.asarray(tp["Wd"], np.float32)[:, 0, :, 0]          # (32, 2)
    Ws = np.asarray(tp["Ws"], np.float32)[:, :, 0, :]          # (32, 32, 15)  [o, i, k]
    Wl = np.asarray(tp["Wl"], np.float32)                      # (2, 736)
    bl = np.asarray(tp["bl"], np.float32)                      # (2,)

    grp = np.arange(C2) // 2                                   # output channel -> input channel
    # firstConv * BN1-scale * depthwise weight, with BN2 scale folded in as well.
    Wc = (s2[:, None, None] * Wd[:, :, None]
          * s1[grp][:, None, None] * W1[grp][:, None, :])      # (32, 2, 51)
    c0 = t1[grp] * (Wd[:, 0] + Wd[:, 1])                       # BN1 shift through depthwise
    b2p = t2 + s2 * c0                                         # per-channel shift after stage 1

    # Block-diagonal expansion over the batch block:
    #   WE[b*32+o, (h*51+k)*Bb+b'] = (b == b') * Wc[o, h, k]
    Wc2 = Wc.reshape(C2, 2 * K1)
    WE4 = np.zeros((Bb, C2, 2 * K1, Bb), np.float32)
    WE4[np.arange(Bb), :, :, np.arange(Bb)] = Wc2[None]
    WE = WE4.reshape(Bb * C2, 2 * K1 * Bb)                     # (Bb*32, 102*Bb)

    # AvgPool(1,4) + left zero-pad 7 + zero lanes >= 191, as one small bf16 matrix.
    # Rows 736..767 (the padded time tail) stay all-zero so conv junk never pools in.
    p4 = np.zeros((WP, NPOOL), np.float32)
    p4[np.arange(W), PAD3 + np.arange(W) // 4] = 0.25

    # separableConv collapsed to K = 15*32 (BN3 scale folded in): WS2[o, k*32+i].
    WS2 = s3[:, None] * np.transpose(Ws, (0, 2, 1)).reshape(C2, K3 * C2)   # (32, 480)

    # AvgPool(1,8) + Linear folded together; zero on lanes >= 184 (junk region).
    Wl_r = Wl.reshape(2, C2, WP8)
    wl8 = np.zeros((2, C2, NSEP), np.float32)
    m = np.arange(WP4)
    wl8[:, :, m] = Wl_r[:, :, m // 8] / 8.0

    pp = np.stack([b2p, t3], axis=1)                           # (32, 2): BN2 / BN3 shifts

    return dict(we=jnp.asarray(WE, dtype=jnp.float32),
                p4=jnp.asarray(p4, dtype=jnp.bfloat16),
                ws2=jnp.asarray(WS2, dtype=jnp.bfloat16),
                wl8=jnp.asarray(wl8, dtype=jnp.float32),
                pp=jnp.asarray(pp, dtype=jnp.float32),
                bl=jnp.asarray(bl, dtype=jnp.float32))


# ---------------- pure-JAX reference (eval-mode forward), for correctness check ----------------
def ref_forward(x, tp):
    s1, b1 = bn_scale_shift(tp["g1"], tp["be1"], tp["rm1"], tp["rv1"])
    s2, b2 = bn_scale_shift(tp["g2"], tp["be2"], tp["rm2"], tp["rv2"])
    s3, b3 = bn_scale_shift(tp["g3"], tp["be3"], tp["rm3"], tp["rv3"])
    dn = ("NCHW", "OIHW", "NCHW")
    y = lax.conv_general_dilated(x, tp["W1"], (1, 1), [(0, 0), (PAD1, PAD1)], dimension_numbers=dn)
    y = y * s1[None, :, None, None] + b1[None, :, None, None]
    y = lax.conv_general_dilated(y, tp["Wd"], (1, 1), [(0, 0), (0, 0)], dimension_numbers=dn,
                                 feature_group_count=16)
    y = jnp.maximum(y * s2[None, :, None, None] + b2[None, :, None, None], 0.0)
    B_, C_, H_, W_ = y.shape
    y = y.reshape(B_, C_, H_, W_ // 4, 4).mean(-1)
    y = lax.conv_general_dilated(y, tp["Ws"], (1, 1), [(0, 0), (PAD3, PAD3)], dimension_numbers=dn)
    y = jnp.maximum(y * s3[None, :, None, None] + b3[None, :, None, None], 0.0)
    B_, C_, H_, W_ = y.shape
    y = y.reshape(B_, C_, H_, W_ // 8, 8).mean(-1)
    y = y.reshape(B_, -1)                                        # (B, 736)
    return y @ tp["Wl"].T + tp["bl"][None, :]


if __name__ == "__main__":
    key = jax.random.PRNGKey(0)
    kx, kparams = jax.random.split(key)
    B = 2
    x = jax.random.normal(kx, (B, 1, H, W), dtype=jnp.float32)   # NCHW like PyTorch

    torch_params = make_torch_params(kparams)
    # Small-batch variant: compile with Bb = B so no padded rows run the pipeline.
    bb = BB if B >= BB else max(1, B)
    kernel_params = make_kernel_params(torch_params, Bb=bb)

    out = eegnet_forward(x, kernel_params)
    out = jax.block_until_ready(out)

    ref = ref_forward(x, torch_params)
    # Matmuls run at single-pass MXU precision (bf16 mantissa, f32 accumulation).
    np.testing.assert_allclose(np.asarray(out), np.asarray(ref), rtol=2e-2, atol=1e-2)
    assert out.shape == (B, 2) and bool(jnp.all(jnp.isfinite(out)))
    print("KERNEL_OK")
</pallas_src>

<mosaic_0001>
module attributes {stable_mosaic.version = 11 : i64} {
  func.func @eegnet_kernel(%arg0: i32, %arg1: memref<2x2x818xf32, #tpu.memory_space<vmem>>, %arg2: memref<64x204xf32, #tpu.memory_space<vmem>>, %arg3: memref<768x256xbf16, #tpu.memory_space<vmem>>, %arg4: memref<32x480xbf16, #tpu.memory_space<vmem>>, %arg5: memref<2x32x192xf32, #tpu.memory_space<vmem>>, %arg6: memref<32x2xf32, #tpu.memory_space<vmem>>, %arg7: memref<2x128xf32, #tpu.memory_space<vmem>>) attributes {dimension_semantics = [#tpu.dimension_semantics<parallel>], iteration_bounds = array<i64: 1>, scalar_prefetch = 0 : i64, scratch_operands = 0 : i64, tpu.core_type = #tpu.core_type<tc>, window_params = [{transform_indices = @transform_0, window_bounds = array<i64: 2, 2, 818>}, {pipeline_mode = #tpu.pipeline_mode<synchronous>, transform_indices = @transform_1, window_bounds = array<i64: 64, 204>}, {pipeline_mode = #tpu.pipeline_mode<synchronous>, transform_indices = @transform_2, window_bounds = array<i64: 768, 256>}, {pipeline_mode = #tpu.pipeline_mode<synchronous>, transform_indices = @transform_3, window_bounds = array<i64: 32, 480>}, {pipeline_mode = #tpu.pipeline_mode<synchronous>, transform_indices = @transform_4, window_bounds = array<i64: 2, 32, 192>}, {pipeline_mode = #tpu.pipeline_mode<synchronous>, transform_indices = @transform_5, window_bounds = array<i64: 32, 2>}, {transform_indices = @transform_6, window_bounds = array<i64: 2, 128>}]} {
    %c0 = arith.constant 0 : index
    %c0_0 = arith.constant 0 : index
    %c0_1 = arith.constant 0 : index
    %0 = vector.load %arg1[%c0, %c0_0, %c0_1] : memref<2x2x818xf32, #tpu.memory_space<vmem>>, vector<1x2x818xf32>
    %1 = vector.shape_cast %0 : vector<1x2x818xf32> to vector<2x818xf32>
    %c1 = arith.constant 1 : index
    %c0_2 = arith.constant 0 : index
    %c0_3 = arith.constant 0 : index
    %2 = vector.load %arg1[%c1, %c0_2, %c0_3] : memref<2x2x818xf32, #tpu.memory_space<vmem>>, vector<1x2x818xf32>
    %3 = vector.shape_cast %2 : vector<1x2x818xf32> to vector<2x818xf32>
    %4 = vector.extract_strided_slice %1 {offsets = [0, 0], sizes = [2, 768], strides = [1, 1]} : vector<2x818xf32> to vector<2x768xf32>
    %5 = vector.extract_strided_slice %1 {offsets = [0, 1], sizes = [2, 768], strides = [1, 1]} : vector<2x818xf32> to vector<2x768xf32>
    %6 = vector.extract_strided_slice %1 {offsets = [0, 2], sizes = [2, 768], strides = [1, 1]} : vector<2x818xf32> to vector<2x768xf32>
    %7 = vector.extract_strided_slice %1 {offsets = [0, 3], sizes = [2, 768], strides = [1, 1]} : vector<2x818xf32> to vector<2x768xf32>
    %8 = vector.extract_strided_slice %1 {offsets = [0, 4], sizes = [2, 768], strides = [1, 1]} : vector<2x818xf32> to vector<2x768xf32>
    %9 = vector.extract_strided_slice %1 {offsets = [0, 5], sizes = [2, 768], strides = [1, 1]} : vector<2x818xf32> to vector<2x768xf32>
    %10 = vector.extract_strided_slice %1 {offsets = [0, 6], sizes = [2, 768], strides = [1, 1]} : vector<2x818xf32> to vector<2x768xf32>
    %11 = vector.extract_strided_slice %1 {offsets = [0, 7], sizes = [2, 768], strides = [1, 1]} : vector<2x818xf32> to vector<2x768xf32>
    %12 = vector.extract_strided_slice %1 {offsets = [0, 8], sizes = [2, 768], strides = [1, 1]} : vector<2x818xf32> to vector<2x768xf32>
    %13 = vector.extract_strided_slice %1 {offsets = [0, 9], sizes = [2, 768], strides = [1, 1]} : vector<2x818xf32> to vector<2x768xf32>
    %14 = vector.extract_strided_slice %1 {offsets = [0, 10], sizes = [2, 768], strides = [1, 1]} : vector<2x818xf32> to vector<2x768xf32>
    %15 = vector.extract_strided_slice %1 {offsets = [0, 11], sizes = [2, 768], strides = [1, 1]} : vector<2x818xf32> to vector<2x768xf32>
    %16 = vector.extract_strided_slice %1 {offsets = [0, 12], sizes = [2, 768], strides = [1, 1]} : vector<2x818xf32> to vector<2x768xf32>
    %17 = vector.extract_strided_slice %1 {offsets = [0, 13], sizes = [2, 768], strides = [1, 1]} : vector<2x818xf32> to vector<2x768xf32>
    %18 = vector.extract_strided_slice %1 {offsets = [0, 14], sizes = [2, 768], strides = [1, 1]} : vector<2x818xf32> to vector<2x768xf32>
    %19 = vector.extract_strided_slice %1 {offsets = [0, 15], sizes = [2, 768], strides = [1, 1]} : vector<2x818xf32> to vector<2x768xf32>
    %20 = vector.extract_strided_slice %1 {offsets = [0, 16], sizes = [2, 768], strides = [1, 1]} : vector<2x818xf32> to vector<2x768xf32>
    %21 = vector.extract_strided_slice %1 {offsets = [0, 17], sizes = [2, 768], strides = [1, 1]} : vector<2x818xf32> to vector<2x768xf32>
    %22 = vector.extract_strided_slice %1 {offsets = [0, 18], sizes = [2, 768], strides = [1, 1]} : vector<2x818xf32> to vector<2x768xf32>
    %23 = vector.extract_strided_slice %1 {offsets = [0, 19], sizes = [2, 768], strides = [1, 1]} : vector<2x818xf32> to vector<2x768xf32>
    %24 = vector.extract_strided_slice %1 {offsets = [0, 20], sizes = [2, 768], strides = [1, 1]} : vector<2x818xf32> to vector<2x768xf32>
    %25 = vector.extract_strided_slice %1 {offsets = [0, 21], sizes = [2, 768], strides = [1, 1]} : vector<2x818xf32> to vector<2x768xf32>
    %26 = vector.extract_strided_slice %1 {offsets = [0, 22], sizes = [2, 768], strides = [1, 1]} : vector<2x818xf32> to vector<2x768xf32>
    %27 = vector.extract_strided_slice %1 {offsets = [0, 23], sizes = [2, 768], strides = [1, 1]} : vector<2x818xf32> to vector<2x768xf32>
    %28 = vector.extract_strided_slice %1 {offsets = [0, 24], sizes = [2, 768], strides = [1, 1]} : vector<2x818xf32> to vector<2x768xf32>
    %29 = vector.extract_strided_slice %1 {offsets = [0, 25], sizes = [2, 768], strides = [1, 1]} : vector<2x818xf32> to vector<2x768xf32>
    %30 = vector.extract_strided_slice %1 {offsets = [0, 26], sizes = [2, 768], strides = [1, 1]} : vector<2x818xf32> to vector<2x768xf32>
    %31 = vector.extract_strided_slice %1 {offsets = [0, 27], sizes = [2, 768], strides = [1, 1]} : vector<2x818xf32> to vector<2x768xf32>
    %32 = vector.extract_strided_slice %1 {offsets = [0, 28], sizes = [2, 768], strides = [1, 1]} : vector<2x818xf32> to vector<2x768xf32>
    %33 = vector.extract_strided_slice %1 {offsets = [0, 29], sizes = [2, 768], strides = [1, 1]} : vector<2x818xf32> to vector<2x768xf32>
    %34 = vector.extract_strided_slice %1 {offsets = [0, 30], sizes = [2, 768], strides = [1, 1]} : vector<2x818xf32> to vector<2x768xf32>
    %35 = vector.extract_strided_slice %1 {offsets = [0, 31], sizes = [2, 768], strides = [1, 1]} : vector<2x818xf32> to vector<2x768xf32>
    %36 = vector.extract_strided_slice %1 {offsets = [0, 32], sizes = [2, 768], strides = [1, 1]} : vector<2x818xf32> to vector<2x768xf32>
    %37 = vector.extract_strided_slice %1 {offsets = [0, 33], sizes = [2, 768], strides = [1, 1]} : vector<2x818xf32> to vector<2x768xf32>
    %38 = vector.extract_strided_slice %1 {offsets = [0, 34], sizes = [2, 768], strides = [1, 1]} : vector<2x818xf32> to vector<2x768xf32>
    %39 = vector.extract_strided_slice %1 {offsets = [0, 35], sizes = [2, 768], strides = [1, 1]} : vector<2x818xf32> to vector<2x768xf32>
    %40 = vector.extract_strided_slice %1 {offsets = [0, 36], sizes = [2, 768], strides = [1, 1]} : vector<2x818xf32> to vector<2x768xf32>
    %41 = vector.extract_strided_slice %1 {offsets = [0, 37], sizes = [2, 768], strides = [1, 1]} : vector<2x818xf32> to vector<2x768xf32>
    %42 = vector.extract_strided_slice %1 {offsets = [0, 38], sizes = [2, 768], strides = [1, 1]} : vector<2x818xf32> to vector<2x768xf32>
    %43 = vector.extract_strided_slice %1 {offsets = [0, 39], sizes = [2, 768], strides = [1, 1]} : vector<2x818xf32> to vector<2x768xf32>
    %44 = vector.extract_strided_slice %1 {offsets = [0, 40], sizes = [2, 768], strides = [1, 1]} : vector<2x818xf32> to vector<2x768xf32>
    %45 = vector.extract_strided_slice %1 {offsets = [0, 41], sizes = [2, 768], strides = [1, 1]} : vector<2x818xf32> to vector<2x768xf32>
    %46 = vector.extract_strided_slice %1 {offsets = [0, 42], sizes = [2, 768], strides = [1, 1]} : vector<2x818xf32> to vector<2x768xf32>
    %47 = vector.extract_strided_slice %1 {offsets = [0, 43], sizes = [2, 768], strides = [1, 1]} : vector<2x818xf32> to vector<2x768xf32>
    %48 = vector.extract_strided_slice %1 {offsets = [0, 44], sizes = [2, 768], strides = [1, 1]} : vector<2x818xf32> to vector<2x768xf32>
    %49 = vector.extract_strided_slice %1 {offsets = [0, 45], sizes = [2, 768], strides = [1, 1]} : vector<2x818xf32> to vector<2x768xf32>
    %50 = vector.extract_strided_slice %1 {offsets = [0, 46], sizes = [2, 768], strides = [1, 1]} : vector<2x818xf32> to vector<2x768xf32>
    %51 = vector.extract_strided_slice %1 {offsets = [0, 47], sizes = [2, 768], strides = [1, 1]} : vector<2x818xf32> to vector<2x768xf32>
    %52 = vector.extract_strided_slice %1 {offsets = [0, 48], sizes = [2, 768], strides = [1, 1]} : vector<2x818xf32> to vector<2x768xf32>
    %53 = vector.extract_strided_slice %1 {offsets = [0, 49], sizes = [2, 768], strides = [1, 1]} : vector<2x818xf32> to vector<2x768xf32>
    %54 = vector.extract_strided_slice %1 {offsets = [0, 50], sizes = [2, 768], strides = [1, 1]} : vector<2x818xf32> to vector<2x768xf32>
    %55 = vector.extract_strided_slice %3 {offsets = [0, 0], sizes = [2, 768], strides = [1, 1]} : vector<2x818xf32> to vector<2x768xf32>
    %56 = vector.extract_strided_slice %3 {offsets = [0, 1], sizes = [2, 768], strides = [1, 1]} : vector<2x818xf32> to vector<2x768xf32>
    %57 = vector.extract_strided_slice %3 {offsets = [0, 2], sizes = [2, 768], strides = [1, 1]} : vector<2x818xf32> to vector<2x768xf32>
    %58 = vector.extract_strided_slice %3 {offsets = [0, 3], sizes = [2, 768], strides = [1, 1]} : vector<2x818xf32> to vector<2x768xf32>
    %59 = vector.extract_strided_slice %3 {offsets = [0, 4], sizes = [2, 768], strides = [1, 1]} : vector<2x818xf32> to vector<2x768xf32>
    %60 = vector.extract_strided_slice %3 {offsets = [0, 5], sizes = [2, 768], strides = [1, 1]} : vector<2x818xf32> to vector<2x768xf32>
    %61 = vector.extract_strided_slice %3 {offsets = [0, 6], sizes = [2, 768], strides = [1, 1]} : vector<2x818xf32> to vector<2x768xf32>
    %62 = vector.extract_strided_slice %3 {offsets = [0, 7], sizes = [2, 768], strides = [1, 1]} : vector<2x818xf32> to vector<2x768xf32>
    %63 = vector.extract_strided_slice %3 {offsets = [0, 8], sizes = [2, 768], strides = [1, 1]} : vector<2x818xf32> to vector<2x768xf32>
    %64 = vector.extract_strided_slice %3 {offsets = [0, 9], sizes = [2, 768], strides = [1, 1]} : vector<2x818xf32> to vector<2x768xf32>
    %65 = vector.extract_strided_slice %3 {offsets = [0, 10], sizes = [2, 768], strides = [1, 1]} : vector<2x818xf32> to vector<2x768xf32>
    %66 = vector.extract_strided_slice %3 {offsets = [0, 11], sizes = [2, 768], strides = [1, 1]} : vector<2x818xf32> to vector<2x768xf32>
    %67 = vector.extract_strided_slice %3 {offsets = [0, 12], sizes = [2, 768], strides = [1, 1]} : vector<2x818xf32> to vector<2x768xf32>
    %68 = vector.extract_strided_slice %3 {offsets = [0, 13], sizes = [2, 768], strides = [1, 1]} : vector<2x818xf32> to vector<2x768xf32>
    %69 = vector.extract_strided_slice %3 {offsets = [0, 14], sizes = [2, 768], strides = [1, 1]} : vector<2x818xf32> to vector<2x768xf32>
    %70 = vector.extract_strided_slice %3 {offsets = [0, 15], sizes = [2, 768], strides = [1, 1]} : vector<2x818xf32> to vector<2x768xf32>
    %71 = vector.extract_strided_slice %3 {offsets = [0, 16], sizes = [2, 768], strides = [1, 1]} : vector<2x818xf32> to vector<2x768xf32>
    %72 = vector.extract_strided_slice %3 {offsets = [0, 17], sizes = [2, 768], strides = [1, 1]} : vector<2x818xf32> to vector<2x768xf32>
    %73 = vector.extract_strided_slice %3 {offsets = [0, 18], sizes = [2, 768], strides = [1, 1]} : vector<2x818xf32> to vector<2x768xf32>
    %74 = vector.extract_strided_slice %3 {offsets = [0, 19], sizes = [2, 768], strides = [1, 1]} : vector<2x818xf32> to vector<2x768xf32>
    %75 = vector.extract_strided_slice %3 {offsets = [0, 20], sizes = [2, 768], strides = [1, 1]} : vector<2x818xf32> to vector<2x768xf32>
    %76 = vector.extract_strided_slice %3 {offsets = [0, 21], sizes = [2, 768], strides = [1, 1]} : vector<2x818xf32> to vector<2x768xf32>
    %77 = vector.extract_strided_slice %3 {offsets = [0, 22], sizes = [2, 768], strides = [1, 1]} : vector<2x818xf32> to vector<2x768xf32>
    %78 = vector.extract_strided_slice %3 {offsets = [0, 23], sizes = [2, 768], strides = [1, 1]} : vector<2x818xf32> to vector<2x768xf32>
    %79 = vector.extract_strided_slice %3 {offsets = [0, 24], sizes = [2, 768], strides = [1, 1]} : vector<2x818xf32> to vector<2x768xf32>
    %80 = vector.extract_strided_slice %3 {offsets = [0, 25], sizes = [2, 768], strides = [1, 1]} : vector<2x818xf32> to vector<2x768xf32>
    %81 = vector.extract_strided_slice %3 {offsets = [0, 26], sizes = [2, 768], strides = [1, 1]} : vector<2x818xf32> to vector<2x768xf32>
    %82 = vector.extract_strided_slice %3 {offsets = [0, 27], sizes = [2, 768], strides = [1, 1]} : vector<2x818xf32> to vector<2x768xf32>
    %83 = vector.extract_strided_slice %3 {offsets = [0, 28], sizes = [2, 768], strides = [1, 1]} : vector<2x818xf32> to vector<2x768xf32>
    %84 = vector.extract_strided_slice %3 {offsets = [0, 29], sizes = [2, 768], strides = [1, 1]} : vector<2x818xf32> to vector<2x768xf32>
    %85 = vector.extract_strided_slice %3 {offsets = [0, 30], sizes = [2, 768], strides = [1, 1]} : vector<2x818xf32> to vector<2x768xf32>
    %86 = vector.extract_strided_slice %3 {offsets = [0, 31], sizes = [2, 768], strides = [1, 1]} : vector<2x818xf32> to vector<2x768xf32>
    %87 = vector.extract_strided_slice %3 {offsets = [0, 32], sizes = [2, 768], strides = [1, 1]} : vector<2x818xf32> to vector<2x768xf32>
    %88 = vector.extract_strided_slice %3 {offsets = [0, 33], sizes = [2, 768], strides = [1, 1]} : vector<2x818xf32> to vector<2x768xf32>
    %89 = vector.extract_strided_slice %3 {offsets = [0, 34], sizes = [2, 768], strides = [1, 1]} : vector<2x818xf32> to vector<2x768xf32>
    %90 = vector.extract_strided_slice %3 {offsets = [0, 35], sizes = [2, 768], strides = [1, 1]} : vector<2x818xf32> to vector<2x768xf32>
    %91 = vector.extract_strided_slice %3 {offsets = [0, 36], sizes = [2, 768], strides = [1, 1]} : vector<2x818xf32> to vector<2x768xf32>
    %92 = vector.extract_strided_slice %3 {offsets = [0, 37], sizes = [2, 768], strides = [1, 1]} : vector<2x818xf32> to vector<2x768xf32>
    %93 = vector.extract_strided_slice %3 {offsets = [0, 38], sizes = [2, 768], strides = [1, 1]} : vector<2x818xf32> to vector<2x768xf32>
    %94 = vector.extract_strided_slice %3 {offsets = [0, 39], sizes = [2, 768], strides = [1, 1]} : vector<2x818xf32> to vector<2x768xf32>
    %95 = vector.extract_strided_slice %3 {offsets = [0, 40], sizes = [2, 768], strides = [1, 1]} : vector<2x818xf32> to vector<2x768xf32>
    %96 = vector.extract_strided_slice %3 {offsets = [0, 41], sizes = [2, 768], strides = [1, 1]} : vector<2x818xf32> to vector<2x768xf32>
    %97 = vector.extract_strided_slice %3 {offsets = [0, 42], sizes = [2, 768], strides = [1, 1]} : vector<2x818xf32> to vector<2x768xf32>
    %98 = vector.extract_strided_slice %3 {offsets = [0, 43], sizes = [2, 768], strides = [1, 1]} : vector<2x818xf32> to vector<2x768xf32>
    %99 = vector.extract_strided_slice %3 {offsets = [0, 44], sizes = [2, 768], strides = [1, 1]} : vector<2x818xf32> to vector<2x768xf32>
    %100 = vector.extract_strided_slice %3 {offsets = [0, 45], sizes = [2, 768], strides = [1, 1]} : vector<2x818xf32> to vector<2x768xf32>
    %101 = vector.extract_strided_slice %3 {offsets = [0, 46], sizes = [2, 768], strides = [1, 1]} : vector<2x818xf32> to vector<2x768xf32>
    %102 = vector.extract_strided_slice %3 {offsets = [0, 47], sizes = [2, 768], strides = [1, 1]} : vector<2x818xf32> to vector<2x768xf32>
    %103 = vector.extract_strided_slice %3 {offsets = [0, 48], sizes = [2, 768], strides = [1, 1]} : vector<2x818xf32> to vector<2x768xf32>
    %104 = vector.extract_strided_slice %3 {offsets = [0, 49], sizes = [2, 768], strides = [1, 1]} : vector<2x818xf32> to vector<2x768xf32>
    %105 = vector.extract_strided_slice %3 {offsets = [0, 50], sizes = [2, 768], strides = [1, 1]} : vector<2x818xf32> to vector<2x768xf32>
    %106 = tpu.concatenate %4, %5, %6, %7, %8, %9, %10, %11, %12, %13, %14, %15, %16, %17, %18, %19 in 0 : vector<2x768xf32>, vector<2x768xf32>, vector<2x768xf32>, vector<2x768xf32>, vector<2x768xf32>, vector<2x768xf32>, vector<2x768xf32>, vector<2x768xf32>, vector<2x768xf32>, vector<2x768xf32>, vector<2x768xf32>, vector<2x768xf32>, vector<2x768xf32>, vector<2x768xf32>, vector<2x768xf32>, vector<2x768xf32> -> vector<32x768xf32>
    %107 = tpu.concatenate %20, %21, %22, %23, %24, %25, %26, %27, %28, %29, %30, %31, %32, %33, %34, %35 in 0 : vector<2x768xf32>, vector<2x768xf32>, vector<2x768xf32>, vector<2x768xf32>, vector<2x768xf32>, vector<2x768xf32>, vector<2x768xf32>, vector<2x768xf32>, vector<2x768xf32>, vector<2x768xf32>, vector<2x768xf32>, vector<2x768xf32>, vector<2x768xf32>, vector<2x768xf32>, vector<2x768xf32>, vector<2x768xf32> -> vector<32x768xf32>
    %108 = tpu.concatenate %36, %37, %38, %39, %40, %41, %42, %43, %44, %45, %46, %47, %48, %49, %50, %51 in 0 : vector<2x768xf32>, vector<2x768xf32>, vector<2x768xf32>, vector<2x768xf32>, vector<2x768xf32>, vector<2x768xf32>, vector<2x768xf32>, vector<2x768xf32>, vector<2x768xf32>, vector<2x768xf32>, vector<2x768xf32>, vector<2x768xf32>, vector<2x768xf32>, vector<2x768xf32>, vector<2x768xf32>, vector<2x768xf32> -> vector<32x768xf32>
    %109 = tpu.concatenate %52, %53, %54, %55, %56, %57, %58, %59, %60, %61, %62, %63, %64, %65, %66, %67 in 0 : vector<2x768xf32>, vector<2x768xf32>, vector<2x768xf32>, vector<2x768xf32>, vector<2x768xf32>, vector<2x768xf32>, vector<2x768xf32>, vector<2x768xf32>, vector<2x768xf32>, vector<2x768xf32>, vector<2x768xf32>, vector<2x768xf32>, vector<2x768xf32>, vector<2x768xf32>, vector<2x768xf32>, vector<2x768xf32> -> vector<32x768xf32>
    %110 = tpu.concatenate %68, %69, %70, %71, %72, %73, %74, %75, %76, %77, %78, %79, %80, %81, %82, %83 in 0 : vector<2x768xf32>, vector<2x768xf32>, vector<2x768xf32>, vector<2x768xf32>, vector<2x768xf32>, vector<2x768xf32>, vector<2x768xf32>, vector<2x768xf32>, vector<2x768xf32>, vector<2x768xf32>, vector<2x768xf32>, vector<2x768xf32>, vector<2x768xf32>, vector<2x768xf32>, vector<2x768xf32>, vector<2x768xf32> -> vector<32x768xf32>
    %111 = tpu.concatenate %84, %85, %86, %87, %88, %89, %90, %91, %92, %93, %94, %95, %96, %97, %98, %99 in 0 : vector<2x768xf32>, vector<2x768xf32>, vector<2x768xf32>, vector<2x768xf32>, vector<2x768xf32>, vector<2x768xf32>, vector<2x768xf32>, vector<2x768xf32>, vector<2x768xf32>, vector<2x768xf32>, vector<2x768xf32>, vector<2x768xf32>, vector<2x768xf32>, vector<2x768xf32>, vector<2x768xf32>, vector<2x768xf32> -> vector<32x768xf32>
    %112 = tpu.concatenate %100, %101, %102, %103, %104, %105 in 0 : vector<2x768xf32>, vector<2x768xf32>, vector<2x768xf32>, vector<2x768xf32>, vector<2x768xf32>, vector<2x768xf32> -> vector<12x768xf32>
    %113 = tpu.concatenate %106, %107, %108, %109, %110, %111, %112 in 0 : vector<32x768xf32>, vector<32x768xf32>, vector<32x768xf32>, vector<32x768xf32>, vector<32x768xf32>, vector<32x768xf32>, vector<12x768xf32> -> vector<204x768xf32>
    %c0_4 = arith.constant 0 : index
    %c0_5 = arith.constant 0 : index
    %114 = vector.load %arg2[%c0_4, %c0_5] : memref<64x204xf32, #tpu.memory_space<vmem>>, vector<64x204xf32>
    %cst = arith.constant dense<0.000000e+00> : vector<64x768xf32>
    %115 = tpu.matmul %114, %113, %cst {dimension_numbers = #tpu.dot_dimension_numbers<[1], [0], [0], [1], [0, 0, 1, 1], [], []>} : vector<64x204xf32>, vector<204x768xf32>, vector<64x768xf32> -> vector<64x768xf32>
    %c0_6 = arith.constant 0 : index
    %c0_7 = arith.constant 0 : index
    %116 = vector.load %arg6[%c0_6, %c0_7] : memref<32x2xf32, #tpu.memory_space<vmem>>, vector<32x1xf32>
    %117 = vector.shape_cast %115 : vector<64x768xf32> to vector<2x32x768xf32>
    %118 = vector.shape_cast %116 : vector<32x1xf32> to vector<1x32x1xf32>
    %119 = vector.broadcast %118 : vector<1x32x1xf32> to vector<2x32x768xf32>
    %120 = arith.addf %117, %119 : vector<2x32x768xf32>
    %cst_8 = arith.constant 0.000000e+00 : f32
    %121 = vector.broadcast %cst_8 : f32 to vector<2x32x768xf32>
    %122 = arith.maximumf %120, %121 : vector<2x32x768xf32>
    %123 = vector.shape_cast %122 : vector<2x32x768xf32> to vector<64x768xf32>
    %124 = arith.truncf %123 : vector<64x768xf32> to vector<64x768xbf16>
    %c0_9 = arith.constant 0 : index
    %c0_10 = arith.constant 0 : index
    %125 = vector.load %arg3[%c0_9, %c0_10] : memref<768x256xbf16, #tpu.memory_space<vmem>>, vector<768x256xbf16>
    %cst_11 = arith.constant dense<0.000000e+00> : vector<64x256xf32>
    %126 = tpu.matmul %124, %125, %cst_11 {dimension_numbers = #tpu.dot_dimension_numbers<[1], [0], [0], [1], [0, 0, 1, 1], [], []>} : vector<64x768xbf16>, vector<768x256xbf16>, vector<64x256xf32> -> vector<64x256xf32>
    %127 = vector.shape_cast %126 : vector<64x256xf32> to vector<2x32x256xf32>
    %128 = arith.truncf %127 : vector<2x32x256xf32> to vector<2x32x256xbf16>
    %129 = vector.extract_strided_slice %128 {offsets = [0, 0, 0], sizes = [2, 32, 192], strides = [1, 1, 1]} : vector<2x32x256xbf16> to vector<2x32x192xbf16>
    %130 = vector.extract_strided_slice %128 {offsets = [0, 0, 1], sizes = [2, 32, 192], strides = [1, 1, 1]} : vector<2x32x256xbf16> to vector<2x32x192xbf16>
    %131 = vector.extract_strided_slice %128 {offsets = [0, 0, 2], sizes = [2, 32, 192], strides = [1, 1, 1]} : vector<2x32x256xbf16> to vector<2x32x192xbf16>
    %132 = vector.extract_strided_slice %128 {offsets = [0, 0, 3], sizes = [2, 32, 192], strides = [1, 1, 1]} : vector<2x32x256xbf16> to vector<2x32x192xbf16>
    %133 = vector.extract_strided_slice %128 {offsets = [0, 0, 4], sizes = [2, 32, 192], strides = [1, 1, 1]} : vector<2x32x256xbf16> to vector<2x32x192xbf16>
    %134 = vector.extract_strided_slice %128 {offsets = [0, 0, 5], sizes = [2, 32, 192], strides = [1, 1, 1]} : vector<2x32x256xbf16> to vector<2x32x192xbf16>
    %135 = vector.extract_strided_slice %128 {offsets = [0, 0, 6], sizes = [2, 32, 192], strides = [1, 1, 1]} : vector<2x32x256xbf16> to vector<2x32x192xbf16>
    %136 = vector.extract_strided_slice %128 {offsets = [0, 0, 7], sizes = [2, 32, 192], strides = [1, 1, 1]} : vector<2x32x256xbf16> to vector<2x32x192xbf16>
    %137 = vector.extract_strided_slice %128 {offsets = [0, 0, 8], sizes = [2, 32, 192], strides = [1, 1, 1]} : vector<2x32x256xbf16> to vector<2x32x192xbf16>
    %138 = vector.extract_strided_slice %128 {offsets = [0, 0, 9], sizes = [2, 32, 192], strides = [1, 1, 1]} : vector<2x32x256xbf16> to vector<2x32x192xbf16>
    %139 = vector.extract_strided_slice %128 {offsets = [0, 0, 10], sizes = [2, 32, 192], strides = [1, 1, 1]} : vector<2x32x256xbf16> to vector<2x32x192xbf16>
    %140 = vector.extract_strided_slice %128 {offsets = [0, 0, 11], sizes = [2, 32, 192], strides = [1, 1, 1]} : vector<2x32x256xbf16> to vector<2x32x192xbf16>
    %141 = vector.extract_strided_slice %128 {offsets = [0, 0, 12], sizes = [2, 32, 192], strides = [1, 1, 1]} : vector<2x32x256xbf16> to vector<2x32x192xbf16>
    %142 = vector.extract_strided_slice %128 {offsets = [0, 0, 13], sizes = [2, 32, 192], strides = [1, 1, 1]} : vector<2x32x256xbf16> to vector<2x32x192xbf16>
    %143 = vector.extract_strided_slice %128 {offsets = [0, 0, 14], sizes = [2, 32, 192], strides = [1, 1, 1]} : vector<2x32x256xbf16> to vector<2x32x192xbf16>
    %144 = tpu.concatenate %129, %130, %131, %132, %133, %134, %135, %136, %137, %138, %139, %140, %141, %142, %143 in 1 : vector<2x32x192xbf16>, vector<2x32x192xbf16>, vector<2x32x192xbf16>, vector<2x32x192xbf16>, vector<2x32x192xbf16>, vector<2x32x192xbf16>, vector<2x32x192xbf16>, vector<2x32x192xbf16>, vector<2x32x192xbf16>, vector<2x32x192xbf16>, vector<2x32x192xbf16>, vector<2x32x192xbf16>, vector<2x32x192xbf16>, vector<2x32x192xbf16>, vector<2x32x192xbf16> -> vector<2x480x192xbf16>
    %c0_12 = arith.constant 0 : index
    %c0_13 = arith.constant 0 : index
    %145 = vector.load %arg4[%c0_12, %c0_13] : memref<32x480xbf16, #tpu.memory_space<vmem>>, vector<32x480xbf16>
    %c0_14 = arith.constant 0 : index
    %c1_15 = arith.constant 1 : index
    %146 = vector.load %arg6[%c0_14, %c1_15] : memref<32x2xf32, #tpu.memory_space<vmem>>, vector<32x1xf32>
    %147 = vector.extract_strided_slice %144 {offsets = [0, 0, 0], sizes = [1, 480, 192], strides = [1, 1, 1]} : vector<2x480x192xbf16> to vector<1x480x192xbf16>
    %148 = vector.shape_cast %147 : vector<1x480x192xbf16> to vector<480x192xbf16>
    %cst_16 = arith.constant dense<0.000000e+00> : vector<32x192xf32>
    %149 = tpu.matmul %145, %148, %cst_16 {dimension_numbers = #tpu.dot_dimension_numbers<[1], [0], [0], [1], [0, 0, 1, 1], [], []>} : vector<32x480xbf16>, vector<480x192xbf16>, vector<32x192xf32> -> vector<32x192xf32>
    %150 = vector.broadcast %146 : vector<32x1xf32> to vector<32x192xf32>
    %151 = arith.addf %149, %150 : vector<32x192xf32>
    %cst_17 = arith.constant 0.000000e+00 : f32
    %152 = vector.broadcast %cst_17 : f32 to vector<32x192xf32>
    %153 = arith.maximumf %151, %152 : vector<32x192xf32>
    %154 = vector.extract_strided_slice %144 {offsets = [1, 0, 0], sizes = [1, 480, 192], strides = [1, 1, 1]} : vector<2x480x192xbf16> to vector<1x480x192xbf16>
    %155 = vector.shape_cast %154 : vector<1x480x192xbf16> to vector<480x192xbf16>
    %cst_18 = arith.constant dense<0.000000e+00> : vector<32x192xf32>
    %156 = tpu.matmul %145, %155, %cst_18 {dimension_numbers = #tpu.dot_dimension_numbers<[1], [0], [0], [1], [0, 0, 1, 1], [], []>} : vector<32x480xbf16>, vector<480x192xbf16>, vector<32x192xf32> -> vector<32x192xf32>
    %157 = vector.broadcast %146 : vector<32x1xf32> to vector<32x192xf32>
    %158 = arith.addf %156, %157 : vector<32x192xf32>
    %cst_19 = arith.constant 0.000000e+00 : f32
    %159 = vector.broadcast %cst_19 : f32 to vector<32x192xf32>
    %160 = arith.maximumf %158, %159 : vector<32x192xf32>
    %161 = vector.shape_cast %153 : vector<32x192xf32> to vector<1x32x192xf32>
    %162 = vector.shape_cast %160 : vector<32x192xf32> to vector<1x32x192xf32>
    %163 = tpu.concatenate %161, %162 in 0 : vector<1x32x192xf32>, vector<1x32x192xf32> -> vector<2x32x192xf32>
    %c0_20 = arith.constant 0 : index
    %c0_21 = arith.constant 0 : index
    %c0_22 = arith.constant 0 : index
    %164 = vector.load %arg5[%c0_20, %c0_21, %c0_22] : memref<2x32x192xf32, #tpu.memory_space<vmem>>, vector<1x32x192xf32>
    %165 = vector.shape_cast %164 : vector<1x32x192xf32> to vector<32x192xf32>
    %166 = vector.shape_cast %165 : vector<32x192xf32> to vector<1x32x192xf32>
    %167 = vector.broadcast %166 : vector<1x32x192xf32> to vector<2x32x192xf32>
    %168 = arith.mulf %163, %167 : vector<2x32x192xf32>
    %cst_23 = arith.constant dense<0.000000e+00> : vector<2x192xf32>
    %169 = vector.multi_reduction <add>, %168, %cst_23 [1] : vector<2x32x192xf32> to vector<2x192xf32>
    %cst_24 = arith.constant dense<0.000000e+00> : vector<2xf32>
    %170 = vector.multi_reduction <add>, %169, %cst_24 [1] : vector<2x192xf32> to vector<2xf32>
    %171 = vector.shape_cast %170 : vector<2xf32> to vector<2x1xf32>
    %c1_25 = arith.constant 1 : index
    %c0_26 = arith.constant 0 : index
    %c0_27 = arith.constant 0 : index
    %172 = vector.load %arg5[%c1_25, %c0_26, %c0_27] : memref<2x32x192xf32, #tpu.memory_space<vmem>>, vector<1x32x192xf32>
    %173 = vector.shape_cast %172 : vector<1x32x192xf32> to vector<32x192xf32>
    %174 = vector.shape_cast %173 : vector<32x192xf32> to vector<1x32x192xf32>
    %175 = vector.broadcast %174 : vector<1x32x192xf32> to vector<2x32x192xf32>
    %176 = arith.mulf %163, %175 : vector<2x32x192xf32>
    %cst_28 = arith.constant dense<0.000000e+00> : vector<2x192xf32>
    %177 = vector.multi_reduction <add>, %176, %cst_28 [1] : vector<2x32x192xf32> to vector<2x192xf32>
    %cst_29 = arith.constant dense<0.000000e+00> : vector<2xf32>
    %178 = vector.multi_reduction <add>, %177, %cst_29 [1] : vector<2x192xf32> to vector<2xf32>
    %179 = vector.shape_cast %178 : vector<2xf32> to vector<2x1xf32>
    %180 = tpu.concatenate %171, %179 in 1 : vector<2x1xf32>, vector<2x1xf32> -> vector<2x2xf32>
    %cst_30 = arith.constant 0.000000e+00 : f32
    %181 = vector.broadcast %cst_30 : f32 to vector<2x126xf32>
    %182 = tpu.concatenate %180, %181 in 1 : vector<2x2xf32>, vector<2x126xf32> -> vector<2x128xf32>
    %c0_31 = arith.constant 0 : index
    %c0_32 = arith.constant 0 : index
    %183 = vector.load %arg7[%c0_31, %c0_32] : memref<2x128xf32, #tpu.memory_space<vmem>>, vector<2x128xf32>
    tpu.vector_store %arg7[%c0_31, %c0_32], %182 {strides = array<i32>} : memref<2x128xf32, #tpu.memory_space<vmem>>, vector<2x128xf32>,
    return
  }
  func.func @transform_0(%arg0: i32) -> (i32, i32, i32) {
    %c0_i32 = arith.constant 0 : i32
    %c0_i32_0 = arith.constant 0 : i32
    %c0_i32_1 = arith.constant 0 : i32
    return %c0_i32, %arg0, %c0_i32_0 : i32, i32, i32
  }
  func.func @transform_1(%arg0: i32) -> (i32, i32) {
    %c0_i32 = arith.constant 0 : i32
    %c0_i32_0 = arith.constant 0 : i32
    %c0_i32_1 = arith.constant 0 : i32
    return %c0_i32, %c0_i32_0 : i32, i32
  }
  func.func @transform_2(%arg0: i32) -> (i32, i32) {
    %c0_i32 = arith.constant 0 : i32
    %c0_i32_0 = arith.constant 0 : i32
    %c0_i32_1 = arith.constant 0 : i32
    return %c0_i32, %c0_i32_0 : i32, i32
  }
  func.func @transform_3(%arg0: i32) -> (i32, i32) {
    %c0_i32 = arith.constant 0 : i32
    %c0_i32_0 = arith.constant 0 : i32
    %c0_i32_1 = arith.constant 0 : i32
    return %c0_i32, %c0_i32_0 : i32, i32
  }
  func.func @transform_4(%arg0: i32) -> (i32, i32, i32) {
    %c0_i32 = arith.constant 0 : i32
    %c0_i32_0 = arith.constant 0 : i32
    %c0_i32_1 = arith.constant 0 : i32
    %c0_i32_2 = arith.constant 0 : i32
    return %c0_i32, %c0_i32_0, %c0_i32_1 : i32, i32, i32
  }
  func.func @transform_5(%arg0: i32) -> (i32, i32) {
    %c0_i32 = arith.constant 0 : i32
    %c0_i32_0 = arith.constant 0 : i32
    %c0_i32_1 = arith.constant 0 : i32
    return %c0_i32, %c0_i32_0 : i32, i32
  }
  func.func @transform_6(%arg0: i32) -> (i32, i32) {
    %c0_i32 = arith.constant 0 : i32
    %c0_i32_0 = arith.constant 0 : i32
    return %arg0, %c0_i32 : i32, i32
  }
}

</mosaic_0001>

<llo_original>
// kernel: tpu_custom_call.1
$region0: #{tpu_custom_call.1}
  #allocation0 [shape = 'u32[]', space=smem, size = 0x4, offset = 0x4, fixed_abs, tag = 'smem constant byte address 0x4 - core index']
  #allocation1 [shape = 'u32[144,128]{1,0:T(1,128)}', space=vmem, size = 0x12000, scoped, tag = 'internal scratch']
  %s0 = inlined_call_operand.vmem [shape: f32[2,2,818], index: 0, kind: input, shape index: {}]
  %s1 = inlined_call_operand.hbm [shape: f32[64,204], index: 1, kind: input, shape index: {}]
  %s2 = inlined_call_operand.hbm [shape: bf16[768,256], index: 2, kind: input, shape index: {}]
  %s3 = inlined_call_operand.hbm [shape: bf16[32,480], index: 3, kind: input, shape index: {}]
  %s4 = inlined_call_operand.hbm [shape: f32[2,32,192], index: 4, kind: input, shape index: {}]
  %s5 = inlined_call_operand.vmem [shape: f32[32,2], index: 5, kind: input, shape index: {}]
  %s6 = inlined_call_operand.hbm [shape: f32[2,128], index: 6, kind: output, shape index: {}]
  %s7 = sld [smem:[#allocation0]]
  $region50: #{tpu_custom_call.1} parent=0
    _
  %s9 = ssub.s32 1, %s7
  %s10 = scalar_select 0, %s9, %s7
  $region1: #{tpu_custom_call.1} parent=0
    #allocation2 [shape = 'u8[65536]{0}', space=vmem, size = 0x10000, scoped, tag = 'input window, operand 1, single buffered']
    #allocation3 [shape = 's32[1]{0}', space=sflag, size = 0x4, scoped, tag = 'scoped memory for tpu_custom_call.1']
    #allocation4 [shape = 's32[1]{0}', space=sflag, size = 0x4, scoped, tag = 'scoped memory for tpu_custom_call.1']
    #allocation5 [shape = 'u8[393216]{0}', space=vmem, size = 0x60000, scoped, tag = 'input window, operand 2, single buffered']
    #allocation6 [shape = 's32[1]{0}', space=sflag, size = 0x4, scoped, tag = 'scoped memory for tpu_custom_call.1']
    #allocation7 [shape = 'u8[32768]{0}', space=vmem, size = 0x8000, scoped, tag = 'input window, operand 3, single buffered']
    #allocation8 [shape = 'u8[65536]{0}', space=vmem, size = 0x10000, scoped, tag = 'input window, operand 4, single buffered']
    #allocation9 [shape = 's32[1]{0}', space=sflag, size = 0x4, scoped, tag = 'scoped memory for tpu_custom_call.1']
    #allocation10 [shape = 'u8[1024]{0}', space=vmem, size = 0x400, scoped, tag = 'output window, operand 0, single buffered']
    %11 = vsyncpa [#allocation3], 0
    %12 = vsyncpa [#allocation6], 0
    %13 = vsyncpa [#allocation9], 0
    %14 = vsyncpa [#allocation4], 0
    // Predicated region
    $region2: #{tpu_custom_call.1} parent=1 // pred_check
      _
    $region3: #{tpu_custom_call.1} parent=1 // pred_check_branch
      %16 = sbr.rel (0) target = $region5
    $region4: #{tpu_custom_call.1} parent=1 // pred_region
      _
    $region5: #{tpu_custom_call.1} parent=1 // pred_fallthru
      _
    // Predicated region
    $region6: #{tpu_custom_call.1} parent=1 // pred_check
      _
    $region7: #{tpu_custom_call.1} parent=1 // pred_check_branch
      %18 = sbr.rel (0) target = $region9
    $region8: #{tpu_custom_call.1} parent=1 // pred_region
      %s20 = ssub.s32 2048, 2048
      %21 = vsyncadd [#allocation3], %s20
      %s22 = sshll.u32 [#allocation2], 4
      %s23 = int_to_ptr.vmem [resolvable:$true] %s22
      %28 = dma.hbm_to_vmem [thread:$0]  %s1, 2048, %s23, [#allocation3], 256, 256, 16
    $region9: #{tpu_custom_call.1} parent=1 // pred_fallthru
      _
    // Predicated region
    $region10: #{tpu_custom_call.1} parent=1 // pred_check
      _
    $region11: #{tpu_custom_call.1} parent=1 // pred_check_branch
      %30 = sbr.rel (0) target = $region13
    $region12: #{tpu_custom_call.1} parent=1 // pred_region
      %s32 = ssub.s32 12288, 12288
      %33 = vsyncadd [#allocation6], %s32
      %s34 = sshll.u32 [#allocation5], 4
      %s35 = int_to_ptr.vmem [resolvable:$true] %s34
      %40 = dma.hbm_to_vmem [thread:$0]  %s2, 12288, %s35, [#allocation6], 128, 128, 8
    $region13: #{tpu_custom_call.1} parent=1 // pred_fallthru
      _
    // Predicated region
    $region14: #{tpu_custom_call.1} parent=1 // pred_check
      _
    $region15: #{tpu_custom_call.1} parent=1 // pred_check_branch
      %42 = sbr.rel (0) target = $region17
    $region16: #{tpu_custom_call.1} parent=1 // pred_region
      %s44 = ssub.s32 1024, 1024
      %45 = vsyncadd [#allocation6], %s44
      %s46 = sshll.u32 [#allocation7], 4
      %s47 = int_to_ptr.vmem [resolvable:$true] %s46
      %52 = dma.hbm_to_vmem [thread:$0]  %s3, 1024, %s47, [#allocation6], 256, 256, 16
    $region17: #{tpu_custom_call.1} parent=1 // pred_fallthru
      _
    // Predicated region
    $region18: #{tpu_custom_call.1} parent=1 // pred_check
      _
    $region19: #{tpu_custom_call.1} parent=1 // pred_check_branch
      %54 = sbr.rel (0) target = $region21
    $region20: #{tpu_custom_call.1} parent=1 // pred_region
      %s56 = ssub.s32 2048, 2048
      %57 = vsyncadd [#allocation9], %s56
      %s58 = sshll.u32 [#allocation8], 4
      %s59 = int_to_ptr.vmem [resolvable:$true] %s58
      %64 = dma.hbm_to_vmem [thread:$0]  %s4, 2048, %s59, [#allocation9], 256, 256, 16
    $region21: #{tpu_custom_call.1} parent=1 // pred_fallthru
      _
    // Predicated region
    $region22: #{tpu_custom_call.1} parent=1 // pred_check
      _
    $region23: #{tpu_custom_call.1} parent=1 // pred_check_branch
      %66 = sbr.rel (0) target = $region25
    $region24: #{tpu_custom_call.1} parent=1 // pred_region
      _
    $region25: #{tpu_custom_call.1} parent=1 // pred_fallthru
      _
    // Predicated region
    $region26: #{tpu_custom_call.1} parent=1 // pred_check
      _
    $region27: #{tpu_custom_call.1} parent=1 // pred_check_branch
      %68 = sbr.rel (0) target = $region29
    $region28: #{tpu_custom_call.1} parent=1 // pred_region
      %69 = dma.done [#allocation3], 2048
    $region29: #{tpu_custom_call.1} parent=1 // pred_fallthru
      _
    // Predicated region
    $region30: #{tpu_custom_call.1} parent=1 // pred_check
      _
    $region31: #{tpu_custom_call.1} parent=1 // pred_check_branch
      %71 = sbr.rel (0) target = $region33
    $region32: #{tpu_custom_call.1} parent=1 // pred_region
      %72 = dma.done [#allocation6], 12288
    $region33: #{tpu_custom_call.1} parent=1 // pred_fallthru
      _
    // Predicated region
    $region34: #{tpu_custom_call.1} parent=1 // pred_check
      _
    $region35: #{tpu_custom_call.1} parent=1 // pred_check_branch
      %74 = sbr.rel (0) target = $region37
    $region36: #{tpu_custom_call.1} parent=1 // pred_region
      %75 = dma.done [#allocation6], 1024
    $region37: #{tpu_custom_call.1} parent=1 // pred_fallthru
      _
    // Predicated region
    $region38: #{tpu_custom_call.1} parent=1 // pred_check
      _
    $region39: #{tpu_custom_call.1} parent=1 // pred_check_branch
      %77 = sbr.rel (0) target = $region41
    $region40: #{tpu_custom_call.1} parent=1 // pred_region
      %78 = dma.done [#allocation9], 2048
    $region41: #{tpu_custom_call.1} parent=1 // pred_fallthru
      _
    %v80 = vld [vmem:[%s0] sm:$0xff]
    %v81 = vld [vmem:[%s0 + $0x8] sm:$0x3f]
    %s82 = scalar_lea.vmem %s0, 14
    %v83 = vld [vmem:[%s82] sm:$0xff]
    %v84 = vld [vmem:[%s82 + $0x8] sm:$0x3f]
    %v87 = vcombine.high %v80, %v80
    %v89 = vunpack.c.l.s4 1983009808
    %v90 = vunpack.c.0.s8 %v89
    %v91 = vlaneseq
    %v92 = vshrl.u32 %v91, 7
    %v93 = vsub.s32 %v90, %v92
    %v94 = vrot.slane %v80, %v93
    %v96 = vunpack.c.l.s4 1983009808
    %v97 = vunpack.c.0.s8 %v96
    %v98 = vlaneseq
    %v99 = vshrl.u32 %v98, 7
    %v100 = vsub.s32 %v97, %v99
    %v101 = vrot.slane %v87, %v100
    %v102 = vcombine.high %v94, %v94
    %v103 = vcombine.high %v101, %v101
    %v105 = vunpack.c.l.s4 1983009808
    %v106 = vunpack.c.0.s8 %v105
    %v107 = vlaneseq
    %v108 = vshrl.u32 %v107, 7
    %v109 = vsub.s32 %v106, %v108
    %v110 = vrot.slane %v81, %v109
    %v111 = vcombine.high %v110, %v110
    %v118 = vcombine.low %v80, %v80
    %v120 = vunpack.c.l.s4 1983009808
    %v121 = vunpack.c.0.s8 %v120
    %v122 = vlaneseq
    %v123 = vshrl.u32 %v122, 7
    %v124 = vsub.s32 %v121, %v123
    %v125 = vrot.slane %v118, %v124
    %v126 = vcombine.high %v125, %v125
    %v127 = vcombine.low %v81, %v81
    %v129 = vunpack.c.l.s4 1983009808
    %v130 = vunpack.c.0.s8 %v129
    %v131 = vlaneseq
    %v132 = vshrl.u32 %v131, 7
    %v133 = vsub.s32 %v130, %v132
    %v134 = vrot.slane %v127, %v133
    %v135 = vcombine.high %v134, %v134
    %136 = vrot.lane.b32.xlu0 %v125, 127
    %v137 = vpop.permute.xlu0 %136
    %138 = vrot.lane.b32.xlu0 %v126, 127
    %v139 = vpop.permute.xlu0 %138
    %140 = vrot.lane.b32.xlu0 %v94, 127
    %v141 = vpop.permute.xlu0 %140
    %142 = vrot.lane.b32.xlu0 %v102, 127
    %v143 = vpop.permute.xlu0 %142
    %144 = vrot.lane.b32.xlu0 %v134, 127
    %v145 = vpop.permute.xlu0 %144
    %146 = vrot.lane.b32.xlu0 %v135, 127
    %v147 = vpop.permute.xlu0 %146
    %148 = vrot.lane.b32.xlu0 %v110, 127
    %v149 = vpop.permute.xlu0 %148
    %vm150 = vcmask 1039360
    %v151 = vsel %vm150, %v137, %v139
    %v152 = vsel %vm150, %v139, %v141
    %v153 = vsel %vm150, %v141, %v143
    %v154 = vsel %vm150, %v143, %v145
    %v155 = vsel %vm150, %v145, %v147
    %v156 = vsel %vm150, %v147, %v149
    %v163 = vcombine.low %v94, %v94
    %v164 = vcombine.low %v101, %v101
    %v165 = vcombine.high %v81, %v81
    %v167 = vunpack.c.l.s4 1983009808
    %v168 = vunpack.c.0.s8 %v167
    %v169 = vlaneseq
    %v170 = vshrl.u32 %v169, 7
    %v171 = vsub.s32 %v168, %v170
    %v172 = vrot.slane %v165, %v171
    %v173 = vcombine.low %v110, %v110
    %v174 = vcombine.low %v172, %v172
    %175 = vrot.lane.b32.xlu0 %v163, 126
    %v176 = vpop.permute.xlu0 %175
    %177 = vrot.lane.b32.xlu0 %v94, 126
    %v178 = vpop.permute.xlu0 %177
    %179 = vrot.lane.b32.xlu0 %v164, 126
    %v180 = vpop.permute.xlu0 %179
    %181 = vrot.lane.b32.xlu0 %v101, 126
    %v182 = vpop.permute.xlu0 %181
    %183 = vrot.lane.b32.xlu0 %v173, 126
    %v184 = vpop.permute.xlu0 %183
    %185 = vrot.lane.b32.xlu0 %v110, 126
    %v186 = vpop.permute.xlu0 %185
    %187 = vrot.lane.b32.xlu0 %v174, 126
    %v188 = vpop.permute.xlu0 %187
    %vm189 = vcmask 1031168
    %v190 = vsel %vm189, %v176, %v178
    %v191 = vsel %vm189, %v178, %v180
    %v192 = vsel %vm189, %v180, %v182
    %v193 = vsel %vm189, %v182, %v184
    %v194 = vsel %vm189, %v184, %v186
    %v195 = vsel %vm189, %v186, %v188
    %v202 = vcombine.low %v125, %v125
    %v203 = vcombine.low %v134, %v134
    %204 = vrot.lane.b32.xlu0 %v202, 125
    %v205 = vpop.permute.xlu0 %204
    %206 = vrot.lane.b32.xlu0 %v125, 125
    %v207 = vpop.permute.xlu0 %206
    %208 = vrot.lane.b32.xlu0 %v163, 125
    %v209 = vpop.permute.xlu0 %208
    %210 = vrot.lane.b32.xlu0 %v94, 125
    %v211 = vpop.permute.xlu0 %210
    %212 = vrot.lane.b32.xlu0 %v203, 125
    %v213 = vpop.permute.xlu0 %212
    %214 = vrot.lane.b32.xlu0 %v134, 125
    %v215 = vpop.permute.xlu0 %214
    %216 = vrot.lane.b32.xlu0 %v173, 125
    %v217 = vpop.permute.xlu0 %216
    %vm218 = vcmask 1022976
    %v219 = vsel %vm218, %v205, %v207
    %v220 = vsel %vm218, %v207, %v209
    %v221 = vsel %vm218, %v209, %v211
    %v222 = vsel %vm218, %v211, %v213
    %v223 = vsel %vm218, %v213, %v215
    %v224 = vsel %vm218, %v215, %v217
    %231 = vrot.lane.b32.xlu0 %v94, 124
    %v232 = vpop.permute.xlu0 %231
    %233 = vrot.lane.b32.xlu0 %v102, 124
    %v234 = vpop.permute.xlu0 %233
    %235 = vrot.lane.b32.xlu0 %v101, 124
    %v236 = vpop.permute.xlu0 %235
    %237 = vrot.lane.b32.xlu0 %v103, 124
    %v238 = vpop.permute.xlu0 %237
    %239 = vrot.lane.b32.xlu0 %v110, 124
    %v240 = vpop.permute.xlu0 %239
    %241 = vrot.lane.b32.xlu0 %v111, 124
    %v242 = vpop.permute.xlu0 %241
    %243 = vrot.lane.b32.xlu0 %v172, 124
    %v244 = vpop.permute.xlu0 %243
    %vm245 = vcmask 1014784
    %v246 = vsel %vm245, %v232, %v234
    %v247 = vsel %vm245, %v234, %v236
    %v248 = vsel %vm245, %v236, %v238
    %v249 = vsel %vm245, %v238, %v240
    %v250 = vsel %vm245, %v240, %v242
    %v251 = vsel %vm245, %v242, %v244
    %258 = vrot.lane.b32.xlu0 %v125, 123
    %v259 = vpop.permute.xlu0 %258
    %260 = vrot.lane.b32.xlu0 %v126, 123
    %v261 = vpop.permute.xlu0 %260
    %262 = vrot.lane.b32.xlu0 %v94, 123
    %v263 = vpop.permute.xlu0 %262
    %264 = vrot.lane.b32.xlu0 %v102, 123
    %v265 = vpop.permute.xlu0 %264
    %266 = vrot.lane.b32.xlu0 %v134, 123
    %v267 = vpop.permute.xlu0 %266
    %268 = vrot.lane.b32.xlu0 %v135, 123
    %v269 = vpop.permute.xlu0 %268
    %270 = vrot.lane.b32.xlu0 %v110, 123
    %v271 = vpop.permute.xlu0 %270
    %vm272 = vcmask 1006592
    %v273 = vsel %vm272, %v259, %v261
    %v274 = vsel %vm272, %v261, %v263
    %v275 = vsel %vm272, %v263, %v265
    %v276 = vsel %vm272, %v265, %v267
    %v277 = vsel %vm272, %v267, %v269
    %v278 = vsel %vm272, %v269, %v271
    %285 = vrot.lane.b32.xlu0 %v163, 122
    %v286 = vpop.permute.xlu0 %285
    %287 = vrot.lane.b32.xlu0 %v94, 122
    %v288 = vpop.permute.xlu0 %287
    %289 = vrot.lane.b32.xlu0 %v164, 122
    %v290 = vpop.permute.xlu0 %289
    %291 = vrot.lane.b32.xlu0 %v101, 122
    %v292 = vpop.permute.xlu0 %291
    %293 = vrot.lane.b32.xlu0 %v173, 122
    %v294 = vpop.permute.xlu0 %293
    %295 = vrot.lane.b32.xlu0 %v110, 122
    %v296 = vpop.permute.xlu0 %295
    %297 = vrot.lane.b32.xlu0 %v174, 122
    %v298 = vpop.permute.xlu0 %297
    %vm299 = vcmask 998400
    %v300 = vsel %vm299, %v286, %v288
    %v301 = vsel %vm299, %v288, %v290
    %v302 = vsel %vm299, %v290, %v292
    %v303 = vsel %vm299, %v292, %v294
    %v304 = vsel %vm299, %v294, %v296
    %v305 = vsel %vm299, %v296, %v298
    %312 = vrot.lane.b32.xlu0 %v202, 121
    %v313 = vpop.permute.xlu0 %312
    %314 = vrot.lane.b32.xlu0 %v125, 121
    %v315 = vpop.permute.xlu0 %314
    %316 = vrot.lane.b32.xlu0 %v163, 121
    %v317 = vpop.permute.xlu0 %316
    %318 = vrot.lane.b32.xlu0 %v94, 121
    %v319 = vpop.permute.xlu0 %318
    %320 = vrot.lane.b32.xlu0 %v203, 121
    %v321 = vpop.permute.xlu0 %320
    %322 = vrot.lane.b32.xlu0 %v134, 121
    %v323 = vpop.permute.xlu0 %322
    %324 = vrot.lane.b32.xlu0 %v173, 121
    %v325 = vpop.permute.xlu0 %324
    %vm326 = vcmask 990208
    %v327 = vsel %vm326, %v313, %v315
    %v328 = vsel %vm326, %v315, %v317
    %v329 = vsel %vm326, %v317, %v319
    %v330 = vsel %vm326, %v319, %v321
    %v331 = vsel %vm326, %v321, %v323
    %v332 = vsel %vm326, %v323, %v325
    %339 = vrot.lane.b32.xlu0 %v94, 120
    %v340 = vpop.permute.xlu0 %339
    %341 = vrot.lane.b32.xlu0 %v102, 120
    %v342 = vpop.permute.xlu0 %341
    %343 = vrot.lane.b32.xlu0 %v101, 120
    %v344 = vpop.permute.xlu0 %343
    %345 = vrot.lane.b32.xlu0 %v103, 120
    %v346 = vpop.permute.xlu0 %345
    %347 = vrot.lane.b32.xlu0 %v110, 120
    %v348 = vpop.permute.xlu0 %347
    %349 = vrot.lane.b32.xlu0 %v111, 120
    %v350 = vpop.permute.xlu0 %349
    %351 = vrot.lane.b32.xlu0 %v172, 120
    %v352 = vpop.permute.xlu0 %351
    %vm353 = vcmask 982016
    %v354 = vsel %vm353, %v340, %v342
    %v355 = vsel %vm353, %v342, %v344
    %v356 = vsel %vm353, %v344, %v346
    %v357 = vsel %vm353, %v346, %v348
    %v358 = vsel %vm353, %v348, %v350
    %v359 = vsel %vm353, %v350, %v352
    %366 = vrot.lane.b32.xlu0 %v125, 119
    %v367 = vpop.permute.xlu0 %366
    %368 = vrot.lane.b32.xlu0 %v126, 119
    %v369 = vpop.permute.xlu0 %368
    %370 = vrot.lane.b32.xlu0 %v94, 119
    %v371 = vpop.permute.xlu0 %370
    %372 = vrot.lane.b32.xlu0 %v102, 119
    %v373 = vpop.permute.xlu0 %372
    %374 = vrot.lane.b32.xlu0 %v134, 119
    %v375 = vpop.permute.xlu0 %374
    %376 = vrot.lane.b32.xlu0 %v135, 119
    %v377 = vpop.permute.xlu0 %376
    %378 = vrot.lane.b32.xlu0 %v110, 119
    %v379 = vpop.permute.xlu0 %378
    %vm380 = vcmask 973824
    %v381 = vsel %vm380, %v367, %v369
    %v382 = vsel %vm380, %v369, %v371
    %v383 = vsel %vm380, %v371, %v373
    %v384 = vsel %vm380, %v373, %v375
    %v385 = vsel %vm380, %v375, %v377
    %v386 = vsel %vm380, %v377, %v379
    %393 = vrot.lane.b32.xlu0 %v163, 118
    %v394 = vpop.permute.xlu0 %393
    %395 = vrot.lane.b32.xlu0 %v94, 118
    %v396 = vpop.permute.xlu0 %395
    %397 = vrot.lane.b32.xlu0 %v164, 118
    %v398 = vpop.permute.xlu0 %397
    %399 = vrot.lane.b32.xlu0 %v101, 118
    %v400 = vpop.permute.xlu0 %399
    %401 = vrot.lane.b32.xlu0 %v173, 118
    %v402 = vpop.permute.xlu0 %401
    %403 = vrot.lane.b32.xlu0 %v110, 118
    %v404 = vpop.permute.xlu0 %403
    %405 = vrot.lane.b32.xlu0 %v174, 118
    %v406 = vpop.permute.xlu0 %405
    %vm407 = vcmask 965632
    %v408 = vsel %vm407, %v394, %v396
    %v409 = vsel %vm407, %v396, %v398
    %v410 = vsel %vm407, %v398, %v400
    %v411 = vsel %vm407, %v400, %v402
    %v412 = vsel %vm407, %v402, %v404
    %v413 = vsel %vm407, %v404, %v406
    %420 = vrot.lane.b32.xlu0 %v202, 117
    %v421 = vpop.permute.xlu0 %420
    %422 = vrot.lane.b32.xlu0 %v125, 117
    %v423 = vpop.permute.xlu0 %422
    %424 = vrot.lane.b32.xlu0 %v163, 117
    %v425 = vpop.permute.xlu0 %424
    %426 = vrot.lane.b32.xlu0 %v94, 117
    %v427 = vpop.permute.xlu0 %426
    %428 = vrot.lane.b32.xlu0 %v203, 117
    %v429 = vpop.permute.xlu0 %428
    %430 = vrot.lane.b32.xlu0 %v134, 117
    %v431 = vpop.permute.xlu0 %430
    %432 = vrot.lane.b32.xlu0 %v173, 117
    %v433 = vpop.permute.xlu0 %432
    %vm434 = vcmask 957440
    %v435 = vsel %vm434, %v421, %v423
    %v436 = vsel %vm434, %v423, %v425
    %v437 = vsel %vm434, %v425, %v427
    %v438 = vsel %vm434, %v427, %v429
    %v439 = vsel %vm434, %v429, %v431
    %v440 = vsel %vm434, %v431, %v433
    %447 = vrot.lane.b32.xlu0 %v94, 116
    %v448 = vpop.permute.xlu0 %447
    %449 = vrot.lane.b32.xlu0 %v102, 116
    %v450 = vpop.permute.xlu0 %449
    %451 = vrot.lane.b32.xlu0 %v101, 116
    %v452 = vpop.permute.xlu0 %451
    %453 = vrot.lane.b32.xlu0 %v103, 116
    %v454 = vpop.permute.xlu0 %453
    %455 = vrot.lane.b32.xlu0 %v110, 116
    %v456 = vpop.permute.xlu0 %455
    %457 = vrot.lane.b32.xlu0 %v111, 116
    %v458 = vpop.permute.xlu0 %457
    %459 = vrot.lane.b32.xlu0 %v172, 116
    %v460 = vpop.permute.xlu0 %459
    %vm461 = vcmask 949248
    %v462 = vsel %vm461, %v448, %v450
    %v463 = vsel %vm461, %v450, %v452
    %v464 = vsel %vm461, %v452, %v454
    %v465 = vsel %vm461, %v454, %v456
    %v466 = vsel %vm461, %v456, %v458
    %v467 = vsel %vm461, %v458, %v460
    %474 = vrot.lane.b32.xlu0 %v125, 115
    %v475 = vpop.permute.xlu0 %474
    %476 = vrot.lane.b32.xlu0 %v126, 115
    %v477 = vpop.permute.xlu0 %476
    %478 = vrot.lane.b32.xlu0 %v94, 115
    %v479 = vpop.permute.xlu0 %478
    %480 = vrot.lane.b32.xlu0 %v102, 115
    %v481 = vpop.permute.xlu0 %480
    %482 = vrot.lane.b32.xlu0 %v134, 115
    %v483 = vpop.permute.xlu0 %482
    %484 = vrot.lane.b32.xlu0 %v135, 115
    %v485 = vpop.permute.xlu0 %484
    %486 = vrot.lane.b32.xlu0 %v110, 115
    %v487 = vpop.permute.xlu0 %486
    %vm488 = vcmask 941056
    %v489 = vsel %vm488, %v475, %v477
    %v490 = vsel %vm488, %v477, %v479
    %v491 = vsel %vm488, %v479, %v481
    %v492 = vsel %vm488, %v481, %v483
    %v493 = vsel %vm488, %v483, %v485
    %v494 = vsel %vm488, %v485, %v487
    %501 = vrot.lane.b32.xlu0 %v163, 114
    %v502 = vpop.permute.xlu0 %501
    %503 = vrot.lane.b32.xlu0 %v94, 114
    %v504 = vpop.permute.xlu0 %503
    %505 = vrot.lane.b32.xlu0 %v164, 114
    %v506 = vpop.permute.xlu0 %505
    %507 = vrot.lane.b32.xlu0 %v101, 114
    %v508 = vpop.permute.xlu0 %507
    %509 = vrot.lane.b32.xlu0 %v173, 114
    %v510 = vpop.permute.xlu0 %509
    %511 = vrot.lane.b32.xlu0 %v110, 114
    %v512 = vpop.permute.xlu0 %511
    %513 = vrot.lane.b32.xlu0 %v174, 114
    %v514 = vpop.permute.xlu0 %513
    %vm515 = vcmask 932864
    %v516 = vsel %vm515, %v502, %v504
    %v517 = vsel %vm515, %v504, %v506
    %v518 = vsel %vm515, %v506, %v508
    %v519 = vsel %vm515, %v508, %v510
    %v520 = vsel %vm515, %v510, %v512
    %v521 = vsel %vm515, %v512, %v514
    %528 = vrot.lane.b32.xlu0 %v202, 113
    %v529 = vpop.permute.xlu0 %528
    %530 = vrot.lane.b32.xlu0 %v125, 113
    %v531 = vpop.permute.xlu0 %530
    %532 = vrot.lane.b32.xlu0 %v163, 113
    %v533 = vpop.permute.xlu0 %532
    %534 = vrot.lane.b32.xlu0 %v94, 113
    %v535 = vpop.permute.xlu0 %534
    %536 = vrot.lane.b32.xlu0 %v203, 113
    %v537 = vpop.permute.xlu0 %536
    %538 = vrot.lane.b32.xlu0 %v134, 113
    %v539 = vpop.permute.xlu0 %538
    %540 = vrot.lane.b32.xlu0 %v173, 113
    %v541 = vpop.permute.xlu0 %540
    %vm542 = vcmask 924672
    %v543 = vsel %vm542, %v529, %v531
    %v544 = vsel %vm542, %v531, %v533
    %v545 = vsel %vm542, %v533, %v535
    %v546 = vsel %vm542, %v535, %v537
    %v547 = vsel %vm542, %v537, %v539
    %v548 = vsel %vm542, %v539, %v541
    %vm555 = vcmask 1041408
    %v556 = vsel %vm555, %v94, %v151
    %v557 = vsel %vm555, %v102, %v152
    %v558 = vsel %vm555, %v101, %v153
    %v559 = vsel %vm555, %v103, %v154
    %v560 = vsel %vm555, %v110, %v155
    %v561 = vsel %vm555, %v111, %v156
    %vm562 = vcmask 1043456
    %v563 = vsel %vm562, %v556, %v190
    %v564 = vsel %vm562, %v557, %v191
    %v565 = vsel %vm562, %v558, %v192
    %v566 = vsel %vm562, %v559, %v193
    %v567 = vsel %vm562, %v560, %v194
    %v568 = vsel %vm562, %v561, %v195
    %vm569 = vcmask 1045504
    %v570 = vsel %vm569, %v563, %v219
    %v571 = vsel %vm569, %v564, %v220
    %v572 = vsel %vm569, %v565, %v221
    %v573 = vsel %vm569, %v566, %v222
    %v574 = vsel %vm569, %v567, %v223
    %v575 = vsel %vm569, %v568, %v224
    %v576 = vsel %vm555, %v246, %v273
    %v577 = vsel %vm555, %v247, %v274
    %v578 = vsel %vm555, %v248, %v275
    %v579 = vsel %vm555, %v249, %v276
    %v580 = vsel %vm555, %v250, %v277
    %v581 = vsel %vm555, %v251, %v278
    %v582 = vsel %vm562, %v576, %v300
    %v583 = vsel %vm562, %v577, %v301
    %v584 = vsel %vm562, %v578, %v302
    %v585 = vsel %vm562, %v579, %v303
    %v586 = vsel %vm562, %v580, %v304
    %v587 = vsel %vm562, %v581, %v305
    %v588 = vsel %vm569, %v582, %v327
    %v589 = vsel %vm569, %v583, %v328
    %v590 = vsel %vm569, %v584, %v329
    %v591 = vsel %vm569, %v585, %v330
    %v592 = vsel %vm569, %v586, %v331
    %v593 = vsel %vm569, %v587, %v332
    %v594 = vsel %vm555, %v354, %v381
    %v595 = vsel %vm555, %v355, %v382
    %v596 = vsel %vm555, %v356, %v383
    %v597 = vsel %vm555, %v357, %v384
    %v598 = vsel %vm555, %v358, %v385
    %v599 = vsel %vm555, %v359, %v386
    %v600 = vsel %vm562, %v594, %v408
    %v601 = vsel %vm562, %v595, %v409
    %v602 = vsel %vm562, %v596, %v410
    %v603 = vsel %vm562, %v597, %v411
    %v604 = vsel %vm562, %v598, %v412
    %v605 = vsel %vm562, %v599, %v413
    %v606 = vsel %vm569, %v600, %v435
    %v607 = vsel %vm569, %v601, %v436
    %v608 = vsel %vm569, %v602, %v437
    %v609 = vsel %vm569, %v603, %v438
    %v610 = vsel %vm569, %v604, %v439
    %v611 = vsel %vm569, %v605, %v440
    %v612 = vsel %vm555, %v462, %v489
    %v613 = vsel %vm555, %v463, %v490
    %v614 = vsel %vm555, %v464, %v491
    %v615 = vsel %vm555, %v465, %v492
    %v616 = vsel %vm555, %v466, %v493
    %v617 = vsel %vm555, %v467, %v494
    %v618 = vsel %vm562, %v612, %v516
    %v619 = vsel %vm562, %v613, %v517
    %v620 = vsel %vm562, %v614, %v518
    %v621 = vsel %vm562, %v615, %v519
    %v622 = vsel %vm562, %v616, %v520
    %v623 = vsel %vm562, %v617, %v521
    %v624 = vsel %vm569, %v618, %v543
    %v625 = vsel %vm569, %v619, %v544
    %v626 = vsel %vm569, %v620, %v545
    %v627 = vsel %vm569, %v621, %v546
    %v628 = vsel %vm569, %v622, %v547
    %v629 = vsel %vm569, %v623, %v548
    %v646 = vsel %vm555, %v172, %v149
    %v647 = vsel %vm562, %v646, %v188
    %v648 = vsel %vm569, %v647, %v217
    %v649 = vsel %vm555, %v244, %v271
    %v650 = vsel %vm562, %v649, %v298
    %v651 = vsel %vm569, %v650, %v325
    %v652 = vsel %vm555, %v352, %v379
    %v653 = vsel %vm562, %v652, %v406
    %v654 = vsel %vm569, %v653, %v433
    %v655 = vsel %vm555, %v460, %v487
    %v656 = vsel %vm562, %v655, %v514
    %v657 = vsel %vm569, %v656, %v541
    %v660 = vcombine.low %v83, %v83
    %v662 = vunpack.c.l.s4 1983009808
    %v663 = vunpack.c.0.s8 %v662
    %v664 = vlaneseq
    %v665 = vshrl.u32 %v664, 7
    %v666 = vsub.s32 %v663, %v665
    %v667 = vrot.slane %v660, %v666
    %v669 = vunpack.c.l.s4 1983009808
    %v670 = vunpack.c.0.s8 %v669
    %v671 = vlaneseq
    %v672 = vshrl.u32 %v671, 7
    %v673 = vsub.s32 %v670, %v672
    %v674 = vrot.slane %v83, %v673
    %v675 = vcombine.low %v667, %v667
    %v676 = vcombine.low %v674, %v674
    %v677 = vcombine.low %v84, %v84
    %v679 = vunpack.c.l.s4 1983009808
    %v680 = vunpack.c.0.s8 %v679
    %v681 = vlaneseq
    %v682 = vshrl.u32 %v681, 7
    %v683 = vsub.s32 %v680, %v682
    %v684 = vrot.slane %v677, %v683
    %v686 = vunpack.c.l.s4 1983009808
    %v687 = vunpack.c.0.s8 %v686
    %v688 = vlaneseq
    %v689 = vshrl.u32 %v688, 7
    %v690 = vsub.s32 %v687, %v689
    %v691 = vrot.slane %v84, %v690
    %v692 = vcombine.low %v684, %v684
    %693 = vrot.lane.b32.xlu0 %v675, 48
    %v694 = vpop.permute.xlu0 %693
    %695 = vrot.lane.b32.xlu0 %v667, 48
    %v696 = vpop.permute.xlu0 %695
    %697 = vrot.lane.b32.xlu0 %v676, 48
    %v698 = vpop.permute.xlu0 %697
    %699 = vrot.lane.b32.xlu0 %v674, 48
    %v700 = vpop.permute.xlu0 %699
    %701 = vrot.lane.b32.xlu0 %v692, 48
    %v702 = vpop.permute.xlu0 %701
    %703 = vrot.lane.b32.xlu0 %v684, 48
    %v704 = vpop.permute.xlu0 %703
    %vm705 = vcmask 392192
    %v706 = vsel %vm705, %v694, %v696
    %v707 = vsel %vm705, %v696, %v698
    %v708 = vsel %vm705, %v698, %v700
    %v709 = vsel %vm705, %v700, %v702
    %v710 = vsel %vm705, %v702, %v704
    %v718 = vcombine.high %v83, %v83
    %v720 = vunpack.c.l.s4 1983009808
    %v721 = vunpack.c.0.s8 %v720
    %v722 = vlaneseq
    %v723 = vshrl.u32 %v722, 7
    %v724 = vsub.s32 %v721, %v723
    %v725 = vrot.slane %v718, %v724
    %v726 = vcombine.high %v674, %v674
    %v727 = vcombine.high %v725, %v725
    %v728 = vcombine.high %v84, %v84
    %v730 = vunpack.c.l.s4 1983009808
    %v731 = vunpack.c.0.s8 %v730
    %v732 = vlaneseq
    %v733 = vshrl.u32 %v732, 7
    %v734 = vsub.s32 %v731, %v733
    %v735 = vrot.slane %v728, %v734
    %v736 = vcombine.high %v691, %v691
    %737 = vrot.lane.b32.xlu0 %v674, 47
    %v738 = vpop.permute.xlu0 %737
    %739 = vrot.lane.b32.xlu0 %v726, 47
    %v740 = vpop.permute.xlu0 %739
    %741 = vrot.lane.b32.xlu0 %v725, 47
    %v742 = vpop.permute.xlu0 %741
    %743 = vrot.lane.b32.xlu0 %v727, 47
    %v744 = vpop.permute.xlu0 %743
    %745 = vrot.lane.b32.xlu0 %v691, 47
    %v746 = vpop.permute.xlu0 %745
    %747 = vrot.lane.b32.xlu0 %v736, 47
    %v748 = vpop.permute.xlu0 %747
    %749 = vrot.lane.b32.xlu0 %v735, 47
    %v750 = vpop.permute.xlu0 %749
    %vm751 = vcmask 384000
    %v752 = vsel %vm751, %v738, %v740
    %v753 = vsel %vm751, %v740, %v742
    %v754 = vsel %vm751, %v742, %v744
    %v755 = vsel %vm751, %v744, %v746
    %v756 = vsel %vm751, %v746, %v748
    %v757 = vsel %vm751, %v748, %v750
    %v765 = vcombine.high %v667, %v667
    %v766 = vcombine.high %v684, %v684
    %767 = vrot.lane.b32.xlu0 %v667, 46
    %v768 = vpop.permute.xlu0 %767
    %769 = vrot.lane.b32.xlu0 %v765, 46
    %v770 = vpop.permute.xlu0 %769
    %771 = vrot.lane.b32.xlu0 %v674, 46
    %v772 = vpop.permute.xlu0 %771
    %773 = vrot.lane.b32.xlu0 %v726, 46
    %v774 = vpop.permute.xlu0 %773
    %775 = vrot.lane.b32.xlu0 %v684, 46
    %v776 = vpop.permute.xlu0 %775
    %777 = vrot.lane.b32.xlu0 %v766, 46
    %v778 = vpop.permute.xlu0 %777
    %779 = vrot.lane.b32.xlu0 %v691, 46
    %v780 = vpop.permute.xlu0 %779
    %vm781 = vcmask 375808
    %v782 = vsel %vm781, %v768, %v770
    %v783 = vsel %vm781, %v770, %v772
    %v784 = vsel %vm781, %v772, %v774
    %v785 = vsel %vm781, %v774, %v776
    %v786 = vsel %vm781, %v776, %v778
    %v787 = vsel %vm781, %v778, %v780
    %v795 = vcombine.low %v725, %v725
    %v796 = vcombine.low %v691, %v691
    %v797 = vcombine.low %v735, %v735
    %798 = vrot.lane.b32.xlu0 %v676, 45
    %v799 = vpop.permute.xlu0 %798
    %800 = vrot.lane.b32.xlu0 %v674, 45
    %v801 = vpop.permute.xlu0 %800
    %802 = vrot.lane.b32.xlu0 %v795, 45
    %v803 = vpop.permute.xlu0 %802
    %804 = vrot.lane.b32.xlu0 %v725, 45
    %v805 = vpop.permute.xlu0 %804
    %806 = vrot.lane.b32.xlu0 %v796, 45
    %v807 = vpop.permute.xlu0 %806
    %808 = vrot.lane.b32.xlu0 %v691, 45
    %v809 = vpop.permute.xlu0 %808
    %810 = vrot.lane.b32.xlu0 %v797, 45
    %v811 = vpop.permute.xlu0 %810
    %vm812 = vcmask 367616
    %v813 = vsel %vm812, %v799, %v801
    %v814 = vsel %vm812, %v801, %v803
    %v815 = vsel %vm812, %v803, %v805
    %v816 = vsel %vm812, %v805, %v807
    %v817 = vsel %vm812, %v807, %v809
    %v818 = vsel %vm812, %v809, %v811
    %826 = vrot.lane.b32.xlu0 %v675, 44
    %v827 = vpop.permute.xlu0 %826
    %828 = vrot.lane.b32.xlu0 %v667, 44
    %v829 = vpop.permute.xlu0 %828
    %830 = vrot.lane.b32.xlu0 %v676, 44
    %v831 = vpop.permute.xlu0 %830
    %832 = vrot.lane.b32.xlu0 %v674, 44
    %v833 = vpop.permute.xlu0 %832
    %834 = vrot.lane.b32.xlu0 %v692, 44
    %v835 = vpop.permute.xlu0 %834
    %836 = vrot.lane.b32.xlu0 %v684, 44
    %v837 = vpop.permute.xlu0 %836
    %838 = vrot.lane.b32.xlu0 %v796, 44
    %v839 = vpop.permute.xlu0 %838
    %vm840 = vcmask 359424
    %v841 = vsel %vm840, %v827, %v829
    %v842 = vsel %vm840, %v829, %v831
    %v843 = vsel %vm840, %v831, %v833
    %v844 = vsel %vm840, %v833, %v835
    %v845 = vsel %vm840, %v835, %v837
    %v846 = vsel %vm840, %v837, %v839
    %854 = vrot.lane.b32.xlu0 %v674, 43
    %v855 = vpop.permute.xlu0 %854
    %856 = vrot.lane.b32.xlu0 %v726, 43
    %v857 = vpop.permute.xlu0 %856
    %858 = vrot.lane.b32.xlu0 %v725, 43
    %v859 = vpop.permute.xlu0 %858
    %860 = vrot.lane.b32.xlu0 %v727, 43
    %v861 = vpop.permute.xlu0 %860
    %862 = vrot.lane.b32.xlu0 %v691, 43
    %v863 = vpop.permute.xlu0 %862
    %864 = vrot.lane.b32.xlu0 %v736, 43
    %v865 = vpop.permute.xlu0 %864
    %866 = vrot.lane.b32.xlu0 %v735, 43
    %v867 = vpop.permute.xlu0 %866
    %vm868 = vcmask 351232
    %v869 = vsel %vm868, %v855, %v857
    %v870 = vsel %vm868, %v857, %v859
    %v871 = vsel %vm868, %v859, %v861
    %v872 = vsel %vm868, %v861, %v863
    %v873 = vsel %vm868, %v863, %v865
    %v874 = vsel %vm868, %v865, %v867
    %882 = vrot.lane.b32.xlu0 %v667, 42
    %v883 = vpop.permute.xlu0 %882
    %884 = vrot.lane.b32.xlu0 %v765, 42
    %v885 = vpop.permute.xlu0 %884
    %886 = vrot.lane.b32.xlu0 %v674, 42
    %v887 = vpop.permute.xlu0 %886
    %888 = vrot.lane.b32.xlu0 %v726, 42
    %v889 = vpop.permute.xlu0 %888
    %890 = vrot.lane.b32.xlu0 %v684, 42
    %v891 = vpop.permute.xlu0 %890
    %892 = vrot.lane.b32.xlu0 %v766, 42
    %v893 = vpop.permute.xlu0 %892
    %894 = vrot.lane.b32.xlu0 %v691, 42
    %v895 = vpop.permute.xlu0 %894
    %vm896 = vcmask 343040
    %v897 = vsel %vm896, %v883, %v885
    %v898 = vsel %vm896, %v885, %v887
    %v899 = vsel %vm896, %v887, %v889
    %v900 = vsel %vm896, %v889, %v891
    %v901 = vsel %vm896, %v891, %v893
    %v902 = vsel %vm896, %v893, %v895
    %910 = vrot.lane.b32.xlu0 %v676, 41
    %v911 = vpop.permute.xlu0 %910
    %912 = vrot.lane.b32.xlu0 %v674, 41
    %v913 = vpop.permute.xlu0 %912
    %914 = vrot.lane.b32.xlu0 %v795, 41
    %v915 = vpop.permute.xlu0 %914
    %916 = vrot.lane.b32.xlu0 %v725, 41
    %v917 = vpop.permute.xlu0 %916
    %918 = vrot.lane.b32.xlu0 %v796, 41
    %v919 = vpop.permute.xlu0 %918
    %920 = vrot.lane.b32.xlu0 %v691, 41
    %v921 = vpop.permute.xlu0 %920
    %922 = vrot.lane.b32.xlu0 %v797, 41
    %v923 = vpop.permute.xlu0 %922
    %vm924 = vcmask 334848
    %v925 = vsel %vm924, %v911, %v913
    %v926 = vsel %vm924, %v913, %v915
    %v927 = vsel %vm924, %v915, %v917
    %v928 = vsel %vm924, %v917, %v919
    %v929 = vsel %vm924, %v919, %v921
    %v930 = vsel %vm924, %v921, %v923
    %938 = vrot.lane.b32.xlu0 %v675, 40
    %v939 = vpop.permute.xlu0 %938
    %940 = vrot.lane.b32.xlu0 %v667, 40
    %v941 = vpop.permute.xlu0 %940
    %942 = vrot.lane.b32.xlu0 %v676, 40
    %v943 = vpop.permute.xlu0 %942
    %944 = vrot.lane.b32.xlu0 %v674, 40
    %v945 = vpop.permute.xlu0 %944
    %946 = vrot.lane.b32.xlu0 %v692, 40
    %v947 = vpop.permute.xlu0 %946
    %948 = vrot.lane.b32.xlu0 %v684, 40
    %v949 = vpop.permute.xlu0 %948
    %950 = vrot.lane.b32.xlu0 %v796, 40
    %v951 = vpop.permute.xlu0 %950
    %vm952 = vcmask 326656
    %v953 = vsel %vm952, %v939, %v941
    %v954 = vsel %vm952, %v941, %v943
    %v955 = vsel %vm952, %v943, %v945
    %v956 = vsel %vm952, %v945, %v947
    %v957 = vsel %vm952, %v947, %v949
    %v958 = vsel %vm952, %v949, %v951
    %966 = vrot.lane.b32.xlu0 %v674, 39
    %v967 = vpop.permute.xlu0 %966
    %968 = vrot.lane.b32.xlu0 %v726, 39
    %v969 = vpop.permute.xlu0 %968
    %970 = vrot.lane.b32.xlu0 %v725, 39
    %v971 = vpop.permute.xlu0 %970
    %972 = vrot.lane.b32.xlu0 %v727, 39
    %v973 = vpop.permute.xlu0 %972
    %974 = vrot.lane.b32.xlu0 %v691, 39
    %v975 = vpop.permute.xlu0 %974
    %976 = vrot.lane.b32.xlu0 %v736, 39
    %v977 = vpop.permute.xlu0 %976
    %978 = vrot.lane.b32.xlu0 %v735, 39
    %v979 = vpop.permute.xlu0 %978
    %vm980 = vcmask 318464
    %v981 = vsel %vm980, %v967, %v969
    %v982 = vsel %vm980, %v969, %v971
    %v983 = vsel %vm980, %v971, %v973
    %v984 = vsel %vm980, %v973, %v975
    %v985 = vsel %vm980, %v975, %v977
    %v986 = vsel %vm980, %v977, %v979
    %994 = vrot.lane.b32.xlu0 %v667, 38
    %v995 = vpop.permute.xlu0 %994
    %996 = vrot.lane.b32.xlu0 %v765, 38
    %v997 = vpop.permute.xlu0 %996
    %998 = vrot.lane.b32.xlu0 %v674, 38
    %v999 = vpop.permute.xlu0 %998
    %1000 = vrot.lane.b32.xlu0 %v726, 38
    %v1001 = vpop.permute.xlu0 %1000
    %1002 = vrot.lane.b32.xlu0 %v684, 38
    %v1003 = vpop.permute.xlu0 %1002
    %1004 = vrot.lane.b32.xlu0 %v766, 38
    %v1005 = vpop.permute.xlu0 %1004
    %1006 = vrot.lane.b32.xlu0 %v691, 38
    %v1007 = vpop.permute.xlu0 %1006
    %vm1008 = vcmask 310272
    %v1009 = vsel %vm1008, %v995, %v997
    %v1010 = vsel %vm1008, %v997, %v999
    %v1011 = vsel %vm1008, %v999, %v1001
    %v1012 = vsel %vm1008, %v1001, %v1003
    %v1013 = vsel %vm1008, %v1003, %v1005
    %v1014 = vsel %vm1008, %v1005, %v1007
    %1022 = vrot.lane.b32.xlu0 %v676, 37
    %v1023 = vpop.permute.xlu0 %1022
    %1024 = vrot.lane.b32.xlu0 %v674, 37
    %v1025 = vpop.permute.xlu0 %1024
    %1026 = vrot.lane.b32.xlu0 %v795, 37
    %v1027 = vpop.permute.xlu0 %1026
    %1028 = vrot.lane.b32.xlu0 %v725, 37
    %v1029 = vpop.permute.xlu0 %1028
    %1030 = vrot.lane.b32.xlu0 %v796, 37
    %v1031 = vpop.permute.xlu0 %1030
    %1032 = vrot.lane.b32.xlu0 %v691, 37
    %v1033 = vpop.permute.xlu0 %1032
    %1034 = vrot.lane.b32.xlu0 %v797, 37
    %v1035 = vpop.permute.xlu0 %1034
    %vm1036 = vcmask 302080
    %v1037 = vsel %vm1036, %v1023, %v1025
    %v1038 = vsel %vm1036, %v1025, %v1027
    %v1039 = vsel %vm1036, %v1027, %v1029
    %v1040 = vsel %vm1036, %v1029, %v1031
    %v1041 = vsel %vm1036, %v1031, %v1033
    %v1042 = vsel %vm1036, %v1033, %v1035
    %1050 = vrot.lane.b32.xlu0 %v675, 36
    %v1051 = vpop.permute.xlu0 %1050
    %1052 = vrot.lane.b32.xlu0 %v667, 36
    %v1053 = vpop.permute.xlu0 %1052
    %1054 = vrot.lane.b32.xlu0 %v676, 36
    %v1055 = vpop.permute.xlu0 %1054
    %1056 = vrot.lane.b32.xlu0 %v674, 36
    %v1057 = vpop.permute.xlu0 %1056
    %1058 = vrot.lane.b32.xlu0 %v692, 36
    %v1059 = vpop.permute.xlu0 %1058
    %1060 = vrot.lane.b32.xlu0 %v684, 36
    %v1061 = vpop.permute.xlu0 %1060
    %1062 = vrot.lane.b32.xlu0 %v796, 36
    %v1063 = vpop.permute.xlu0 %1062
    %vm1064 = vcmask 293888
    %v1065 = vsel %vm1064, %v1051, %v1053
    %v1066 = vsel %vm1064, %v1053, %v1055
    %v1067 = vsel %vm1064, %v1055, %v1057
    %v1068 = vsel %vm1064, %v1057, %v1059
    %v1069 = vsel %vm1064, %v1059, %v1061
    %v1070 = vsel %vm1064, %v1061, %v1063
    %v1078 = vsel %vm569, %v563, %v694
    %v1079 = vsel %vm569, %v564, %v706
    %v1080 = vsel %vm569, %v565, %v707
    %v1081 = vsel %vm569, %v566, %v708
    %v1082 = vsel %vm569, %v567, %v709
    %v1083 = vsel %vm569, %v568, %v710
    %v1084 = vsel %vm569, %v647, %v704
    %v1085 = vsel %vm555, %v738, %v768
    %v1086 = vsel %vm555, %v752, %v782
    %v1087 = vsel %vm555, %v753, %v783
    %v1088 = vsel %vm555, %v754, %v784
    %v1089 = vsel %vm555, %v755, %v785
    %v1090 = vsel %vm555, %v756, %v786
    %v1091 = vsel %vm555, %v757, %v787
    %v1092 = vsel %vm562, %v1085, %v799
    %v1093 = vsel %vm562, %v1086, %v813
    %v1094 = vsel %vm562, %v1087, %v814
    %v1095 = vsel %vm562, %v1088, %v815
    %v1096 = vsel %vm562, %v1089, %v816
    %v1097 = vsel %vm562, %v1090, %v817
    %v1098 = vsel %vm562, %v1091, %v818
    %v1099 = vsel %vm569, %v1092, %v827
    %v1100 = vsel %vm569, %v1093, %v841
    %v1101 = vsel %vm569, %v1094, %v842
    %v1102 = vsel %vm569, %v1095, %v843
    %v1103 = vsel %vm569, %v1096, %v844
    %v1104 = vsel %vm569, %v1097, %v845
    %v1105 = vsel %vm569, %v1098, %v846
    %v1106 = vsel %vm555, %v855, %v883
    %v1107 = vsel %vm555, %v869, %v897
    %v1108 = vsel %vm555, %v870, %v898
    %v1109 = vsel %vm555, %v871, %v899
    %v1110 = vsel %vm555, %v872, %v900
    %v1111 = vsel %vm555, %v873, %v901
    %v1112 = vsel %vm555, %v874, %v902
    %v1113 = vsel %vm562, %v1106, %v911
    %v1114 = vsel %vm562, %v1107, %v925
    %v1115 = vsel %vm562, %v1108, %v926
    %v1116 = vsel %vm562, %v1109, %v927
    %v1117 = vsel %vm562, %v1110, %v928
    %v1118 = vsel %vm562, %v1111, %v929
    %v1119 = vsel %vm562, %v1112, %v930
    %v1120 = vsel %vm569, %v1113, %v939
    %v1121 = vsel %vm569, %v1114, %v953
    %v1122 = vsel %vm569, %v1115, %v954
    %v1123 = vsel %vm569, %v1116, %v955
    %v1124 = vsel %vm569, %v1117, %v956
    %v1125 = vsel %vm569, %v1118, %v957
    %v1126 = vsel %vm569, %v1119, %v958
    %v1127 = vsel %vm555, %v967, %v995
    %v1128 = vsel %vm555, %v981, %v1009
    %v1129 = vsel %vm555, %v982, %v1010
    %v1130 = vsel %vm555, %v983, %v1011
    %v1131 = vsel %vm555, %v984, %v1012
    %v1132 = vsel %vm555, %v985, %v1013
    %v1133 = vsel %vm555, %v986, %v1014
    %v1134 = vsel %vm562, %v1127, %v1023
    %v1135 = vsel %vm562, %v1128, %v1037
    %v1136 = vsel %vm562, %v1129, %v1038
    %v1137 = vsel %vm562, %v1130, %v1039
    %v1138 = vsel %vm562, %v1131, %v1040
    %v1139 = vsel %vm562, %v1132, %v1041
    %v1140 = vsel %vm562, %v1133, %v1042
    %v1141 = vsel %vm569, %v1134, %v1051
    %v1142 = vsel %vm569, %v1135, %v1065
    %v1143 = vsel %vm569, %v1136, %v1066
    %v1144 = vsel %vm569, %v1137, %v1067
    %v1145 = vsel %vm569, %v1138, %v1068
    %v1146 = vsel %vm569, %v1139, %v1069
    %v1147 = vsel %vm569, %v1140, %v1070
    %1155 = vrot.lane.b32.xlu0 %v667, 127
    %v1156 = vpop.permute.xlu0 %1155
    %1157 = vrot.lane.b32.xlu0 %v765, 127
    %v1158 = vpop.permute.xlu0 %1157
    %1159 = vrot.lane.b32.xlu0 %v674, 127
    %v1160 = vpop.permute.xlu0 %1159
    %1161 = vrot.lane.b32.xlu0 %v726, 127
    %v1162 = vpop.permute.xlu0 %1161
    %1163 = vrot.lane.b32.xlu0 %v684, 127
    %v1164 = vpop.permute.xlu0 %1163
    %1165 = vrot.lane.b32.xlu0 %v766, 127
    %v1166 = vpop.permute.xlu0 %1165
    %1167 = vrot.lane.b32.xlu0 %v691, 127
    %v1168 = vpop.permute.xlu0 %1167
    %v1169 = vsel %vm150, %v1156, %v1158
    %v1170 = vsel %vm150, %v1158, %v1160
    %v1171 = vsel %vm150, %v1160, %v1162
    %v1172 = vsel %vm150, %v1162, %v1164
    %v1173 = vsel %vm150, %v1164, %v1166
    %v1174 = vsel %vm150, %v1166, %v1168
    %1182 = vrot.lane.b32.xlu0 %v676, 126
    %v1183 = vpop.permute.xlu0 %1182
    %1184 = vrot.lane.b32.xlu0 %v674, 126
    %v1185 = vpop.permute.xlu0 %1184
    %1186 = vrot.lane.b32.xlu0 %v795, 126
    %v1187 = vpop.permute.xlu0 %1186
    %1188 = vrot.lane.b32.xlu0 %v725, 126
    %v1189 = vpop.permute.xlu0 %1188
    %1190 = vrot.lane.b32.xlu0 %v796, 126
    %v1191 = vpop.permute.xlu0 %1190
    %1192 = vrot.lane.b32.xlu0 %v691, 126
    %v1193 = vpop.permute.xlu0 %1192
    %1194 = vrot.lane.b32.xlu0 %v797, 126
    %v1195 = vpop.permute.xlu0 %1194
    %v1196 = vsel %vm189, %v1183, %v1185
    %v1197 = vsel %vm189, %v1185, %v1187
    %v1198 = vsel %vm189, %v1187, %v1189
    %v1199 = vsel %vm189, %v1189, %v1191
    %v1200 = vsel %vm189, %v1191, %v1193
    %v1201 = vsel %vm189, %v1193, %v1195
    %1209 = vrot.lane.b32.xlu0 %v675, 125
    %v1210 = vpop.permute.xlu0 %1209
    %1211 = vrot.lane.b32.xlu0 %v667, 125
    %v1212 = vpop.permute.xlu0 %1211
    %1213 = vrot.lane.b32.xlu0 %v676, 125
    %v1214 = vpop.permute.xlu0 %1213
    %1215 = vrot.lane.b32.xlu0 %v674, 125
    %v1216 = vpop.permute.xlu0 %1215
    %1217 = vrot.lane.b32.xlu0 %v692, 125
    %v1218 = vpop.permute.xlu0 %1217
    %1219 = vrot.lane.b32.xlu0 %v684, 125
    %v1220 = vpop.permute.xlu0 %1219
    %1221 = vrot.lane.b32.xlu0 %v796, 125
    %v1222 = vpop.permute.xlu0 %1221
    %v1223 = vsel %vm218, %v1210, %v1212
    %v1224 = vsel %vm218, %v1212, %v1214
    %v1225 = vsel %vm218, %v1214, %v1216
    %v1226 = vsel %vm218, %v1216, %v1218
    %v1227 = vsel %vm218, %v1218, %v1220
    %v1228 = vsel %vm218, %v1220, %v1222
    %1236 = vrot.lane.b32.xlu0 %v674, 124
    %v1237 = vpop.permute.xlu0 %1236
    %1238 = vrot.lane.b32.xlu0 %v726, 124
    %v1239 = vpop.permute.xlu0 %1238
    %1240 = vrot.lane.b32.xlu0 %v725, 124
    %v1241 = vpop.permute.xlu0 %1240
    %1242 = vrot.lane.b32.xlu0 %v727, 124
    %v1243 = vpop.permute.xlu0 %1242
    %1244 = vrot.lane.b32.xlu0 %v691, 124
    %v1245 = vpop.permute.xlu0 %1244
    %1246 = vrot.lane.b32.xlu0 %v736, 124
    %v1247 = vpop.permute.xlu0 %1246
    %1248 = vrot.lane.b32.xlu0 %v735, 124
    %v1249 = vpop.permute.xlu0 %1248
    %v1250 = vsel %vm245, %v1237, %v1239
    %v1251 = vsel %vm245, %v1239, %v1241
    %v1252 = vsel %vm245, %v1241, %v1243
    %v1253 = vsel %vm245, %v1243, %v1245
    %v1254 = vsel %vm245, %v1245, %v1247
    %v1255 = vsel %vm245, %v1247, %v1249
    %1263 = vrot.lane.b32.xlu0 %v667, 123
    %v1264 = vpop.permute.xlu0 %1263
    %1265 = vrot.lane.b32.xlu0 %v765, 123
    %v1266 = vpop.permute.xlu0 %1265
    %1267 = vrot.lane.b32.xlu0 %v674, 123
    %v1268 = vpop.permute.xlu0 %1267
    %1269 = vrot.lane.b32.xlu0 %v726, 123
    %v1270 = vpop.permute.xlu0 %1269
    %1271 = vrot.lane.b32.xlu0 %v684, 123
    %v1272 = vpop.permute.xlu0 %1271
    %1273 = vrot.lane.b32.xlu0 %v766, 123
    %v1274 = vpop.permute.xlu0 %1273
    %1275 = vrot.lane.b32.xlu0 %v691, 123
    %v1276 = vpop.permute.xlu0 %1275
    %v1277 = vsel %vm272, %v1264, %v1266
    %v1278 = vsel %vm272, %v1266, %v1268
    %v1279 = vsel %vm272, %v1268, %v1270
    %v1280 = vsel %vm272, %v1270, %v1272
    %v1281 = vsel %vm272, %v1272, %v1274
    %v1282 = vsel %vm272, %v1274, %v1276
    %1290 = vrot.lane.b32.xlu0 %v676, 122
    %v1291 = vpop.permute.xlu0 %1290
    %1292 = vrot.lane.b32.xlu0 %v674, 122
    %v1293 = vpop.permute.xlu0 %1292
    %1294 = vrot.lane.b32.xlu0 %v795, 122
    %v1295 = vpop.permute.xlu0 %1294
    %1296 = vrot.lane.b32.xlu0 %v725, 122
    %v1297 = vpop.permute.xlu0 %1296
    %1298 = vrot.lane.b32.xlu0 %v796, 122
    %v1299 = vpop.permute.xlu0 %1298
    %1300 = vrot.lane.b32.xlu0 %v691, 122
    %v1301 = vpop.permute.xlu0 %1300
    %1302 = vrot.lane.b32.xlu0 %v797, 122
    %v1303 = vpop.permute.xlu0 %1302
    %v1304 = vsel %vm299, %v1291, %v1293
    %v1305 = vsel %vm299, %v1293, %v1295
    %v1306 = vsel %vm299, %v1295, %v1297
    %v1307 = vsel %vm299, %v1297, %v1299
    %v1308 = vsel %vm299, %v1299, %v1301
    %v1309 = vsel %vm299, %v1301, %v1303
    %1317 = vrot.lane.b32.xlu0 %v675, 121
    %v1318 = vpop.permute.xlu0 %1317
    %1319 = vrot.lane.b32.xlu0 %v667, 121
    %v1320 = vpop.permute.xlu0 %1319
    %1321 = vrot.lane.b32.xlu0 %v676, 121
    %v1322 = vpop.permute.xlu0 %1321
    %1323 = vrot.lane.b32.xlu0 %v674, 121
    %v1324 = vpop.permute.xlu0 %1323
    %1325 = vrot.lane.b32.xlu0 %v692, 121
    %v1326 = vpop.permute.xlu0 %1325
    %1327 = vrot.lane.b32.xlu0 %v684, 121
    %v1328 = vpop.permute.xlu0 %1327
    %1329 = vrot.lane.b32.xlu0 %v796, 121
    %v1330 = vpop.permute.xlu0 %1329
    %v1331 = vsel %vm326, %v1318, %v1320
    %v1332 = vsel %vm326, %v1320, %v1322
    %v1333 = vsel %vm326, %v1322, %v1324
    %v1334 = vsel %vm326, %v1324, %v1326
    %v1335 = vsel %vm326, %v1326, %v1328
    %v1336 = vsel %vm326, %v1328, %v1330
    %1344 = vrot.lane.b32.xlu0 %v674, 120
    %v1345 = vpop.permute.xlu0 %1344
    %1346 = vrot.lane.b32.xlu0 %v726, 120
    %v1347 = vpop.permute.xlu0 %1346
    %1348 = vrot.lane.b32.xlu0 %v725, 120
    %v1349 = vpop.permute.xlu0 %1348
    %1350 = vrot.lane.b32.xlu0 %v727, 120
    %v1351 = vpop.permute.xlu0 %1350
    %1352 = vrot.lane.b32.xlu0 %v691, 120
    %v1353 = vpop.permute.xlu0 %1352
    %1354 = vrot.lane.b32.xlu0 %v736, 120
    %v1355 = vpop.permute.xlu0 %1354
    %1356 = vrot.lane.b32.xlu0 %v735, 120
    %v1357 = vpop.permute.xlu0 %1356
    %v1358 = vsel %vm353, %v1345, %v1347
    %v1359 = vsel %vm353, %v1347, %v1349
    %v1360 = vsel %vm353, %v1349, %v1351
    %v1361 = vsel %vm353, %v1351, %v1353
    %v1362 = vsel %vm353, %v1353, %v1355
    %v1363 = vsel %vm353, %v1355, %v1357
    %1371 = vrot.lane.b32.xlu0 %v667, 119
    %v1372 = vpop.permute.xlu0 %1371
    %1373 = vrot.lane.b32.xlu0 %v765, 119
    %v1374 = vpop.permute.xlu0 %1373
    %1375 = vrot.lane.b32.xlu0 %v674, 119
    %v1376 = vpop.permute.xlu0 %1375
    %1377 = vrot.lane.b32.xlu0 %v726, 119
    %v1378 = vpop.permute.xlu0 %1377
    %1379 = vrot.lane.b32.xlu0 %v684, 119
    %v1380 = vpop.permute.xlu0 %1379
    %1381 = vrot.lane.b32.xlu0 %v766, 119
    %v1382 = vpop.permute.xlu0 %1381
    %1383 = vrot.lane.b32.xlu0 %v691, 119
    %v1384 = vpop.permute.xlu0 %1383
    %v1385 = vsel %vm380, %v1372, %v1374
    %v1386 = vsel %vm380, %v1374, %v1376
    %v1387 = vsel %vm380, %v1376, %v1378
    %v1388 = vsel %vm380, %v1378, %v1380
    %v1389 = vsel %vm380, %v1380, %v1382
    %v1390 = vsel %vm380, %v1382, %v1384
    %1398 = vrot.lane.b32.xlu0 %v676, 118
    %v1399 = vpop.permute.xlu0 %1398
    %1400 = vrot.lane.b32.xlu0 %v674, 118
    %v1401 = vpop.permute.xlu0 %1400
    %1402 = vrot.lane.b32.xlu0 %v795, 118
    %v1403 = vpop.permute.xlu0 %1402
    %1404 = vrot.lane.b32.xlu0 %v725, 118
    %v1405 = vpop.permute.xlu0 %1404
    %1406 = vrot.lane.b32.xlu0 %v796, 118
    %v1407 = vpop.permute.xlu0 %1406
    %1408 = vrot.lane.b32.xlu0 %v691, 118
    %v1409 = vpop.permute.xlu0 %1408
    %1410 = vrot.lane.b32.xlu0 %v797, 118
    %v1411 = vpop.permute.xlu0 %1410
    %v1412 = vsel %vm407, %v1399, %v1401
    %v1413 = vsel %vm407, %v1401, %v1403
    %v1414 = vsel %vm407, %v1403, %v1405
    %v1415 = vsel %vm407, %v1405, %v1407
    %v1416 = vsel %vm407, %v1407, %v1409
    %v1417 = vsel %vm407, %v1409, %v1411
    %1425 = vrot.lane.b32.xlu0 %v675, 117
    %v1426 = vpop.permute.xlu0 %1425
    %1427 = vrot.lane.b32.xlu0 %v667, 117
    %v1428 = vpop.permute.xlu0 %1427
    %1429 = vrot.lane.b32.xlu0 %v676, 117
    %v1430 = vpop.permute.xlu0 %1429
    %1431 = vrot.lane.b32.xlu0 %v674, 117
    %v1432 = vpop.permute.xlu0 %1431
    %1433 = vrot.lane.b32.xlu0 %v692, 117
    %v1434 = vpop.permute.xlu0 %1433
    %1435 = vrot.lane.b32.xlu0 %v684, 117
    %v1436 = vpop.permute.xlu0 %1435
    %1437 = vrot.lane.b32.xlu0 %v796, 117
    %v1438 = vpop.permute.xlu0 %1437
    %v1439 = vsel %vm434, %v1426, %v1428
    %v1440 = vsel %vm434, %v1428, %v1430
    %v1441 = vsel %vm434, %v1430, %v1432
    %v1442 = vsel %vm434, %v1432, %v1434
    %v1443 = vsel %vm434, %v1434, %v1436
    %v1444 = vsel %vm434, %v1436, %v1438
    %1452 = vrot.lane.b32.xlu0 %v674, 116
    %v1453 = vpop.permute.xlu0 %1452
    %1454 = vrot.lane.b32.xlu0 %v726, 116
    %v1455 = vpop.permute.xlu0 %1454
    %1456 = vrot.lane.b32.xlu0 %v725, 116
    %v1457 = vpop.permute.xlu0 %1456
    %1458 = vrot.lane.b32.xlu0 %v727, 116
    %v1459 = vpop.permute.xlu0 %1458
    %1460 = vrot.lane.b32.xlu0 %v691, 116
    %v1461 = vpop.permute.xlu0 %1460
    %1462 = vrot.lane.b32.xlu0 %v736, 116
    %v1463 = vpop.permute.xlu0 %1462
    %1464 = vrot.lane.b32.xlu0 %v735, 116
    %v1465 = vpop.permute.xlu0 %1464
    %v1466 = vsel %vm461, %v1453, %v1455
    %v1467 = vsel %vm461, %v1455, %v1457
    %v1468 = vsel %vm461, %v1457, %v1459
    %v1469 = vsel %vm461, %v1459, %v1461
    %v1470 = vsel %vm461, %v1461, %v1463
    %v1471 = vsel %vm461, %v1463, %v1465
    %1479 = vrot.lane.b32.xlu0 %v667, 115
    %v1480 = vpop.permute.xlu0 %1479
    %1481 = vrot.lane.b32.xlu0 %v765, 115
    %v1482 = vpop.permute.xlu0 %1481
    %1483 = vrot.lane.b32.xlu0 %v674, 115
    %v1484 = vpop.permute.xlu0 %1483
    %1485 = vrot.lane.b32.xlu0 %v726, 115
    %v1486 = vpop.permute.xlu0 %1485
    %1487 = vrot.lane.b32.xlu0 %v684, 115
    %v1488 = vpop.permute.xlu0 %1487
    %1489 = vrot.lane.b32.xlu0 %v766, 115
    %v1490 = vpop.permute.xlu0 %1489
    %1491 = vrot.lane.b32.xlu0 %v691, 115
    %v1492 = vpop.permute.xlu0 %1491
    %v1493 = vsel %vm488, %v1480, %v1482
    %v1494 = vsel %vm488, %v1482, %v1484
    %v1495 = vsel %vm488, %v1484, %v1486
    %v1496 = vsel %vm488, %v1486, %v1488
    %v1497 = vsel %vm488, %v1488, %v1490
    %v1498 = vsel %vm488, %v1490, %v1492
    %1506 = vrot.lane.b32.xlu0 %v676, 114
    %v1507 = vpop.permute.xlu0 %1506
    %1508 = vrot.lane.b32.xlu0 %v674, 114
    %v1509 = vpop.permute.xlu0 %1508
    %1510 = vrot.lane.b32.xlu0 %v795, 114
    %v1511 = vpop.permute.xlu0 %1510
    %1512 = vrot.lane.b32.xlu0 %v725, 114
    %v1513 = vpop.permute.xlu0 %1512
    %1514 = vrot.lane.b32.xlu0 %v796, 114
    %v1515 = vpop.permute.xlu0 %1514
    %1516 = vrot.lane.b32.xlu0 %v691, 114
    %v1517 = vpop.permute.xlu0 %1516
    %1518 = vrot.lane.b32.xlu0 %v797, 114
    %v1519 = vpop.permute.xlu0 %1518
    %v1520 = vsel %vm515, %v1507, %v1509
    %v1521 = vsel %vm515, %v1509, %v1511
    %v1522 = vsel %vm515, %v1511, %v1513
    %v1523 = vsel %vm515, %v1513, %v1515
    %v1524 = vsel %vm515, %v1515, %v1517
    %v1525 = vsel %vm515, %v1517, %v1519
    %1533 = vrot.lane.b32.xlu0 %v675, 113
    %v1534 = vpop.permute.xlu0 %1533
    %1535 = vrot.lane.b32.xlu0 %v667, 113
    %v1536 = vpop.permute.xlu0 %1535
    %1537 = vrot.lane.b32.xlu0 %v676, 113
    %v1538 = vpop.permute.xlu0 %1537
    %1539 = vrot.lane.b32.xlu0 %v674, 113
    %v1540 = vpop.permute.xlu0 %1539
    %1541 = vrot.lane.b32.xlu0 %v692, 113
    %v1542 = vpop.permute.xlu0 %1541
    %1543 = vrot.lane.b32.xlu0 %v684, 113
    %v1544 = vpop.permute.xlu0 %1543
    %1545 = vrot.lane.b32.xlu0 %v796, 113
    %v1546 = vpop.permute.xlu0 %1545
    %v1547 = vsel %vm542, %v1534, %v1536
    %v1548 = vsel %vm542, %v1536, %v1538
    %v1549 = vsel %vm542, %v1538, %v1540
    %v1550 = vsel %vm542, %v1540, %v1542
    %v1551 = vsel %vm542, %v1542, %v1544
    %v1552 = vsel %vm542, %v1544, %v1546
    %v1560 = vsel %vm555, %v674, %v1169
    %v1561 = vsel %vm555, %v726, %v1170
    %v1562 = vsel %vm555, %v725, %v1171
    %v1563 = vsel %vm555, %v727, %v1172
    %v1564 = vsel %vm555, %v691, %v1173
    %v1565 = vsel %vm555, %v736, %v1174
    %v1566 = vsel %vm555, %v735, %v1168
    %v1567 = vsel %vm562, %v1560, %v1196
    %v1568 = vsel %vm562, %v1561, %v1197
    %v1569 = vsel %vm562, %v1562, %v1198
    %v1570 = vsel %vm562, %v1563, %v1199
    %v1571 = vsel %vm562, %v1564, %v1200
    %v1572 = vsel %vm562, %v1565, %v1201
    %v1573 = vsel %vm562, %v1566, %v1195
    %v1574 = vsel %vm569, %v1567, %v1223
    %v1575 = vsel %vm569, %v1568, %v1224
    %v1576 = vsel %vm569, %v1569, %v1225
    %v1577 = vsel %vm569, %v1570, %v1226
    %v1578 = vsel %vm569, %v1571, %v1227
    %v1579 = vsel %vm569, %v1572, %v1228
    %v1580 = vsel %vm569, %v1573, %v1222
    %v1581 = vsel %vm555, %v1250, %v1277
    %v1582 = vsel %vm555, %v1251, %v1278
    %v1583 = vsel %vm555, %v1252, %v1279
    %v1584 = vsel %vm555, %v1253, %v1280
    %v1585 = vsel %vm555, %v1254, %v1281
    %v1586 = vsel %vm555, %v1255, %v1282
    %v1587 = vsel %vm555, %v1249, %v1276
    %v1588 = vsel %vm562, %v1581, %v1304
    %v1589 = vsel %vm562, %v1582, %v1305
    %v1590 = vsel %vm562, %v1583, %v1306
    %v1591 = vsel %vm562, %v1584, %v1307
    %v1592 = vsel %vm562, %v1585, %v1308
    %v1593 = vsel %vm562, %v1586, %v1309
    %v1594 = vsel %vm562, %v1587, %v1303
    %v1595 = vsel %vm569, %v1588, %v1331
    %v1596 = vsel %vm569, %v1589, %v1332
    %v1597 = vsel %vm569, %v1590, %v1333
    %v1598 = vsel %vm569, %v1591, %v1334
    %v1599 = vsel %vm569, %v1592, %v1335
    %v1600 = vsel %vm569, %v1593, %v1336
    %v1601 = vsel %vm569, %v1594, %v1330
    %v1602 = vsel %vm555, %v1358, %v1385
    %v1603 = vsel %vm555, %v1359, %v1386
    %v1604 = vsel %vm555, %v1360, %v1387
    %v1605 = vsel %vm555, %v1361, %v1388
    %v1606 = vsel %vm555, %v1362, %v1389
    %v1607 = vsel %vm555, %v1363, %v1390
    %v1608 = vsel %vm555, %v1357, %v1384
    %v1609 = vsel %vm562, %v1602, %v1412
    %v1610 = vsel %vm562, %v1603, %v1413
    %v1611 = vsel %vm562, %v1604, %v1414
    %v1612 = vsel %vm562, %v1605, %v1415
    %v1613 = vsel %vm562, %v1606, %v1416
    %v1614 = vsel %vm562, %v1607, %v1417
    %v1615 = vsel %vm562, %v1608, %v1411
    %v1616 = vsel %vm569, %v1609, %v1439
    %v1617 = vsel %vm569, %v1610, %v1440
    %v1618 = vsel %vm569, %v1611, %v1441
    %v1619 = vsel %vm569, %v1612, %v1442
    %v1620 = vsel %vm569, %v1613, %v1443
    %v1621 = vsel %vm569, %v1614, %v1444
    %v1622 = vsel %vm569, %v1615, %v1438
    %v1623 = vsel %vm555, %v1466, %v1493
    %v1624 = vsel %vm555, %v1467, %v1494
    %v1625 = vsel %vm555, %v1468, %v1495
    %v1626 = vsel %vm555, %v1469, %v1496
    %v1627 = vsel %vm555, %v1470, %v1497
    %v1628 = vsel %vm555, %v1471, %v1498
    %v1629 = vsel %vm555, %v1465, %v1492
    %v1630 = vsel %vm562, %v1623, %v1520
    %v1631 = vsel %vm562, %v1624, %v1521
    %v1632 = vsel %vm562, %v1625, %v1522
    %v1633 = vsel %vm562, %v1626, %v1523
    %v1634 = vsel %vm562, %v1627, %v1524
    %v1635 = vsel %vm562, %v1628, %v1525
    %v1636 = vsel %vm562, %v1629, %v1519
    %v1637 = vsel %vm569, %v1630, %v1547
    %v1638 = vsel %vm569, %v1631, %v1548
    %v1639 = vsel %vm569, %v1632, %v1549
    %v1640 = vsel %vm569, %v1633, %v1550
    %v1641 = vsel %vm569, %v1634, %v1551
    %v1642 = vsel %vm569, %v1635, %v1552
    %v1643 = vsel %vm569, %v1636, %v1546
    %1672 = vrot.lane.b32.xlu0 %v570, 112
    %v1673 = vpop.permute.xlu0 %1672
    %1674 = vrot.lane.b32.xlu0 %v571, 112
    %v1675 = vpop.permute.xlu0 %1674
    %1676 = vrot.lane.b32.xlu0 %v572, 112
    %v1677 = vpop.permute.xlu0 %1676
    %1678 = vrot.lane.b32.xlu0 %v573, 112
    %v1679 = vpop.permute.xlu0 %1678
    %1680 = vrot.lane.b32.xlu0 %v574, 112
    %v1681 = vpop.permute.xlu0 %1680
    %1682 = vrot.lane.b32.xlu0 %v575, 112
    %v1683 = vpop.permute.xlu0 %1682
    %1684 = vrot.lane.b32.xlu0 %v648, 112
    %v1685 = vpop.permute.xlu0 %1684
    %1686 = vrot.lane.b32.xlu0 %v588, 112
    %v1687 = vpop.permute.xlu0 %1686
    %1688 = vrot.lane.b32.xlu0 %v589, 112
    %v1689 = vpop.permute.xlu0 %1688
    %1690 = vrot.lane.b32.xlu0 %v590, 112
    %v1691 = vpop.permute.xlu0 %1690
    %1692 = vrot.lane.b32.xlu0 %v591, 112
    %v1693 = vpop.permute.xlu0 %1692
    %1694 = vrot.lane.b32.xlu0 %v592, 112
    %v1695 = vpop.permute.xlu0 %1694
    %1696 = vrot.lane.b32.xlu0 %v593, 112
    %v1697 = vpop.permute.xlu0 %1696
    %1698 = vrot.lane.b32.xlu0 %v651, 112
    %v1699 = vpop.permute.xlu0 %1698
    %1700 = vrot.lane.b32.xlu0 %v606, 112
    %v1701 = vpop.permute.xlu0 %1700
    %1702 = vrot.lane.b32.xlu0 %v607, 112
    %v1703 = vpop.permute.xlu0 %1702
    %1704 = vrot.lane.b32.xlu0 %v608, 112
    %v1705 = vpop.permute.xlu0 %1704
    %1706 = vrot.lane.b32.xlu0 %v609, 112
    %v1707 = vpop.permute.xlu0 %1706
    %1708 = vrot.lane.b32.xlu0 %v610, 112
    %v1709 = vpop.permute.xlu0 %1708
    %1710 = vrot.lane.b32.xlu0 %v611, 112
    %v1711 = vpop.permute.xlu0 %1710
    %1712 = vrot.lane.b32.xlu0 %v654, 112
    %v1713 = vpop.permute.xlu0 %1712
    %1714 = vrot.lane.b32.xlu0 %v624, 112
    %v1715 = vpop.permute.xlu0 %1714
    %1716 = vrot.lane.b32.xlu0 %v625, 112
    %v1717 = vpop.permute.xlu0 %1716
    %1718 = vrot.lane.b32.xlu0 %v626, 112
    %v1719 = vpop.permute.xlu0 %1718
    %1720 = vrot.lane.b32.xlu0 %v627, 112
    %v1721 = vpop.permute.xlu0 %1720
    %1722 = vrot.lane.b32.xlu0 %v628, 112
    %v1723 = vpop.permute.xlu0 %1722
    %1724 = vrot.lane.b32.xlu0 %v629, 112
    %v1725 = vpop.permute.xlu0 %1724
    %1726 = vrot.lane.b32.xlu0 %v657, 112
    %v1727 = vpop.permute.xlu0 %1726
    %vm1728 = vcmask 916480
    %v1729 = vsel %vm1728, %v1673, %v1675
    %v1730 = vsel %vm1728, %v1675, %v1677
    %v1731 = vsel %vm1728, %v1677, %v1679
    %v1732 = vsel %vm1728, %v1679, %v1681
    %v1733 = vsel %vm1728, %v1681, %v1683
    %v1734 = vsel %vm1728, %v1683, %v1685
    %v1735 = vsel %vm1728, %v1687, %v1689
    %v1736 = vsel %vm1728, %v1689, %v1691
    %v1737 = vsel %vm1728, %v1691, %v1693
    %v1738 = vsel %vm1728, %v1693, %v1695
    %v1739 = vsel %vm1728, %v1695, %v1697
    %v1740 = vsel %vm1728, %v1697, %v1699
    %v1741 = vsel %vm1728, %v1701, %v1703
    %v1742 = vsel %vm1728, %v1703, %v1705
    %v1743 = vsel %vm1728, %v1705, %v1707
    %v1744 = vsel %vm1728, %v1707, %v1709
    %v1745 = vsel %vm1728, %v1709, %v1711
    %v1746 = vsel %vm1728, %v1711, %v1713
    %v1747 = vsel %vm1728, %v1715, %v1717
    %v1748 = vsel %vm1728, %v1717, %v1719
    %v1749 = vsel %vm1728, %v1719, %v1721
    %v1750 = vsel %vm1728, %v1721, %v1723
    %v1751 = vsel %vm1728, %v1723, %v1725
    %v1752 = vsel %vm1728, %v1725, %v1727
    %1777 = vrot.lane.b32.xlu0 %v570, 96
    %v1778 = vpop.permute.xlu0 %1777
    %1779 = vrot.lane.b32.xlu0 %v571, 96
    %v1780 = vpop.permute.xlu0 %1779
    %1781 = vrot.lane.b32.xlu0 %v572, 96
    %v1782 = vpop.permute.xlu0 %1781
    %1783 = vrot.lane.b32.xlu0 %v573, 96
    %v1784 = vpop.permute.xlu0 %1783
    %1785 = vrot.lane.b32.xlu0 %v574, 96
    %v1786 = vpop.permute.xlu0 %1785
    %1787 = vrot.lane.b32.xlu0 %v575, 96
    %v1788 = vpop.permute.xlu0 %1787
    %1789 = vrot.lane.b32.xlu0 %v648, 96
    %v1790 = vpop.permute.xlu0 %1789
    %1791 = vrot.lane.b32.xlu0 %v588, 96
    %v1792 = vpop.permute.xlu0 %1791
    %1793 = vrot.lane.b32.xlu0 %v589, 96
    %v1794 = vpop.permute.xlu0 %1793
    %1795 = vrot.lane.b32.xlu0 %v590, 96
    %v1796 = vpop.permute.xlu0 %1795
    %1797 = vrot.lane.b32.xlu0 %v591, 96
    %v1798 = vpop.permute.xlu0 %1797
    %1799 = vrot.lane.b32.xlu0 %v592, 96
    %v1800 = vpop.permute.xlu0 %1799
    %1801 = vrot.lane.b32.xlu0 %v593, 96
    %v1802 = vpop.permute.xlu0 %1801
    %1803 = vrot.lane.b32.xlu0 %v651, 96
    %v1804 = vpop.permute.xlu0 %1803
    %1805 = vrot.lane.b32.xlu0 %v606, 96
    %v1806 = vpop.permute.xlu0 %1805
    %1807 = vrot.lane.b32.xlu0 %v607, 96
    %v1808 = vpop.permute.xlu0 %1807
    %1809 = vrot.lane.b32.xlu0 %v608, 96
    %v1810 = vpop.permute.xlu0 %1809
    %1811 = vrot.lane.b32.xlu0 %v609, 96
    %v1812 = vpop.permute.xlu0 %1811
    %1813 = vrot.lane.b32.xlu0 %v610, 96
    %v1814 = vpop.permute.xlu0 %1813
    %1815 = vrot.lane.b32.xlu0 %v611, 96
    %v1816 = vpop.permute.xlu0 %1815
    %1817 = vrot.lane.b32.xlu0 %v654, 96
    %v1818 = vpop.permute.xlu0 %1817
    %1819 = vrot.lane.b32.xlu0 %v624, 96
    %v1820 = vpop.permute.xlu0 %1819
    %1821 = vrot.lane.b32.xlu0 %v625, 96
    %v1822 = vpop.permute.xlu0 %1821
    %1823 = vrot.lane.b32.xlu0 %v626, 96
    %v1824 = vpop.permute.xlu0 %1823
    %1825 = vrot.lane.b32.xlu0 %v627, 96
    %v1826 = vpop.permute.xlu0 %1825
    %1827 = vrot.lane.b32.xlu0 %v628, 96
    %v1828 = vpop.permute.xlu0 %1827
    %1829 = vrot.lane.b32.xlu0 %v629, 96
    %v1830 = vpop.permute.xlu0 %1829
    %1831 = vrot.lane.b32.xlu0 %v657, 96
    %v1832 = vpop.permute.xlu0 %1831
    %vm1833 = vcmask 785408
    %v1834 = vsel %vm1833, %v1778, %v1780
    %v1835 = vsel %vm1833, %v1780, %v1782
    %v1836 = vsel %vm1833, %v1782, %v1784
    %v1837 = vsel %vm1833, %v1784, %v1786
    %v1838 = vsel %vm1833, %v1786, %v1788
    %v1839 = vsel %vm1833, %v1788, %v1790
    %v1840 = vsel %vm1833, %v1792, %v1794
    %v1841 = vsel %vm1833, %v1794, %v1796
    %v1842 = vsel %vm1833, %v1796, %v1798
    %v1843 = vsel %vm1833, %v1798, %v1800
    %v1844 = vsel %vm1833, %v1800, %v1802
    %v1845 = vsel %vm1833, %v1802, %v1804
    %v1846 = vsel %vm1833, %v1806, %v1808
    %v1847 = vsel %vm1833, %v1808, %v1810
    %v1848 = vsel %vm1833, %v1810, %v1812
    %v1849 = vsel %vm1833, %v1812, %v1814
    %v1850 = vsel %vm1833, %v1814, %v1816
    %v1851 = vsel %vm1833, %v1816, %v1818
    %v1852 = vsel %vm1833, %v1820, %v1822
    %v1853 = vsel %vm1833, %v1822, %v1824
    %v1854 = vsel %vm1833, %v1824, %v1826
    %v1855 = vsel %vm1833, %v1826, %v1828
    %v1856 = vsel %vm1833, %v1828, %v1830
    %v1857 = vsel %vm1833, %v1830, %v1832
    %1910 = vrot.lane.b32.xlu0 %v1078, 80
    %v1911 = vpop.permute.xlu0 %1910
    %1912 = vrot.lane.b32.xlu0 %v1079, 80
    %v1913 = vpop.permute.xlu0 %1912
    %1914 = vrot.lane.b32.xlu0 %v1080, 80
    %v1915 = vpop.permute.xlu0 %1914
    %1916 = vrot.lane.b32.xlu0 %v1081, 80
    %v1917 = vpop.permute.xlu0 %1916
    %1918 = vrot.lane.b32.xlu0 %v1082, 80
    %v1919 = vpop.permute.xlu0 %1918
    %1920 = vrot.lane.b32.xlu0 %v1083, 80
    %v1921 = vpop.permute.xlu0 %1920
    %1922 = vrot.lane.b32.xlu0 %v1084, 80
    %v1923 = vpop.permute.xlu0 %1922
    %1924 = vrot.lane.b32.xlu0 %v1099, 80
    %v1925 = vpop.permute.xlu0 %1924
    %1926 = vrot.lane.b32.xlu0 %v1100, 80
    %v1927 = vpop.permute.xlu0 %1926
    %1928 = vrot.lane.b32.xlu0 %v1101, 80
    %v1929 = vpop.permute.xlu0 %1928
    %1930 = vrot.lane.b32.xlu0 %v1102, 80
    %v1931 = vpop.permute.xlu0 %1930
    %1932 = vrot.lane.b32.xlu0 %v1103, 80
    %v1933 = vpop.permute.xlu0 %1932
    %1934 = vrot.lane.b32.xlu0 %v1104, 80
    %v1935 = vpop.permute.xlu0 %1934
    %1936 = vrot.lane.b32.xlu0 %v1105, 80
    %v1937 = vpop.permute.xlu0 %1936
    %1938 = vrot.lane.b32.xlu0 %v1120, 80
    %v1939 = vpop.permute.xlu0 %1938
    %1940 = vrot.lane.b32.xlu0 %v1121, 80
    %v1941 = vpop.permute.xlu0 %1940
    %1942 = vrot.lane.b32.xlu0 %v1122, 80
    %v1943 = vpop.permute.xlu0 %1942
    %1944 = vrot.lane.b32.xlu0 %v1123, 80
    %v1945 = vpop.permute.xlu0 %1944
    %1946 = vrot.lane.b32.xlu0 %v1124, 80
    %v1947 = vpop.permute.xlu0 %1946
    %1948 = vrot.lane.b32.xlu0 %v1125, 80
    %v1949 = vpop.permute.xlu0 %1948
    %1950 = vrot.lane.b32.xlu0 %v1126, 80
    %v1951 = vpop.permute.xlu0 %1950
    %1952 = vrot.lane.b32.xlu0 %v1141, 80
    %v1953 = vpop.permute.xlu0 %1952
    %1954 = vrot.lane.b32.xlu0 %v1142, 80
    %v1955 = vpop.permute.xlu0 %1954
    %1956 = vrot.lane.b32.xlu0 %v1143, 80
    %v1957 = vpop.permute.xlu0 %1956
    %1958 = vrot.lane.b32.xlu0 %v1144, 80
    %v1959 = vpop.permute.xlu0 %1958
    %1960 = vrot.lane.b32.xlu0 %v1145, 80
    %v1961 = vpop.permute.xlu0 %1960
    %1962 = vrot.lane.b32.xlu0 %v1146, 80
    %v1963 = vpop.permute.xlu0 %1962
    %1964 = vrot.lane.b32.xlu0 %v1147, 80
    %v1965 = vpop.permute.xlu0 %1964
    %vm1966 = vcmask 654336
    %v1967 = vsel %vm1966, %v1911, %v1913
    %v1968 = vsel %vm1966, %v1913, %v1915
    %v1969 = vsel %vm1966, %v1915, %v1917
    %v1970 = vsel %vm1966, %v1917, %v1919
    %v1971 = vsel %vm1966, %v1919, %v1921
    %v1972 = vsel %vm1966, %v1921, %v1923
    %v1973 = vsel %vm1966, %v1925, %v1927
    %v1974 = vsel %vm1966, %v1927, %v1929
    %v1975 = vsel %vm1966, %v1929, %v1931
    %v1976 = vsel %vm1966, %v1931, %v1933
    %v1977 = vsel %vm1966, %v1933, %v1935
    %v1978 = vsel %vm1966, %v1935, %v1937
    %v1979 = vsel %vm1966, %v1939, %v1941
    %v1980 = vsel %vm1966, %v1941, %v1943
    %v1981 = vsel %vm1966, %v1943, %v1945
    %v1982 = vsel %vm1966, %v1945, %v1947
    %v1983 = vsel %vm1966, %v1947, %v1949
    %v1984 = vsel %vm1966, %v1949, %v1951
    %v1985 = vsel %vm1966, %v1953, %v1955
    %v1986 = vsel %vm1966, %v1955, %v1957
    %v1987 = vsel %vm1966, %v1957, %v1959
    %v1988 = vsel %vm1966, %v1959, %v1961
    %v1989 = vsel %vm1966, %v1961, %v1963
    %v1990 = vsel %vm1966, %v1963, %v1965
    %2043 = vrot.lane.b32.xlu0 %v1574, 115
    %v2044 = vpop.permute.xlu0 %2043
    %2045 = vrot.lane.b32.xlu0 %v1575, 115
    %v2046 = vpop.permute.xlu0 %2045
    %2047 = vrot.lane.b32.xlu0 %v1576, 115
    %v2048 = vpop.permute.xlu0 %2047
    %2049 = vrot.lane.b32.xlu0 %v1577, 115
    %v2050 = vpop.permute.xlu0 %2049
    %2051 = vrot.lane.b32.xlu0 %v1578, 115
    %v2052 = vpop.permute.xlu0 %2051
    %2053 = vrot.lane.b32.xlu0 %v1579, 115
    %v2054 = vpop.permute.xlu0 %2053
    %2055 = vrot.lane.b32.xlu0 %v1580, 115
    %v2056 = vpop.permute.xlu0 %2055
    %2057 = vrot.lane.b32.xlu0 %v1595, 115
    %v2058 = vpop.permute.xlu0 %2057
    %2059 = vrot.lane.b32.xlu0 %v1596, 115
    %v2060 = vpop.permute.xlu0 %2059
    %2061 = vrot.lane.b32.xlu0 %v1597, 115
    %v2062 = vpop.permute.xlu0 %2061
    %2063 = vrot.lane.b32.xlu0 %v1598, 115
    %v2064 = vpop.permute.xlu0 %2063
    %2065 = vrot.lane.b32.xlu0 %v1599, 115
    %v2066 = vpop.permute.xlu0 %2065
    %2067 = vrot.lane.b32.xlu0 %v1600, 115
    %v2068 = vpop.permute.xlu0 %2067
    %2069 = vrot.lane.b32.xlu0 %v1601, 115
    %v2070 = vpop.permute.xlu0 %2069
    %2071 = vrot.lane.b32.xlu0 %v1616, 115
    %v2072 = vpop.permute.xlu0 %2071
    %2073 = vrot.lane.b32.xlu0 %v1617, 115
    %v2074 = vpop.permute.xlu0 %2073
    %2075 = vrot.lane.b32.xlu0 %v1618, 115
    %v2076 = vpop.permute.xlu0 %2075
    %2077 = vrot.lane.b32.xlu0 %v1619, 115
    %v2078 = vpop.permute.xlu0 %2077
    %2079 = vrot.lane.b32.xlu0 %v1620, 115
    %v2080 = vpop.permute.xlu0 %2079
    %2081 = vrot.lane.b32.xlu0 %v1621, 115
    %v2082 = vpop.permute.xlu0 %2081
    %2083 = vrot.lane.b32.xlu0 %v1622, 115
    %v2084 = vpop.permute.xlu0 %2083
    %2085 = vrot.lane.b32.xlu0 %v1637, 115
    %v2086 = vpop.permute.xlu0 %2085
    %2087 = vrot.lane.b32.xlu0 %v1638, 115
    %v2088 = vpop.permute.xlu0 %2087
    %2089 = vrot.lane.b32.xlu0 %v1639, 115
    %v2090 = vpop.permute.xlu0 %2089
    %2091 = vrot.lane.b32.xlu0 %v1640, 115
    %v2092 = vpop.permute.xlu0 %2091
    %2093 = vrot.lane.b32.xlu0 %v1641, 115
    %v2094 = vpop.permute.xlu0 %2093
    %2095 = vrot.lane.b32.xlu0 %v1642, 115
    %v2096 = vpop.permute.xlu0 %2095
    %2097 = vrot.lane.b32.xlu0 %v1643, 115
    %v2098 = vpop.permute.xlu0 %2097
    %v2099 = vsel %vm488, %v2044, %v2046
    %v2100 = vsel %vm488, %v2046, %v2048
    %v2101 = vsel %vm488, %v2048, %v2050
    %v2102 = vsel %vm488, %v2050, %v2052
    %v2103 = vsel %vm488, %v2052, %v2054
    %v2104 = vsel %vm488, %v2054, %v2056
    %v2105 = vsel %vm488, %v2058, %v2060
    %v2106 = vsel %vm488, %v2060, %v2062
    %v2107 = vsel %vm488, %v2062, %v2064
    %v2108 = vsel %vm488, %v2064, %v2066
    %v2109 = vsel %vm488, %v2066, %v2068
    %v2110 = vsel %vm488, %v2068, %v2070
    %v2111 = vsel %vm488, %v2072, %v2074
    %v2112 = vsel %vm488, %v2074, %v2076
    %v2113 = vsel %vm488, %v2076, %v2078
    %v2114 = vsel %vm488, %v2078, %v2080
    %v2115 = vsel %vm488, %v2080, %v2082
    %v2116 = vsel %vm488, %v2082, %v2084
    %v2117 = vsel %vm488, %v2086, %v2088
    %v2118 = vsel %vm488, %v2088, %v2090
    %v2119 = vsel %vm488, %v2090, %v2092
    %v2120 = vsel %vm488, %v2092, %v2094
    %v2121 = vsel %vm488, %v2094, %v2096
    %v2122 = vsel %vm488, %v2096, %v2098
    %2147 = vrot.lane.b32.xlu0 %v1574, 99
    %v2148 = vpop.permute.xlu0 %2147
    %2149 = vrot.lane.b32.xlu0 %v1575, 99
    %v2150 = vpop.permute.xlu0 %2149
    %2151 = vrot.lane.b32.xlu0 %v1576, 99
    %v2152 = vpop.permute.xlu0 %2151
    %2153 = vrot.lane.b32.xlu0 %v1577, 99
    %v2154 = vpop.permute.xlu0 %2153
    %2155 = vrot.lane.b32.xlu0 %v1578, 99
    %v2156 = vpop.permute.xlu0 %2155
    %2157 = vrot.lane.b32.xlu0 %v1579, 99
    %v2158 = vpop.permute.xlu0 %2157
    %2159 = vrot.lane.b32.xlu0 %v1580, 99
    %v2160 = vpop.permute.xlu0 %2159
    %2161 = vrot.lane.b32.xlu0 %v1595, 99
    %v2162 = vpop.permute.xlu0 %2161
    %2163 = vrot.lane.b32.xlu0 %v1596, 99
    %v2164 = vpop.permute.xlu0 %2163
    %2165 = vrot.lane.b32.xlu0 %v1597, 99
    %v2166 = vpop.permute.xlu0 %2165
    %2167 = vrot.lane.b32.xlu0 %v1598, 99
    %v2168 = vpop.permute.xlu0 %2167
    %2169 = vrot.lane.b32.xlu0 %v1599, 99
    %v2170 = vpop.permute.xlu0 %2169
    %2171 = vrot.lane.b32.xlu0 %v1600, 99
    %v2172 = vpop.permute.xlu0 %2171
    %2173 = vrot.lane.b32.xlu0 %v1601, 99
    %v2174 = vpop.permute.xlu0 %2173
    %2175 = vrot.lane.b32.xlu0 %v1616, 99
    %v2176 = vpop.permute.xlu0 %2175
    %2177 = vrot.lane.b32.xlu0 %v1617, 99
    %v2178 = vpop.permute.xlu0 %2177
    %2179 = vrot.lane.b32.xlu0 %v1618, 99
    %v2180 = vpop.permute.xlu0 %2179
    %2181 = vrot.lane.b32.xlu0 %v1619, 99
    %v2182 = vpop.permute.xlu0 %2181
    %2183 = vrot.lane.b32.xlu0 %v1620, 99
    %v2184 = vpop.permute.xlu0 %2183
    %2185 = vrot.lane.b32.xlu0 %v1621, 99
    %v2186 = vpop.permute.xlu0 %2185
    %2187 = vrot.lane.b32.xlu0 %v1622, 99
    %v2188 = vpop.permute.xlu0 %2187
    %2189 = vrot.lane.b32.xlu0 %v1637, 99
    %v2190 = vpop.permute.xlu0 %2189
    %2191 = vrot.lane.b32.xlu0 %v1638, 99
    %v2192 = vpop.permute.xlu0 %2191
    %2193 = vrot.lane.b32.xlu0 %v1639, 99
    %v2194 = vpop.permute.xlu0 %2193
    %2195 = vrot.lane.b32.xlu0 %v1640, 99
    %v2196 = vpop.permute.xlu0 %2195
    %2197 = vrot.lane.b32.xlu0 %v1641, 99
    %v2198 = vpop.permute.xlu0 %2197
    %2199 = vrot.lane.b32.xlu0 %v1642, 99
    %v2200 = vpop.permute.xlu0 %2199
    %2201 = vrot.lane.b32.xlu0 %v1643, 99
    %v2202 = vpop.permute.xlu0 %2201
    %vm2203 = vcmask 809984
    %v2204 = vsel %vm2203, %v2148, %v2150
    %v2205 = vsel %vm2203, %v2150, %v2152
    %v2206 = vsel %vm2203, %v2152, %v2154
    %v2207 = vsel %vm2203, %v2154, %v2156
    %v2208 = vsel %vm2203, %v2156, %v2158
    %v2209 = vsel %vm2203, %v2158, %v2160
    %v2210 = vsel %vm2203, %v2162, %v2164
    %v2211 = vsel %vm2203, %v2164, %v2166
    %v2212 = vsel %vm2203, %v2166, %v2168
    %v2213 = vsel %vm2203, %v2168, %v2170
    %v2214 = vsel %vm2203, %v2170, %v2172
    %v2215 = vsel %vm2203, %v2172, %v2174
    %v2216 = vsel %vm2203, %v2176, %v2178
    %v2217 = vsel %vm2203, %v2178, %v2180
    %v2218 = vsel %vm2203, %v2180, %v2182
    %v2219 = vsel %vm2203, %v2182, %v2184
    %v2220 = vsel %vm2203, %v2184, %v2186
    %v2221 = vsel %vm2203, %v2186, %v2188
    %v2222 = vsel %vm2203, %v2190, %v2192
    %v2223 = vsel %vm2203, %v2192, %v2194
    %v2224 = vsel %vm2203, %v2194, %v2196
    %v2225 = vsel %vm2203, %v2196, %v2198
    %v2226 = vsel %vm2203, %v2198, %v2200
    %v2227 = vsel %vm2203, %v2200, %v2202
    %2259 = vrot.lane.b32.xlu0 %v1574, 83
    %v2260 = vpop.permute.xlu0 %2259
    %2261 = vrot.lane.b32.xlu0 %v1575, 83
    %v2262 = vpop.permute.xlu0 %2261
    %2263 = vrot.lane.b32.xlu0 %v1576, 83
    %v2264 = vpop.permute.xlu0 %2263
    %2265 = vrot.lane.b32.xlu0 %v1577, 83
    %v2266 = vpop.permute.xlu0 %2265
    %2267 = vrot.lane.b32.xlu0 %v1578, 83
    %v2268 = vpop.permute.xlu0 %2267
    %2269 = vrot.lane.b32.xlu0 %v1579, 83
    %v2270 = vpop.permute.xlu0 %2269
    %2271 = vrot.lane.b32.xlu0 %v1580, 83
    %v2272 = vpop.permute.xlu0 %2271
    %2273 = vrot.lane.b32.xlu0 %v1581, 83
    %v2274 = vpop.permute.xlu0 %2273
    %2275 = vrot.lane.b32.xlu0 %v1582, 83
    %v2276 = vpop.permute.xlu0 %2275
    %2277 = vrot.lane.b32.xlu0 %v1583, 83
    %v2278 = vpop.permute.xlu0 %2277
    %2279 = vrot.lane.b32.xlu0 %v1584, 83
    %v2280 = vpop.permute.xlu0 %2279
    %2281 = vrot.lane.b32.xlu0 %v1585, 83
    %v2282 = vpop.permute.xlu0 %2281
    %2283 = vrot.lane.b32.xlu0 %v1586, 83
    %v2284 = vpop.permute.xlu0 %2283
    %2285 = vrot.lane.b32.xlu0 %v1587, 83
    %v2286 = vpop.permute.xlu0 %2285
    %vm2287 = vcmask 678912
    %v2288 = vsel %vm2287, %v2260, %v2262
    %v2289 = vsel %vm2287, %v2262, %v2264
    %v2290 = vsel %vm2287, %v2264, %v2266
    %v2291 = vsel %vm2287, %v2266, %v2268
    %v2292 = vsel %vm2287, %v2268, %v2270
    %v2293 = vsel %vm2287, %v2270, %v2272
    %v2294 = vsel %vm2287, %v2274, %v2276
    %v2295 = vsel %vm2287, %v2276, %v2278
    %v2296 = vsel %vm2287, %v2278, %v2280
    %v2297 = vsel %vm2287, %v2280, %v2282
    %v2298 = vsel %vm2287, %v2282, %v2284
    %v2299 = vsel %vm2287, %v2284, %v2286
    %v2306 = vld [vmem:[#allocation2] sm:$0xff]
    %v2307 = vld [vmem:[#allocation2 + $0x8] sm:$0xff]
    %v2308 = vld [vmem:[#allocation2 + $0x10] sm:$0xff]
    %v2309 = vld [vmem:[#allocation2 + $0x18] sm:$0xff]
    %v2310 = vld [vmem:[#allocation2 + $0x20] sm:$0xff]
    %v2311 = vld [vmem:[#allocation2 + $0x28] sm:$0xff]
    %v2312 = vld [vmem:[#allocation2 + $0x30] sm:$0xff]
    %v2313 = vld [vmem:[#allocation2 + $0x38] sm:$0xff]
    %v2314 = vld [vmem:[#allocation2 + $0x40] sm:$0xff]
    %v2315 = vld [vmem:[#allocation2 + $0x48] sm:$0xff]
    %v2316 = vld [vmem:[#allocation2 + $0x50] sm:$0xff]
    %v2317 = vld [vmem:[#allocation2 + $0x58] sm:$0xff]
    %v2318 = vld [vmem:[#allocation2 + $0x60] sm:$0xff]
    %v2319 = vld [vmem:[#allocation2 + $0x68] sm:$0xff]
    %v2320 = vld [vmem:[#allocation2 + $0x70] sm:$0xff]
    %v2321 = vld [vmem:[#allocation2 + $0x78] sm:$0xff]
    %vm2322 = vcmask 621568
    %v2324 = vsel %vm2322, %v2307, 0
    %v2327 = vsel %vm2322, %v2309, 0
    %v2330 = vsel %vm2322, %v2311, 0
    %v2333 = vsel %vm2322, %v2313, 0
    %v2336 = vsel %vm2322, %v2315, 0
    %v2339 = vsel %vm2322, %v2317, 0
    %v2342 = vsel %vm2322, %v2319, 0
    %v2345 = vsel %vm2322, %v2321, 0
    %v2347 = vsel %vm562, %v2294, 0
    %v2349 = vsel %vm562, %v2295, 0
    %v2351 = vsel %vm562, %v2296, 0
    %v2353 = vsel %vm562, %v2297, 0
    %v2355 = vsel %vm562, %v2298, 0
    %v2357 = vsel %vm562, %v2299, 0
    %2359 = vmatprep.subr.mxu0 %v571
    %2360 = vmatpush1.msra.mxu0 %v570
    %2361 = vmatprep.subr.mxu0 %v589
    %2362 = vmatpush1.msra.mxu0 %v588
    %2363 = vmatprep.subr.mxu0 %v607
    %2364 = vmatpush1.msra.mxu0 %v606
    %2365 = vmatprep.subr.mxu0 %v625
    %2366 = vmatpush1.msra.mxu0 %v624
    %2367 = vmatprep.subr.mxu0 %v1730
    %2368 = vmatpush1.msra.mxu0 %v1729
    %2369 = vmatprep.subr.mxu0 %v1736
    %2370 = vmatpush1.msra.mxu0 %v1735
    %2371 = vmatprep.subr.mxu0 %v1742
    %2372 = vmatpush1.msra.mxu0 %v1741
    %2373 = vmatprep.subr.mxu0 %v1748
    %2374 = vmatpush1.msra.mxu0 %v1747
    %2375 = vmatprep.subr.mxu0 %v1835
    %2376 = vmatpush1.msra.mxu0 %v1834
    %2377 = vmatprep.subr.mxu0 %v1841
    %2378 = vmatpush1.msra.mxu0 %v1840
    %2379 = vmatprep.subr.mxu0 %v1847
    %2380 = vmatpush1.msra.mxu0 %v1846
    %2381 = vmatprep.subr.mxu0 %v1853
    %2382 = vmatpush1.msra.mxu0 %v1852
    %2383 = vmatprep.subr.mxu0 %v1968
    %2384 = vmatpush1.msra.mxu0 %v1967
    %2385 = vmatprep.subr.mxu0 %v1974
    %2386 = vmatpush1.msra.mxu0 %v1973
    %2387 = vmatprep.subr.mxu0 %v1980
    %2388 = vmatpush1.msra.mxu0 %v1979
    %2389 = vmatprep.subr.mxu0 %v1986
    %2390 = vmatpush1.msra.mxu0 %v1985
    %2391 = vmatprep.subr.mxu0 %v2100
    %2392 = vmatpush1.msra.mxu0 %v2099
    %2393 = vmatprep.subr.mxu0 %v2106
    %2394 = vmatpush1.msra.mxu0 %v2105
    %2395 = vmatprep.subr.mxu0 %v2112
    %2396 = vmatpush1.msra.mxu0 %v2111
    %2397 = vmatprep.subr.mxu0 %v2118
    %2398 = vmatpush1.msra.mxu0 %v2117
    %2399 = vmatprep.subr.mxu0 %v2205
    %2400 = vmatpush1.msra.mxu0 %v2204
    %2401 = vmatprep.subr.mxu0 %v2211
    %2402 = vmatpush1.msra.mxu0 %v2210
    %2403 = vmatprep.subr.mxu0 %v2217
    %2404 = vmatpush1.msra.mxu0 %v2216
    %2405 = vmatprep.subr.mxu0 %v2223
    %2406 = vmatpush1.msra.mxu0 %v2222
    %2407 = vmatprep.subr.mxu0 %v2289
    %2408 = vmatpush1.msra.mxu0 %v2288
    %2409 = vmatprep.subr.mxu0 %v2349
    %2410 = vmatpush1.msra.mxu0 %v2347
    %2411 = vmatprep.subr.mxu0 0.0
    %2412 = vmatpush1.msra.mxu0 0.0
    %2413 = vmatprep.subr.mxu0 0.0
    %2414 = vmatpush1.msra.mxu0 0.0
    %2415 = vmatprep.subr.mxu0 0.0
    %2416 = vmatpush1.msra.mxu0 0.0
    %2417 = vmatprep.subr.mxu0 0.0
    %2418 = vmatpush1.msra.mxu0 0.0
    %2419 = vmatprep.subr.mxu0 0.0
    %2420 = vmatpush1.msra.mxu0 0.0
    %2421 = vmatprep.subr.mxu0 0.0
    %2422 = vmatpush1.msra.mxu0 0.0
    %2423 = vmatprep.mubr.f32.mxu0 %v2324
    %2424 = vmatmul.mubr.f32.gmra.mrb[0].mxu0 %v2306
    %v2425 = vpop.f32.mrb[0].mxu0
    %v2426 = vadd.f32 0.0, %v2425
    %v2427 = vpop.f32.mrb[0].mxu0
    %v2428 = vadd.f32 0.0, %v2427
    %2429 = vmatprep.mubr.f32.mxu0 %v2327
    %2430 = vmatmul.mubr.f32.gmra.mrb[0].mxu0 %v2308
    %v2431 = vpop.f32.mrb[0].mxu0
    %v2432 = vadd.f32 0.0, %v2431
    %v2433 = vpop.f32.mrb[0].mxu0
    %v2434 = vadd.f32 0.0, %v2433
    %2435 = vmatprep.mubr.f32.mxu0 %v2330
    %2436 = vmatmul.mubr.f32.gmra.mrb[0].mxu0 %v2310
    %v2437 = vpop.f32.mrb[0].mxu0
    %v2438 = vadd.f32 0.0, %v2437
    %v2439 = vpop.f32.mrb[0].mxu0
    %v2440 = vadd.f32 0.0, %v2439
    %2441 = vmatprep.mubr.f32.mxu0 %v2333
    %2442 = vmatmul.mubr.f32.gmra.mrb[0].mxu0 %v2312
    %v2443 = vpop.f32.mrb[0].mxu0
    %v2444 = vadd.f32 0.0, %v2443
    %v2445 = vpop.f32.mrb[0].mxu0
    %v2446 = vadd.f32 0.0, %v2445
    %2447 = vmatprep.mubr.f32.mxu0 %v2336
    %2448 = vmatmul.mubr.f32.gmra.mrb[0].mxu0 %v2314
    %v2449 = vpop.f32.mrb[0].mxu0
    %v2450 = vadd.f32 0.0, %v2449
    %v2451 = vpop.f32.mrb[0].mxu0
    %v2452 = vadd.f32 0.0, %v2451
    %2453 = vmatprep.mubr.f32.mxu0 %v2339
    %2454 = vmatmul.mubr.f32.gmra.mrb[0].mxu0 %v2316
    %v2455 = vpop.f32.mrb[0].mxu0
    %v2456 = vadd.f32 0.0, %v2455
    %v2457 = vpop.f32.mrb[0].mxu0
    %v2458 = vadd.f32 0.0, %v2457
    %2459 = vmatprep.mubr.f32.mxu0 %v2342
    %2460 = vmatmul.mubr.f32.gmra.mrb[0].mxu0 %v2318
    %v2461 = vpop.f32.mrb[0].mxu0
    %v2462 = vadd.f32 0.0, %v2461
    %v2463 = vpop.f32.mrb[0].mxu0
    %v2464 = vadd.f32 0.0, %v2463
    %2465 = vmatprep.mubr.f32.mxu0 %v2345
    %2466 = vmatmul.mubr.f32.gmra.mrb[0].mxu0 %v2320
    %v2467 = vpop.f32.mrb[0].mxu0
    %v2468 = vadd.f32 0.0, %v2467
    %v2469 = vpop.f32.mrb[0].mxu0
    %v2470 = vadd.f32 0.0, %v2469
    %2471 = vdwg.mxu0
    %2472 = vmatprep.subr.mxu0 %v573
    %2473 = vmatpush1.msra.mxu0 %v572
    %2474 = vmatprep.subr.mxu0 %v591
    %2475 = vmatpush1.msra.mxu0 %v590
    %2476 = vmatprep.subr.mxu0 %v609
    %2477 = vmatpush1.msra.mxu0 %v608
    %2478 = vmatprep.subr.mxu0 %v627
    %2479 = vmatpush1.msra.mxu0 %v626
    %2480 = vmatprep.subr.mxu0 %v1732
    %2481 = vmatpush1.msra.mxu0 %v1731
    %2482 = vmatprep.subr.mxu0 %v1738
    %2483 = vmatpush1.msra.mxu0 %v1737
    %2484 = vmatprep.subr.mxu0 %v1744
    %2485 = vmatpush1.msra.mxu0 %v1743
    %2486 = vmatprep.subr.mxu0 %v1750
    %2487 = vmatpush1.msra.mxu0 %v1749
    %2488 = vmatprep.subr.mxu0 %v1837
    %2489 = vmatpush1.msra.mxu0 %v1836
    %2490 = vmatprep.subr.mxu0 %v1843
    %2491 = vmatpush1.msra.mxu0 %v1842
    %2492 = vmatprep.subr.mxu0 %v1849
    %2493 = vmatpush1.msra.mxu0 %v1848
    %2494 = vmatprep.subr.mxu0 %v1855
    %2495 = vmatpush1.msra.mxu0 %v1854
    %2496 = vmatprep.subr.mxu0 %v1970
    %2497 = vmatpush1.msra.mxu0 %v1969
    %2498 = vmatprep.subr.mxu0 %v1976
    %2499 = vmatpush1.msra.mxu0 %v1975
    %2500 = vmatprep.subr.mxu0 %v1982
    %2501 = vmatpush1.msra.mxu0 %v1981
    %2502 = vmatprep.subr.mxu0 %v1988
    %2503 = vmatpush1.msra.mxu0 %v1987
    %2504 = vmatprep.subr.mxu0 %v2102
    %2505 = vmatpush1.msra.mxu0 %v2101
    %2506 = vmatprep.subr.mxu0 %v2108
    %2507 = vmatpush1.msra.mxu0 %v2107
    %2508 = vmatprep.subr.mxu0 %v2114
    %2509 = vmatpush1.msra.mxu0 %v2113
    %2510 = vmatprep.subr.mxu0 %v2120
    %2511 = vmatpush1.msra.mxu0 %v2119
    %2512 = vmatprep.subr.mxu0 %v2207
    %2513 = vmatpush1.msra.mxu0 %v2206
    %2514 = vmatprep.subr.mxu0 %v2213
    %2515 = vmatpush1.msra.mxu0 %v2212
    %2516 = vmatprep.subr.mxu0 %v2219
    %2517 = vmatpush1.msra.mxu0 %v2218
    %2518 = vmatprep.subr.mxu0 %v2225
    %2519 = vmatpush1.msra.mxu0 %v2224
    %2520 = vmatprep.subr.mxu0 %v2291
    %2521 = vmatpush1.msra.mxu0 %v2290
    %2522 = vmatprep.subr.mxu0 %v2353
    %2523 = vmatpush1.msra.mxu0 %v2351
    %2524 = vmatprep.subr.mxu0 0.0
    %2525 = vmatpush1.msra.mxu0 0.0
    %2526 = vmatprep.subr.mxu0 0.0
    %2527 = vmatpush1.msra.mxu0 0.0
    %2528 = vmatprep.subr.mxu0 0.0
    %2529 = vmatpush1.msra.mxu0 0.0
    %2530 = vmatprep.subr.mxu0 0.0
    %2531 = vmatpush1.msra.mxu0 0.0
    %2532 = vmatprep.subr.mxu0 0.0
    %2533 = vmatpush1.msra.mxu0 0.0
    %2534 = vmatprep.subr.mxu0 0.0
    %2535 = vmatpush1.msra.mxu0 0.0
    %2536 = vmatprep.mubr.f32.mxu0 %v2324
    %2537 = vmatmul.mubr.f32.gmra.mrb[0].mxu0 %v2306
    %v2538 = vpop.f32.mrb[0].mxu0
    %v2539 = vadd.f32 0.0, %v2538
    %v2540 = vpop.f32.mrb[0].mxu0
    %v2541 = vadd.f32 0.0, %v2540
    %2542 = vmatprep.mubr.f32.mxu0 %v2327
    %2543 = vmatmul.mubr.f32.gmra.mrb[0].mxu0 %v2308
    %v2544 = vpop.f32.mrb[0].mxu0
    %v2545 = vadd.f32 0.0, %v2544
    %v2546 = vpop.f32.mrb[0].mxu0
    %v2547 = vadd.f32 0.0, %v2546
    %2548 = vmatprep.mubr.f32.mxu0 %v2330
    %2549 = vmatmul.mubr.f32.gmra.mrb[0].mxu0 %v2310
    %v2550 = vpop.f32.mrb[0].mxu0
    %v2551 = vadd.f32 0.0, %v2550
    %v2552 = vpop.f32.mrb[0].mxu0
    %v2553 = vadd.f32 0.0, %v2552
    %2554 = vmatprep.mubr.f32.mxu0 %v2333
    %2555 = vmatmul.mubr.f32.gmra.mrb[0].mxu0 %v2312
    %v2556 = vpop.f32.mrb[0].mxu0
    %v2557 = vadd.f32 0.0, %v2556
    %v2558 = vpop.f32.mrb[0].mxu0
    %v2559 = vadd.f32 0.0, %v2558
    %2560 = vmatprep.mubr.f32.mxu0 %v2336
    %2561 = vmatmul.mubr.f32.gmra.mrb[0].mxu0 %v2314
    %v2562 = vpop.f32.mrb[0].mxu0
    %v2563 = vadd.f32 0.0, %v2562
    %v2564 = vpop.f32.mrb[0].mxu0
    %v2565 = vadd.f32 0.0, %v2564
    %2566 = vmatprep.mubr.f32.mxu0 %v2339
    %2567 = vmatmul.mubr.f32.gmra.mrb[0].mxu0 %v2316
    %v2568 = vpop.f32.mrb[0].mxu0
    %v2569 = vadd.f32 0.0, %v2568
    %v2570 = vpop.f32.mrb[0].mxu0
    %v2571 = vadd.f32 0.0, %v2570
    %2572 = vmatprep.mubr.f32.mxu0 %v2342
    %2573 = vmatmul.mubr.f32.gmra.mrb[0].mxu0 %v2318
    %v2574 = vpop.f32.mrb[0].mxu0
    %v2575 = vadd.f32 0.0, %v2574
    %v2576 = vpop.f32.mrb[0].mxu0
    %v2577 = vadd.f32 0.0, %v2576
    %2578 = vmatprep.mubr.f32.mxu0 %v2345
    %2579 = vmatmul.mubr.f32.gmra.mrb[0].mxu0 %v2320
    %v2580 = vpop.f32.mrb[0].mxu0
    %v2581 = vadd.f32 0.0, %v2580
    %v2582 = vpop.f32.mrb[0].mxu0
    %v2583 = vadd.f32 0.0, %v2582
    %2584 = vdwg.mxu0
    %2585 = vmatprep.subr.mxu0 %v575
    %2586 = vmatpush1.msra.mxu0 %v574
    %2587 = vmatprep.subr.mxu0 %v593
    %2588 = vmatpush1.msra.mxu0 %v592
    %2589 = vmatprep.subr.mxu0 %v611
    %2590 = vmatpush1.msra.mxu0 %v610
    %2591 = vmatprep.subr.mxu0 %v629
    %2592 = vmatpush1.msra.mxu0 %v628
    %2593 = vmatprep.subr.mxu0 %v1734
    %2594 = vmatpush1.msra.mxu0 %v1733
    %2595 = vmatprep.subr.mxu0 %v1740
    %2596 = vmatpush1.msra.mxu0 %v1739
    %2597 = vmatprep.subr.mxu0 %v1746
    %2598 = vmatpush1.msra.mxu0 %v1745
    %2599 = vmatprep.subr.mxu0 %v1752
    %2600 = vmatpush1.msra.mxu0 %v1751
    %2601 = vmatprep.subr.mxu0 %v1839
    %2602 = vmatpush1.msra.mxu0 %v1838
    %2603 = vmatprep.subr.mxu0 %v1845
    %2604 = vmatpush1.msra.mxu0 %v1844
    %2605 = vmatprep.subr.mxu0 %v1851
    %2606 = vmatpush1.msra.mxu0 %v1850
    %2607 = vmatprep.subr.mxu0 %v1857
    %2608 = vmatpush1.msra.mxu0 %v1856
    %2609 = vmatprep.subr.mxu0 %v1972
    %2610 = vmatpush1.msra.mxu0 %v1971
    %2611 = vmatprep.subr.mxu0 %v1978
    %2612 = vmatpush1.msra.mxu0 %v1977
    %2613 = vmatprep.subr.mxu0 %v1984
    %2614 = vmatpush1.msra.mxu0 %v1983
    %2615 = vmatprep.subr.mxu0 %v1990
    %2616 = vmatpush1.msra.mxu0 %v1989
    %2617 = vmatprep.subr.mxu0 %v2104
    %2618 = vmatpush1.msra.mxu0 %v2103
    %2619 = vmatprep.subr.mxu0 %v2110
    %2620 = vmatpush1.msra.mxu0 %v2109
    %2621 = vmatprep.subr.mxu0 %v2116
    %2622 = vmatpush1.msra.mxu0 %v2115
    %2623 = vmatprep.subr.mxu0 %v2122
    %2624 = vmatpush1.msra.mxu0 %v2121
    %2625 = vmatprep.subr.mxu0 %v2209
    %2626 = vmatpush1.msra.mxu0 %v2208
    %2627 = vmatprep.subr.mxu0 %v2215
    %2628 = vmatpush1.msra.mxu0 %v2214
    %2629 = vmatprep.subr.mxu0 %v2221
    %2630 = vmatpush1.msra.mxu0 %v2220
    %2631 = vmatprep.subr.mxu0 %v2227
    %2632 = vmatpush1.msra.mxu0 %v2226
    %2633 = vmatprep.subr.mxu0 %v2293
    %2634 = vmatpush1.msra.mxu0 %v2292
    %2635 = vmatprep.subr.mxu0 %v2357
    %2636 = vmatpush1.msra.mxu0 %v2355
    %2637 = vmatprep.subr.mxu0 0.0
    %2638 = vmatpush1.msra.mxu0 0.0
    %2639 = vmatprep.subr.mxu0 0.0
    %2640 = vmatpush1.msra.mxu0 0.0
    %2641 = vmatprep.subr.mxu0 0.0
    %2642 = vmatpush1.msra.mxu0 0.0
    %2643 = vmatprep.subr.mxu0 0.0
    %2644 = vmatpush1.msra.mxu0 0.0
    %2645 = vmatprep.subr.mxu0 0.0
    %2646 = vmatpush1.msra.mxu0 0.0
    %2647 = vmatprep.subr.mxu0 0.0
    %2648 = vmatpush1.msra.mxu0 0.0
    %2649 = vmatprep.mubr.f32.mxu0 %v2324
    %2650 = vmatmul.mubr.f32.gmra.mrb[0].mxu0 %v2306
    %v2651 = vpop.f32.mrb[0].mxu0
    %v2652 = vadd.f32 0.0, %v2651
    %v2653 = vpop.f32.mrb[0].mxu0
    %v2654 = vadd.f32 0.0, %v2653
    %2655 = vmatprep.mubr.f32.mxu0 %v2327
    %2656 = vmatmul.mubr.f32.gmra.mrb[0].mxu0 %v2308
    %v2657 = vpop.f32.mrb[0].mxu0
    %v2658 = vadd.f32 0.0, %v2657
    %v2659 = vpop.f32.mrb[0].mxu0
    %v2660 = vadd.f32 0.0, %v2659
    %2661 = vmatprep.mubr.f32.mxu0 %v2330
    %2662 = vmatmul.mubr.f32.gmra.mrb[0].mxu0 %v2310
    %v2663 = vpop.f32.mrb[0].mxu0
    %v2664 = vadd.f32 0.0, %v2663
    %v2665 = vpop.f32.mrb[0].mxu0
    %v2666 = vadd.f32 0.0, %v2665
    %2667 = vmatprep.mubr.f32.mxu0 %v2333
    %2668 = vmatmul.mubr.f32.gmra.mrb[0].mxu0 %v2312
    %v2669 = vpop.f32.mrb[0].mxu0
    %v2670 = vadd.f32 0.0, %v2669
    %v2671 = vpop.f32.mrb[0].mxu0
    %v2672 = vadd.f32 0.0, %v2671
    %2673 = vmatprep.mubr.f32.mxu0 %v2336
    %2674 = vmatmul.mubr.f32.gmra.mrb[0].mxu0 %v2314
    %v2675 = vpop.f32.mrb[0].mxu0
    %v2676 = vadd.f32 0.0, %v2675
    %v2677 = vpop.f32.mrb[0].mxu0
    %v2678 = vadd.f32 0.0, %v2677
    %2679 = vmatprep.mubr.f32.mxu0 %v2339
    %2680 = vmatmul.mubr.f32.gmra.mrb[0].mxu0 %v2316
    %v2681 = vpop.f32.mrb[0].mxu0
    %v2682 = vadd.f32 0.0, %v2681
    %v2683 = vpop.f32.mrb[0].mxu0
    %v2684 = vadd.f32 0.0, %v2683
    %2685 = vmatprep.mubr.f32.mxu0 %v2342
    %2686 = vmatmul.mubr.f32.gmra.mrb[0].mxu0 %v2318
    %v2687 = vpop.f32.mrb[0].mxu0
    %v2688 = vadd.f32 0.0, %v2687
    %v2689 = vpop.f32.mrb[0].mxu0
    %v2690 = vadd.f32 0.0, %v2689
    %2691 = vmatprep.mubr.f32.mxu0 %v2345
    %2692 = vmatmul.mubr.f32.gmra.mrb[0].mxu0 %v2320
    %v2693 = vpop.f32.mrb[0].mxu0
    %v2694 = vadd.f32 0.0, %v2693
    %v2695 = vpop.f32.mrb[0].mxu0
    %v2696 = vadd.f32 0.0, %v2695
    %2697 = vdwg.mxu0
    %v2698 = vld [vmem:[%s5] sm:$0xff]
    %v2699 = vld [vmem:[%s5 + $0x8] sm:$0xff]
    %v2700 = vld [vmem:[%s5 + $0x10] sm:$0xff]
    %v2701 = vld [vmem:[%s5 + $0x18] sm:$0xff]
    %2703 = vset.pattern.permute.xlu0 0
    %2704 = vperm.xlu0 %2703, %v2698
    %v2705 = vpop.permute.xlu0 %2704
    %2708 = vset.pattern.permute.xlu0 0
    %2709 = vperm.xlu0 %2708, %v2699
    %v2710 = vpop.permute.xlu0 %2709
    %2713 = vset.pattern.permute.xlu0 0
    %2714 = vperm.xlu0 %2713, %v2700
    %v2715 = vpop.permute.xlu0 %2714
    %2718 = vset.pattern.permute.xlu0 0
    %2719 = vperm.xlu0 %2718, %v2701
    %v2720 = vpop.permute.xlu0 %2719
    %v2722 = vadd.f32 %v2426, %v2705
    %v2723 = vadd.f32 %v2428, %v2705
    %v2724 = vadd.f32 %v2539, %v2705
    %v2725 = vadd.f32 %v2541, %v2705
    %v2726 = vadd.f32 %v2652, %v2705
    %v2727 = vadd.f32 %v2654, %v2705
    %v2728 = vadd.f32 %v2432, %v2710
    %v2729 = vadd.f32 %v2434, %v2710
    %v2730 = vadd.f32 %v2545, %v2710
    %v2731 = vadd.f32 %v2547, %v2710
    %v2732 = vadd.f32 %v2658, %v2710
    %v2733 = vadd.f32 %v2660, %v2710
    %v2734 = vadd.f32 %v2438, %v2715
    %v2735 = vadd.f32 %v2440, %v2715
    %v2736 = vadd.f32 %v2551, %v2715
    %v2737 = vadd.f32 %v2553, %v2715
    %v2738 = vadd.f32 %v2664, %v2715
    %v2739 = vadd.f32 %v2666, %v2715
    %v2740 = vadd.f32 %v2444, %v2720
    %v2741 = vadd.f32 %v2446, %v2720
    %v2742 = vadd.f32 %v2557, %v2720
    %v2743 = vadd.f32 %v2559, %v2720
    %v2744 = vadd.f32 %v2670, %v2720
    %v2745 = vadd.f32 %v2672, %v2720
    %v2746 = vadd.f32 %v2450, %v2705
    %v2747 = vadd.f32 %v2452, %v2705
    %v2748 = vadd.f32 %v2563, %v2705
    %v2749 = vadd.f32 %v2565, %v2705
    %v2750 = vadd.f32 %v2676, %v2705
    %v2751 = vadd.f32 %v2678, %v2705
    %v2752 = vadd.f32 %v2456, %v2710
    %v2753 = vadd.f32 %v2458, %v2710
    %v2754 = vadd.f32 %v2569, %v2710
    %v2755 = vadd.f32 %v2571, %v2710
    %v2756 = vadd.f32 %v2682, %v2710
    %v2757 = vadd.f32 %v2684, %v2710
    %v2758 = vadd.f32 %v2462, %v2715
    %v2759 = vadd.f32 %v2464, %v2715
    %v2760 = vadd.f32 %v2575, %v2715
    %v2761 = vadd.f32 %v2577, %v2715
    %v2762 = vadd.f32 %v2688, %v2715
    %v2763 = vadd.f32 %v2690, %v2715
    %v2764 = vadd.f32 %v2468, %v2720
    %v2765 = vadd.f32 %v2470, %v2720
    %v2766 = vadd.f32 %v2581, %v2720
    %v2767 = vadd.f32 %v2583, %v2720
    %v2768 = vadd.f32 %v2694, %v2720
    %v2769 = vadd.f32 %v2696, %v2720
    %v2770 = vmax.f32 %v2722, 0.0
    %v2771 = vmax.f32 %v2723, 0.0
    %v2772 = vmax.f32 %v2724, 0.0
    %v2773 = vmax.f32 %v2725, 0.0
    %v2774 = vmax.f32 %v2726, 0.0
    %v2775 = vmax.f32 %v2727, 0.0
    %v2776 = vmax.f32 %v2728, 0.0
    %v2777 = vmax.f32 %v2729, 0.0
    %v2778 = vmax.f32 %v2730, 0.0
    %v2779 = vmax.f32 %v2731, 0.0
    %v2780 = vmax.f32 %v2732, 0.0
    %v2781 = vmax.f32 %v2733, 0.0
    %v2782 = vmax.f32 %v2734, 0.0
    %v2783 = vmax.f32 %v2735, 0.0
    %v2784 = vmax.f32 %v2736, 0.0
    %v2785 = vmax.f32 %v2737, 0.0
    %v2786 = vmax.f32 %v2738, 0.0
    %v2787 = vmax.f32 %v2739, 0.0
    %v2788 = vmax.f32 %v2740, 0.0
    %v2789 = vmax.f32 %v2741, 0.0
    %v2790 = vmax.f32 %v2742, 0.0
    %v2791 = vmax.f32 %v2743, 0.0
    %v2792 = vmax.f32 %v2744, 0.0
    %v2793 = vmax.f32 %v2745, 0.0
    %v2794 = vmax.f32 %v2746, 0.0
    %v2795 = vmax.f32 %v2747, 0.0
    %v2796 = vmax.f32 %v2748, 0.0
    %v2797 = vmax.f32 %v2749, 0.0
    %v2798 = vmax.f32 %v2750, 0.0
    %v2799 = vmax.f32 %v2751, 0.0
    %v2800 = vmax.f32 %v2752, 0.0
    %v2801 = vmax.f32 %v2753, 0.0
    %v2802 = vmax.f32 %v2754, 0.0
    %v2803 = vmax.f32 %v2755, 0.0
    %v2804 = vmax.f32 %v2756, 0.0
    %v2805 = vmax.f32 %v2757, 0.0
    %v2806 = vmax.f32 %v2758, 0.0
    %v2807 = vmax.f32 %v2759, 0.0
    %v2808 = vmax.f32 %v2760, 0.0
    %v2809 = vmax.f32 %v2761, 0.0
    %v2810 = vmax.f32 %v2762, 0.0
    %v2811 = vmax.f32 %v2763, 0.0
    %v2812 = vmax.f32 %v2764, 0.0
    %v2813 = vmax.f32 %v2765, 0.0
    %v2814 = vmax.f32 %v2766, 0.0
    %v2815 = vmax.f32 %v2767, 0.0
    %v2816 = vmax.f32 %v2768, 0.0
    %v2817 = vmax.f32 %v2769, 0.0
    %v2818 = vpack.c.bf16 %v2776, %v2770
    %v2819 = vpack.c.bf16 %v2777, %v2771
    %v2820 = vpack.c.bf16 %v2778, %v2772
    %v2821 = vpack.c.bf16 %v2779, %v2773
    %v2822 = vpack.c.bf16 %v2780, %v2774
    %v2823 = vpack.c.bf16 %v2781, %v2775
    %v2824 = vpack.c.bf16 %v2788, %v2782
    %v2825 = vpack.c.bf16 %v2789, %v2783
    %v2826 = vpack.c.bf16 %v2790, %v2784
    %v2827 = vpack.c.bf16 %v2791, %v2785
    %v2828 = vpack.c.bf16 %v2792, %v2786
    %v2829 = vpack.c.bf16 %v2793, %v2787
    %v2830 = vpack.c.bf16 %v2800, %v2794
    %v2831 = vpack.c.bf16 %v2801, %v2795
    %v2832 = vpack.c.bf16 %v2802, %v2796
    %v2833 = vpack.c.bf16 %v2803, %v2797
    %v2834 = vpack.c.bf16 %v2804, %v2798
    %v2835 = vpack.c.bf16 %v2805, %v2799
    %v2836 = vpack.c.bf16 %v2812, %v2806
    %v2837 = vpack.c.bf16 %v2813, %v2807
    %v2838 = vpack.c.bf16 %v2814, %v2808
    %v2839 = vpack.c.bf16 %v2815, %v2809
    %v2840 = vpack.c.bf16 %v2816, %v2810
    %v2841 = vpack.c.bf16 %v2817, %v2811
    %v2842 = vld [vmem:[#allocation5] sm:$0xff]
    %v2843 = vld [vmem:[#allocation5 + $0x8] sm:$0xff]
    %v2844 = vld [vmem:[#allocation5 + $0x10] sm:$0xff]
    %v2845 = vld [vmem:[#allocation5 + $0x18] sm:$0xff]
    %v2846 = vld [vmem:[#allocation5 + $0x20] sm:$0xff]
    %v2847 = vld [vmem:[#allocation5 + $0x28] sm:$0xff]
    %v2848 = vld [vmem:[#allocation5 + $0x30] sm:$0xff]
    %v2849 = vld [vmem:[#allocation5 + $0x38] sm:$0xff]
    %v2850 = vld [vmem:[#allocation5 + $0x40] sm:$0xff]
    %v2851 = vld [vmem:[#allocation5 + $0x48] sm:$0xff]
    %v2852 = vld [vmem:[#allocation5 + $0x50] sm:$0xff]
    %v2853 = vld [vmem:[#allocation5 + $0x58] sm:$0xff]
    %v2854 = vld [vmem:[#allocation5 + $0x60] sm:$0xff]
    %v2855 = vld [vmem:[#allocation5 + $0x68] sm:$0xff]
    %v2856 = vld [vmem:[#allocation5 + $0x70] sm:$0xff]
    %v2857 = vld [vmem:[#allocation5 + $0x78] sm:$0xff]
    %v2858 = vld [vmem:[#allocation5 + $0x80] sm:$0xff]
    %v2859 = vld [vmem:[#allocation5 + $0x88] sm:$0xff]
    %v2860 = vld [vmem:[#allocation5 + $0x90] sm:$0xff]
    %v2861 = vld [vmem:[#allocation5 + $0x98] sm:$0xff]
    %v2862 = vld [vmem:[#allocation5 + $0xa0] sm:$0xff]
    %v2863 = vld [vmem:[#allocation5 + $0xa8] sm:$0xff]
    %v2864 = vld [vmem:[#allocation5 + $0xb0] sm:$0xff]
    %v2865 = vld [vmem:[#allocation5 + $0xb8] sm:$0xff]
    %v2866 = vld [vmem:[#allocation5 + $0xc0] sm:$0xff]
    %v2867 = vld [vmem:[#allocation5 + $0xc8] sm:$0xff]
    %v2868 = vld [vmem:[#allocation5 + $0xd0] sm:$0xff]
    %v2869 = vld [vmem:[#allocation5 + $0xd8] sm:$0xff]
    %v2870 = vld [vmem:[#allocation5 + $0xe0] sm:$0xff]
    %v2871 = vld [vmem:[#allocation5 + $0xe8] sm:$0xff]
    %v2872 = vld [vmem:[#allocation5 + $0xf0] sm:$0xff]
    %v2873 = vld [vmem:[#allocation5 + $0xf8] sm:$0xff]
    %v2874 = vld [vmem:[#allocation5 + $0x100] sm:$0xff]
    %v2875 = vld [vmem:[#allocation5 + $0x108] sm:$0xff]
    %v2876 = vld [vmem:[#allocation5 + $0x110] sm:$0xff]
    %v2877 = vld [vmem:[#allocation5 + $0x118] sm:$0xff]
    %v2878 = vld [vmem:[#allocation5 + $0x120] sm:$0xff]
    %v2879 = vld [vmem:[#allocation5 + $0x128] sm:$0xff]
    %v2880 = vld [vmem:[#allocation5 + $0x130] sm:$0xff]
    %v2881 = vld [vmem:[#allocation5 + $0x138] sm:$0xff]
    %v2882 = vld [vmem:[#allocation5 + $0x140] sm:$0xff]
    %v2883 = vld [vmem:[#allocation5 + $0x148] sm:$0xff]
    %v2884 = vld [vmem:[#allocation5 + $0x150] sm:$0xff]
    %v2885 = vld [vmem:[#allocation5 + $0x158] sm:$0xff]
    %v2886 = vld [vmem:[#allocation5 + $0x160] sm:$0xff]
    %v2887 = vld [vmem:[#allocation5 + $0x168] sm:$0xff]
    %v2888 = vld [vmem:[#allocation5 + $0x170] sm:$0xff]
    %v2889 = vld [vmem:[#allocation5 + $0x178] sm:$0xff]
    %v2890 = vld [vmem:[#allocation5 + $0x180] sm:$0xff]
    %v2891 = vld [vmem:[#allocation5 + $0x188] sm:$0xff]
    %v2892 = vld [vmem:[#allocation5 + $0x190] sm:$0xff]
    %v2893 = vld [vmem:[#allocation5 + $0x198] sm:$0xff]
    %v2894 = vld [vmem:[#allocation5 + $0x1a0] sm:$0xff]
    %v2895 = vld [vmem:[#allocation5 + $0x1a8] sm:$0xff]
    %v2896 = vld [vmem:[#allocation5 + $0x1b0] sm:$0xff]
    %v2897 = vld [vmem:[#allocation5 + $0x1b8] sm:$0xff]
    %v2898 = vld [vmem:[#allocation5 + $0x1c0] sm:$0xff]
    %v2899 = vld [vmem:[#allocation5 + $0x1c8] sm:$0xff]
    %v2900 = vld [vmem:[#allocation5 + $0x1d0] sm:$0xff]
    %v2901 = vld [vmem:[#allocation5 + $0x1d8] sm:$0xff]
    %v2902 = vld [vmem:[#allocation5 + $0x1e0] sm:$0xff]
    %v2903 = vld [vmem:[#allocation5 + $0x1e8] sm:$0xff]
    %v2904 = vld [vmem:[#allocation5 + $0x1f0] sm:$0xff]
    %v2905 = vld [vmem:[#allocation5 + $0x1f8] sm:$0xff]
    %v2906 = vld [vmem:[#allocation5 + $0x200] sm:$0xff]
    %v2907 = vld [vmem:[#allocation5 + $0x208] sm:$0xff]
    %v2908 = vld [vmem:[#allocation5 + $0x210] sm:$0xff]
    %v2909 = vld [vmem:[#allocation5 + $0x218] sm:$0xff]
    %v2910 = vld [vmem:[#allocation5 + $0x220] sm:$0xff]
    %v2911 = vld [vmem:[#allocation5 + $0x228] sm:$0xff]
    %v2912 = vld [vmem:[#allocation5 + $0x230] sm:$0xff]
    %v2913 = vld [vmem:[#allocation5 + $0x238] sm:$0xff]
    %v2914 = vld [vmem:[#allocation5 + $0x240] sm:$0xff]
    %v2915 = vld [vmem:[#allocation5 + $0x248] sm:$0xff]
    %v2916 = vld [vmem:[#allocation5 + $0x250] sm:$0xff]
    %v2917 = vld [vmem:[#allocation5 + $0x258] sm:$0xff]
    %v2918 = vld [vmem:[#allocation5 + $0x260] sm:$0xff]
    %v2919 = vld [vmem:[#allocation5 + $0x268] sm:$0xff]
    %v2920 = vld [vmem:[#allocation5 + $0x270] sm:$0xff]
    %v2921 = vld [vmem:[#allocation5 + $0x278] sm:$0xff]
    %v2922 = vld [vmem:[#allocation5 + $0x280] sm:$0xff]
    %v2923 = vld [vmem:[#allocation5 + $0x288] sm:$0xff]
    %v2924 = vld [vmem:[#allocation5 + $0x290] sm:$0xff]
    %v2925 = vld [vmem:[#allocation5 + $0x298] sm:$0xff]
    %v2926 = vld [vmem:[#allocation5 + $0x2a0] sm:$0xff]
    %v2927 = vld [vmem:[#allocation5 + $0x2a8] sm:$0xff]
    %v2928 = vld [vmem:[#allocation5 + $0x2b0] sm:$0xff]
    %v2929 = vld [vmem:[#allocation5 + $0x2b8] sm:$0xff]
    %v2930 = vld [vmem:[#allocation5 + $0x2c0] sm:$0xff]
    %v2931 = vld [vmem:[#allocation5 + $0x2c8] sm:$0xff]
    %v2932 = vld [vmem:[#allocation5 + $0x2d0] sm:$0xff]
    %v2933 = vld [vmem:[#allocation5 + $0x2d8] sm:$0xff]
    %v2934 = vld [vmem:[#allocation5 + $0x2e0] sm:$0xff]
    %v2935 = vld [vmem:[#allocation5 + $0x2e8] sm:$0xff]
    %v2936 = vld [vmem:[#allocation5 + $0x2f0] sm:$0xff]
    %v2937 = vld [vmem:[#allocation5 + $0x2f8] sm:$0xff]
    %v3034 = vunpack.c.l.b16 %v2842
    %v3035 = vunpack.c.h.b16 %v2842
    %v3036 = vunpack.c.l.b16 %v2843
    %v3037 = vunpack.c.h.b16 %v2843
    %v3038 = vunpack.c.l.b16 %v2844
    %v3039 = vunpack.c.h.b16 %v2844
    %v3040 = vunpack.c.l.b16 %v2845
    %v3041 = vunpack.c.h.b16 %v2845
    %v3042 = vunpack.c.l.b16 %v2846
    %v3043 = vunpack.c.h.b16 %v2846
    %v3044 = vunpack.c.l.b16 %v2847
    %v3045 = vunpack.c.h.b16 %v2847
    %v3046 = vunpack.c.l.b16 %v2848
    %v3047 = vunpack.c.h.b16 %v2848
    %v3048 = vunpack.c.l.b16 %v2849
    %v3049 = vunpack.c.h.b16 %v2849
    %v3050 = vunpack.c.l.b16 %v2850
    %v3051 = vunpack.c.h.b16 %v2850
    %v3052 = vunpack.c.l.b16 %v2851
    %v3053 = vunpack.c.h.b16 %v2851
    %v3054 = vunpack.c.l.b16 %v2852
    %v3055 = vunpack.c.h.b16 %v2852
    %v3056 = vunpack.c.l.b16 %v2853
    %v3057 = vunpack.c.h.b16 %v2853
    %v3058 = vunpack.c.l.b16 %v2854
    %v3059 = vunpack.c.h.b16 %v2854
    %v3060 = vunpack.c.l.b16 %v2855
    %v3061 = vunpack.c.h.b16 %v2855
    %v3062 = vunpack.c.l.b16 %v2856
    %v3063 = vunpack.c.h.b16 %v2856
    %v3064 = vunpack.c.l.b16 %v2857
    %v3065 = vunpack.c.h.b16 %v2857
    %v3066 = vunpack.c.l.b16 %v2858
    %v3067 = vunpack.c.h.b16 %v2858
    %v3068 = vunpack.c.l.b16 %v2859
    %v3069 = vunpack.c.h.b16 %v2859
    %v3070 = vunpack.c.l.b16 %v2860
    %v3071 = vunpack.c.h.b16 %v2860
    %v3072 = vunpack.c.l.b16 %v2861
    %v3073 = vunpack.c.h.b16 %v2861
    %v3074 = vunpack.c.l.b16 %v2862
    %v3075 = vunpack.c.h.b16 %v2862
    %v3076 = vunpack.c.l.b16 %v2863
    %v3077 = vunpack.c.h.b16 %v2863
    %v3078 = vunpack.c.l.b16 %v2864
    %v3079 = vunpack.c.h.b16 %v2864
    %v3080 = vunpack.c.l.b16 %v2865
    %v3081 = vunpack.c.h.b16 %v2865
    %v3082 = vunpack.c.l.b16 %v2866
    %v3083 = vunpack.c.h.b16 %v2866
    %v3084 = vunpack.c.l.b16 %v2867
    %v3085 = vunpack.c.h.b16 %v2867
    %v3086 = vunpack.c.l.b16 %v2868
    %v3087 = vunpack.c.h.b16 %v2868
    %v3088 = vunpack.c.l.b16 %v2869
    %v3089 = vunpack.c.h.b16 %v2869
    %v3090 = vunpack.c.l.b16 %v2870
    %v3091 = vunpack.c.h.b16 %v2870
    %v3092 = vunpack.c.l.b16 %v2871
    %v3093 = vunpack.c.h.b16 %v2871
    %v3094 = vunpack.c.l.b16 %v2872
    %v3095 = vunpack.c.h.b16 %v2872
    %v3096 = vunpack.c.l.b16 %v2873
    %v3097 = vunpack.c.h.b16 %v2873
    %v3098 = vunpack.c.l.b16 %v2874
    %v3099 = vunpack.c.h.b16 %v2874
    %v3100 = vunpack.c.l.b16 %v2875
    %v3101 = vunpack.c.h.b16 %v2875
    %v3102 = vunpack.c.l.b16 %v2876
    %v3103 = vunpack.c.h.b16 %v2876
    %v3104 = vunpack.c.l.b16 %v2877
    %v3105 = vunpack.c.h.b16 %v2877
    %v3106 = vunpack.c.l.b16 %v2878
    %v3107 = vunpack.c.h.b16 %v2878
    %v3108 = vunpack.c.l.b16 %v2879
    %v3109 = vunpack.c.h.b16 %v2879
    %v3110 = vunpack.c.l.b16 %v2880
    %v3111 = vunpack.c.h.b16 %v2880
    %v3112 = vunpack.c.l.b16 %v2881
    %v3113 = vunpack.c.h.b16 %v2881
    %v3114 = vunpack.c.l.b16 %v2882
    %v3115 = vunpack.c.h.b16 %v2882
    %v3116 = vunpack.c.l.b16 %v2883
    %v3117 = vunpack.c.h.b16 %v2883
    %v3118 = vunpack.c.l.b16 %v2884
    %v3119 = vunpack.c.h.b16 %v2884
    %v3120 = vunpack.c.l.b16 %v2885
    %v3121 = vunpack.c.h.b16 %v2885
    %v3122 = vunpack.c.l.b16 %v2886
    %v3123 = vunpack.c.h.b16 %v2886
    %v3124 = vunpack.c.l.b16 %v2887
    %v3125 = vunpack.c.h.b16 %v2887
    %v3126 = vunpack.c.l.b16 %v2888
    %v3127 = vunpack.c.h.b16 %v2888
    %v3128 = vunpack.c.l.b16 %v2889
    %v3129 = vunpack.c.h.b16 %v2889
    %v3130 = vunpack.c.l.b16 %v2890
    %v3131 = vunpack.c.h.b16 %v2890
    %v3132 = vunpack.c.l.b16 %v2891
    %v3133 = vunpack.c.h.b16 %v2891
    %v3134 = vunpack.c.l.b16 %v2892
    %v3135 = vunpack.c.h.b16 %v2892
    %v3136 = vunpack.c.l.b16 %v2893
    %v3137 = vunpack.c.h.b16 %v2893
    %v3138 = vunpack.c.l.b16 %v2894
    %v3139 = vunpack.c.h.b16 %v2894
    %v3140 = vunpack.c.l.b16 %v2895
    %v3141 = vunpack.c.h.b16 %v2895
    %v3142 = vunpack.c.l.b16 %v2896
    %v3143 = vunpack.c.h.b16 %v2896
    %v3144 = vunpack.c.l.b16 %v2897
    %v3145 = vunpack.c.h.b16 %v2897
    %v3146 = vunpack.c.l.b16 %v2898
    %v3147 = vunpack.c.h.b16 %v2898
    %v3148 = vunpack.c.l.b16 %v2899
    %v3149 = vunpack.c.h.b16 %v2899
    %v3150 = vunpack.c.l.b16 %v2900
    %v3151 = vunpack.c.h.b16 %v2900
    %v3152 = vunpack.c.l.b16 %v2901
    %v3153 = vunpack.c.h.b16 %v2901
    %v3154 = vunpack.c.l.b16 %v2902
    %v3155 = vunpack.c.h.b16 %v2902
    %v3156 = vunpack.c.l.b16 %v2903
    %v3157 = vunpack.c.h.b16 %v2903
    %v3158 = vunpack.c.l.b16 %v2904
    %v3159 = vunpack.c.h.b16 %v2904
    %v3160 = vunpack.c.l.b16 %v2905
    %v3161 = vunpack.c.h.b16 %v2905
    %v3162 = vunpack.c.l.b16 %v2906
    %v3163 = vunpack.c.h.b16 %v2906
    %v3164 = vunpack.c.l.b16 %v2907
    %v3165 = vunpack.c.h.b16 %v2907
    %v3166 = vunpack.c.l.b16 %v2908
    %v3167 = vunpack.c.h.b16 %v2908
    %v3168 = vunpack.c.l.b16 %v2909
    %v3169 = vunpack.c.h.b16 %v2909
    %v3170 = vunpack.c.l.b16 %v2910
    %v3171 = vunpack.c.h.b16 %v2910
    %v3172 = vunpack.c.l.b16 %v2911
    %v3173 = vunpack.c.h.b16 %v2911
    %v3174 = vunpack.c.l.b16 %v2912
    %v3175 = vunpack.c.h.b16 %v2912
    %v3176 = vunpack.c.l.b16 %v2913
    %v3177 = vunpack.c.h.b16 %v2913
    %v3178 = vunpack.c.l.b16 %v2914
    %v3179 = vunpack.c.h.b16 %v2914
    %v3180 = vunpack.c.l.b16 %v2915
    %v3181 = vunpack.c.h.b16 %v2915
    %v3182 = vunpack.c.l.b16 %v2916
    %v3183 = vunpack.c.h.b16 %v2916
    %v3184 = vunpack.c.l.b16 %v2917
    %v3185 = vunpack.c.h.b16 %v2917
    %v3186 = vunpack.c.l.b16 %v2918
    %v3187 = vunpack.c.h.b16 %v2918
    %v3188 = vunpack.c.l.b16 %v2919
    %v3189 = vunpack.c.h.b16 %v2919
    %v3190 = vunpack.c.l.b16 %v2920
    %v3191 = vunpack.c.h.b16 %v2920
    %v3192 = vunpack.c.l.b16 %v2921
    %v3193 = vunpack.c.h.b16 %v2921
    %v3194 = vunpack.c.l.b16 %v2922
    %v3195 = vunpack.c.h.b16 %v2922
    %v3196 = vunpack.c.l.b16 %v2923
    %v3197 = vunpack.c.h.b16 %v2923
    %v3198 = vunpack.c.l.b16 %v2924
    %v3199 = vunpack.c.h.b16 %v2924
    %v3200 = vunpack.c.l.b16 %v2925
    %v3201 = vunpack.c.h.b16 %v2925
    %v3202 = vunpack.c.l.b16 %v2926
    %v3203 = vunpack.c.h.b16 %v2926
    %v3204 = vunpack.c.l.b16 %v2927
    %v3205 = vunpack.c.h.b16 %v2927
    %v3206 = vunpack.c.l.b16 %v2928
    %v3207 = vunpack.c.h.b16 %v2928
    %v3208 = vunpack.c.l.b16 %v2929
    %v3209 = vunpack.c.h.b16 %v2929
    %v3210 = vunpack.c.l.b16 %v2930
    %v3211 = vunpack.c.h.b16 %v2930
    %v3212 = vunpack.c.l.b16 %v2931
    %v3213 = vunpack.c.h.b16 %v2931
    %v3214 = vunpack.c.l.b16 %v2932
    %v3215 = vunpack.c.h.b16 %v2932
    %v3216 = vunpack.c.l.b16 %v2933
    %v3217 = vunpack.c.h.b16 %v2933
    %v3218 = vunpack.c.l.b16 %v2934
    %v3219 = vunpack.c.h.b16 %v2934
    %v3220 = vunpack.c.l.b16 %v2935
    %v3221 = vunpack.c.h.b16 %v2935
    %v3222 = vunpack.c.l.b16 %v2936
    %v3223 = vunpack.c.h.b16 %v2936
    %v3224 = vunpack.c.l.b16 %v2937
    %v3225 = vunpack.c.h.b16 %v2937
    %v3226 = vpack.c.b16 %v3036, %v3034
    %v3227 = vpack.c.b16 %v3037, %v3035
    %v3228 = vpack.c.b16 %v3040, %v3038
    %v3229 = vpack.c.b16 %v3041, %v3039
    %v3230 = vpack.c.b16 %v3044, %v3042
    %v3231 = vpack.c.b16 %v3045, %v3043
    %v3232 = vpack.c.b16 %v3048, %v3046
    %v3233 = vpack.c.b16 %v3049, %v3047
    %v3234 = vpack.c.b16 %v3052, %v3050
    %v3235 = vpack.c.b16 %v3053, %v3051
    %v3236 = vpack.c.b16 %v3056, %v3054
    %v3237 = vpack.c.b16 %v3057, %v3055
    %v3238 = vpack.c.b16 %v3060, %v3058
    %v3239 = vpack.c.b16 %v3061, %v3059
    %v3240 = vpack.c.b16 %v3064, %v3062
    %v3241 = vpack.c.b16 %v3065, %v3063
    %v3242 = vpack.c.b16 %v3068, %v3066
    %v3243 = vpack.c.b16 %v3069, %v3067
    %v3244 = vpack.c.b16 %v3072, %v3070
    %v3245 = vpack.c.b16 %v3073, %v3071
    %v3246 = vpack.c.b16 %v3076, %v3074
    %v3247 = vpack.c.b16 %v3077, %v3075
    %v3248 = vpack.c.b16 %v3080, %v3078
    %v3249 = vpack.c.b16 %v3081, %v3079
    %v3250 = vpack.c.b16 %v3084, %v3082
    %v3251 = vpack.c.b16 %v3085, %v3083
    %v3252 = vpack.c.b16 %v3088, %v3086
    %v3253 = vpack.c.b16 %v3089, %v3087
    %v3254 = vpack.c.b16 %v3092, %v3090
    %v3255 = vpack.c.b16 %v3093, %v3091
    %v3256 = vpack.c.b16 %v3096, %v3094
    %v3257 = vpack.c.b16 %v3097, %v3095
    %v3258 = vpack.c.b16 %v3100, %v3098
    %v3259 = vpack.c.b16 %v3101, %v3099
    %v3260 = vpack.c.b16 %v3104, %v3102
    %v3261 = vpack.c.b16 %v3105, %v3103
    %v3262 = vpack.c.b16 %v3108, %v3106
    %v3263 = vpack.c.b16 %v3109, %v3107
    %v3264 = vpack.c.b16 %v3112, %v3110
    %v3265 = vpack.c.b16 %v3113, %v3111
    %v3266 = vpack.c.b16 %v3116, %v3114
    %v3267 = vpack.c.b16 %v3117, %v3115
    %v3268 = vpack.c.b16 %v3120, %v3118
    %v3269 = vpack.c.b16 %v3121, %v3119
    %v3270 = vpack.c.b16 %v3124, %v3122
    %v3271 = vpack.c.b16 %v3125, %v3123
    %v3272 = vpack.c.b16 %v3128, %v3126
    %v3273 = vpack.c.b16 %v3129, %v3127
    %v3274 = vpack.c.b16 %v3132, %v3130
    %v3275 = vpack.c.b16 %v3133, %v3131
    %v3276 = vpack.c.b16 %v3136, %v3134
    %v3277 = vpack.c.b16 %v3137, %v3135
    %v3278 = vpack.c.b16 %v3140, %v3138
    %v3279 = vpack.c.b16 %v3141, %v3139
    %v3280 = vpack.c.b16 %v3144, %v3142
    %v3281 = vpack.c.b16 %v3145, %v3143
    %v3282 = vpack.c.b16 %v3148, %v3146
    %v3283 = vpack.c.b16 %v3149, %v3147
    %v3284 = vpack.c.b16 %v3152, %v3150
    %v3285 = vpack.c.b16 %v3153, %v3151
    %v3286 = vpack.c.b16 %v3156, %v3154
    %v3287 = vpack.c.b16 %v3157, %v3155
    %v3288 = vpack.c.b16 %v3160, %v3158
    %v3289 = vpack.c.b16 %v3161, %v3159
    %v3290 = vpack.c.b16 %v3164, %v3162
    %v3291 = vpack.c.b16 %v3165, %v3163
    %v3292 = vpack.c.b16 %v3168, %v3166
    %v3293 = vpack.c.b16 %v3169, %v3167
    %v3294 = vpack.c.b16 %v3172, %v3170
    %v3295 = vpack.c.b16 %v3173, %v3171
    %v3296 = vpack.c.b16 %v3176, %v3174
    %v3297 = vpack.c.b16 %v3177, %v3175
    %v3298 = vpack.c.b16 %v3180, %v3178
    %v3299 = vpack.c.b16 %v3181, %v3179
    %v3300 = vpack.c.b16 %v3184, %v3182
    %v3301 = vpack.c.b16 %v3185, %v3183
    %v3302 = vpack.c.b16 %v3188, %v3186
    %v3303 = vpack.c.b16 %v3189, %v3187
    %v3304 = vpack.c.b16 %v3192, %v3190
    %v3305 = vpack.c.b16 %v3193, %v3191
    %v3306 = vpack.c.b16 %v3196, %v3194
    %v3307 = vpack.c.b16 %v3197, %v3195
    %v3308 = vpack.c.b16 %v3200, %v3198
    %v3309 = vpack.c.b16 %v3201, %v3199
    %v3310 = vpack.c.b16 %v3204, %v3202
    %v3311 = vpack.c.b16 %v3205, %v3203
    %v3312 = vpack.c.b16 %v3208, %v3206
    %v3313 = vpack.c.b16 %v3209, %v3207
    %v3314 = vpack.c.b16 %v3212, %v3210
    %v3315 = vpack.c.b16 %v3213, %v3211
    %v3316 = vpack.c.b16 %v3216, %v3214
    %v3317 = vpack.c.b16 %v3217, %v3215
    %v3318 = vpack.c.b16 %v3220, %v3218
    %v3319 = vpack.c.b16 %v3221, %v3219
    %v3320 = vpack.c.b16 %v3224, %v3222
    %v3321 = vpack.c.b16 %v3225, %v3223
    %3418 = vmatprep.subr.bf16.mxu0 %v3227
    %3419 = vmatpush1.bf16.msra.mxu0 %v3226
    %3420 = vmatprep.subr.bf16.mxu0 %v3229
    %3421 = vmatpush1.bf16.msra.mxu0 %v3228
    %3422 = vmatprep.subr.bf16.mxu0 %v3231
    %3423 = vmatpush1.bf16.msra.mxu0 %v3230
    %3424 = vmatprep.subr.bf16.mxu0 %v3233
    %3425 = vmatpush1.bf16.msra.mxu0 %v3232
    %3426 = vmatprep.subr.bf16.mxu0 %v3235
    %3427 = vmatpush1.bf16.msra.mxu0 %v3234
    %3428 = vmatprep.subr.bf16.mxu0 %v3237
    %3429 = vmatpush1.bf16.msra.mxu0 %v3236
    %3430 = vmatprep.subr.bf16.mxu0 %v3239
    %3431 = vmatpush1.bf16.msra.mxu0 %v3238
    %3432 = vmatprep.subr.bf16.mxu0 %v3241
    %3433 = vmatpush1.bf16.msra.mxu0 %v3240
    %3434 = vmatprep.subr.bf16.mxu0 %v3243
    %3435 = vmatpush1.bf16.msra.mxu0 %v3242
    %3436 = vmatprep.subr.bf16.mxu0 %v3245
    %3437 = vmatpush1.bf16.msra.mxu0 %v3244
    %3438 = vmatprep.subr.bf16.mxu0 %v3247
    %3439 = vmatpush1.bf16.msra.mxu0 %v3246
    %3440 = vmatprep.subr.bf16.mxu0 %v3249
    %3441 = vmatpush1.bf16.msra.mxu0 %v3248
    %3442 = vmatprep.subr.bf16.mxu0 %v3251
    %3443 = vmatpush1.bf16.msra.mxu0 %v3250
    %3444 = vmatprep.subr.bf16.mxu0 %v3253
    %3445 = vmatpush1.bf16.msra.mxu0 %v3252
    %3446 = vmatprep.subr.bf16.mxu0 %v3255
    %3447 = vmatpush1.bf16.msra.mxu0 %v3254
    %3448 = vmatprep.subr.bf16.mxu0 %v3257
    %3449 = vmatpush1.bf16.msra.mxu0 %v3256
    %3450 = vmatprep.mubr.bf16.mxu0 %v2819
    %3451 = vmatmul.mubr.bf16.gmra.mrb[0].mxu0 %v2818
    %v3452 = vpop.f32.mrb[0].mxu0
    %v3453 = vadd.f32 0.0, %v3452
    %v3454 = vpop.f32.mrb[0].mxu0
    %v3455 = vadd.f32 0.0, %v3454
    %v3456 = vpop.f32.mrb[0].mxu0
    %v3457 = vadd.f32 0.0, %v3456
    %v3458 = vpop.f32.mrb[0].mxu0
    %v3459 = vadd.f32 0.0, %v3458
    %3460 = vmatprep.mubr.bf16.mxu0 %v2825
    %3461 = vmatmul.mubr.bf16.gmra.mrb[0].mxu0 %v2824
    %v3462 = vpop.f32.mrb[0].mxu0
    %v3463 = vadd.f32 0.0, %v3462
    %v3464 = vpop.f32.mrb[0].mxu0
    %v3465 = vadd.f32 0.0, %v3464
    %v3466 = vpop.f32.mrb[0].mxu0
    %v3467 = vadd.f32 0.0, %v3466
    %v3468 = vpop.f32.mrb[0].mxu0
    %v3469 = vadd.f32 0.0, %v3468
    %3470 = vmatprep.mubr.bf16.mxu0 %v2831
    %3471 = vmatmul.mubr.bf16.gmra.mrb[0].mxu0 %v2830
    %v3472 = vpop.f32.mrb[0].mxu0
    %v3473 = vadd.f32 0.0, %v3472
    %v3474 = vpop.f32.mrb[0].mxu0
    %v3475 = vadd.f32 0.0, %v3474
    %v3476 = vpop.f32.mrb[0].mxu0
    %v3477 = vadd.f32 0.0, %v3476
    %v3478 = vpop.f32.mrb[0].mxu0
    %v3479 = vadd.f32 0.0, %v3478
    %3480 = vmatprep.mubr.bf16.mxu0 %v2837
    %3481 = vmatmul.mubr.bf16.gmra.mrb[0].mxu0 %v2836
    %v3482 = vpop.f32.mrb[0].mxu0
    %v3483 = vadd.f32 0.0, %v3482
    %v3484 = vpop.f32.mrb[0].mxu0
    %v3485 = vadd.f32 0.0, %v3484
    %v3486 = vpop.f32.mrb[0].mxu0
    %v3487 = vadd.f32 0.0, %v3486
    %v3488 = vpop.f32.mrb[0].mxu0
    %v3489 = vadd.f32 0.0, %v3488
    %3490 = vdwg.mxu0
    %3491 = vmatprep.subr.bf16.mxu0 %v3259
    %3492 = vmatpush1.bf16.msra.mxu0 %v3258
    %3493 = vmatprep.subr.bf16.mxu0 %v3261
    %3494 = vmatpush1.bf16.msra.mxu0 %v3260
    %3495 = vmatprep.subr.bf16.mxu0 %v3263
    %3496 = vmatpush1.bf16.msra.mxu0 %v3262
    %3497 = vmatprep.subr.bf16.mxu0 %v3265
    %3498 = vmatpush1.bf16.msra.mxu0 %v3264
    %3499 = vmatprep.subr.bf16.mxu0 %v3267
    %3500 = vmatpush1.bf16.msra.mxu0 %v3266
    %3501 = vmatprep.subr.bf16.mxu0 %v3269
    %3502 = vmatpush1.bf16.msra.mxu0 %v3268
    %3503 = vmatprep.subr.bf16.mxu0 %v3271
    %3504 = vmatpush1.bf16.msra.mxu0 %v3270
    %3505 = vmatprep.subr.bf16.mxu0 %v3273
    %3506 = vmatpush1.bf16.msra.mxu0 %v3272
    %3507 = vmatprep.subr.bf16.mxu0 %v3275
    %3508 = vmatpush1.bf16.msra.mxu0 %v3274
    %3509 = vmatprep.subr.bf16.mxu0 %v3277
    %3510 = vmatpush1.bf16.msra.mxu0 %v3276
    %3511 = vmatprep.subr.bf16.mxu0 %v3279
    %3512 = vmatpush1.bf16.msra.mxu0 %v3278
    %3513 = vmatprep.subr.bf16.mxu0 %v3281
    %3514 = vmatpush1.bf16.msra.mxu0 %v3280
    %3515 = vmatprep.subr.bf16.mxu0 %v3283
    %3516 = vmatpush1.bf16.msra.mxu0 %v3282
    %3517 = vmatprep.subr.bf16.mxu0 %v3285
    %3518 = vmatpush1.bf16.msra.mxu0 %v3284
    %3519 = vmatprep.subr.bf16.mxu0 %v3287
    %3520 = vmatpush1.bf16.msra.mxu0 %v3286
    %3521 = vmatprep.subr.bf16.mxu0 %v3289
    %3522 = vmatpush1.bf16.msra.mxu0 %v3288
    %3523 = vmatprep.mubr.bf16.mxu0 %v2821
    %3524 = vmatmul.mubr.bf16.gmra.mrb[0].mxu0 %v2820
    %v3525 = vpop.f32.mrb[0].mxu0
    %v3526 = vadd.f32 %v3453, %v3525
    %v3527 = vpop.f32.mrb[0].mxu0
    %v3528 = vadd.f32 %v3455, %v3527
    %v3529 = vpop.f32.mrb[0].mxu0
    %v3530 = vadd.f32 %v3457, %v3529
    %v3531 = vpop.f32.mrb[0].mxu0
    %v3532 = vadd.f32 %v3459, %v3531
    %3533 = vmatprep.mubr.bf16.mxu0 %v2827
    %3534 = vmatmul.mubr.bf16.gmra.mrb[0].mxu0 %v2826
    %v3535 = vpop.f32.mrb[0].mxu0
    %v3536 = vadd.f32 %v3463, %v3535
    %v3537 = vpop.f32.mrb[0].mxu0
    %v3538 = vadd.f32 %v3465, %v3537
    %v3539 = vpop.f32.mrb[0].mxu0
    %v3540 = vadd.f32 %v3467, %v3539
    %v3541 = vpop.f32.mrb[0].mxu0
    %v3542 = vadd.f32 %v3469, %v3541
    %3543 = vmatprep.mubr.bf16.mxu0 %v2833
    %3544 = vmatmul.mubr.bf16.gmra.mrb[0].mxu0 %v2832
    %v3545 = vpop.f32.mrb[0].mxu0
    %v3546 = vadd.f32 %v3473, %v3545
    %v3547 = vpop.f32.mrb[0].mxu0
    %v3548 = vadd.f32 %v3475, %v3547
    %v3549 = vpop.f32.mrb[0].mxu0
    %v3550 = vadd.f32 %v3477, %v3549
    %v3551 = vpop.f32.mrb[0].mxu0
    %v3552 = vadd.f32 %v3479, %v3551
    %3553 = vmatprep.mubr.bf16.mxu0 %v2839
    %3554 = vmatmul.mubr.bf16.gmra.mrb[0].mxu0 %v2838
    %v3555 = vpop.f32.mrb[0].mxu0
    %v3556 = vadd.f32 %v3483, %v3555
    %v3557 = vpop.f32.mrb[0].mxu0
    %v3558 = vadd.f32 %v3485, %v3557
    %v3559 = vpop.f32.mrb[0].mxu0
    %v3560 = vadd.f32 %v3487, %v3559
    %v3561 = vpop.f32.mrb[0].mxu0
    %v3562 = vadd.f32 %v3489, %v3561
    %3563 = vdwg.mxu0
    %3564 = vmatprep.subr.bf16.mxu0 %v3291
    %3565 = vmatpush1.bf16.msra.mxu0 %v3290
    %3566 = vmatprep.subr.bf16.mxu0 %v3293
    %3567 = vmatpush1.bf16.msra.mxu0 %v3292
    %3568 = vmatprep.subr.bf16.mxu0 %v3295
    %3569 = vmatpush1.bf16.msra.mxu0 %v3294
    %3570 = vmatprep.subr.bf16.mxu0 %v3297
    %3571 = vmatpush1.bf16.msra.mxu0 %v3296
    %3572 = vmatprep.subr.bf16.mxu0 %v3299
    %3573 = vmatpush1.bf16.msra.mxu0 %v3298
    %3574 = vmatprep.subr.bf16.mxu0 %v3301
    %3575 = vmatpush1.bf16.msra.mxu0 %v3300
    %3576 = vmatprep.subr.bf16.mxu0 %v3303
    %3577 = vmatpush1.bf16.msra.mxu0 %v3302
    %3578 = vmatprep.subr.bf16.mxu0 %v3305
    %3579 = vmatpush1.bf16.msra.mxu0 %v3304
    %3580 = vmatprep.subr.bf16.mxu0 %v3307
    %3581 = vmatpush1.bf16.msra.mxu0 %v3306
    %3582 = vmatprep.subr.bf16.mxu0 %v3309
    %3583 = vmatpush1.bf16.msra.mxu0 %v3308
    %3584 = vmatprep.subr.bf16.mxu0 %v3311
    %3585 = vmatpush1.bf16.msra.mxu0 %v3310
    %3586 = vmatprep.subr.bf16.mxu0 %v3313
    %3587 = vmatpush1.bf16.msra.mxu0 %v3312
    %3588 = vmatprep.subr.bf16.mxu0 %v3315
    %3589 = vmatpush1.bf16.msra.mxu0 %v3314
    %3590 = vmatprep.subr.bf16.mxu0 %v3317
    %3591 = vmatpush1.bf16.msra.mxu0 %v3316
    %3592 = vmatprep.subr.bf16.mxu0 %v3319
    %3593 = vmatpush1.bf16.msra.mxu0 %v3318
    %3594 = vmatprep.subr.bf16.mxu0 %v3321
    %3595 = vmatpush1.bf16.msra.mxu0 %v3320
    %3596 = vmatprep.mubr.bf16.mxu0 %v2823
    %3597 = vmatmul.mubr.bf16.gmra.mrb[0].mxu0 %v2822
    %v3598 = vpop.f32.mrb[0].mxu0
    %v3599 = vadd.f32 %v3526, %v3598
    %v3600 = vpop.f32.mrb[0].mxu0
    %v3601 = vadd.f32 %v3528, %v3600
    %v3602 = vpop.f32.mrb[0].mxu0
    %v3603 = vadd.f32 %v3530, %v3602
    %v3604 = vpop.f32.mrb[0].mxu0
    %v3605 = vadd.f32 %v3532, %v3604
    %3606 = vmatprep.mubr.bf16.mxu0 %v2829
    %3607 = vmatmul.mubr.bf16.gmra.mrb[0].mxu0 %v2828
    %v3608 = vpop.f32.mrb[0].mxu0
    %v3609 = vadd.f32 %v3536, %v3608
    %v3610 = vpop.f32.mrb[0].mxu0
    %v3611 = vadd.f32 %v3538, %v3610
    %v3612 = vpop.f32.mrb[0].mxu0
    %v3613 = vadd.f32 %v3540, %v3612
    %v3614 = vpop.f32.mrb[0].mxu0
    %v3615 = vadd.f32 %v3542, %v3614
    %3616 = vmatprep.mubr.bf16.mxu0 %v2835
    %3617 = vmatmul.mubr.bf16.gmra.mrb[0].mxu0 %v2834
    %v3618 = vpop.f32.mrb[0].mxu0
    %v3619 = vadd.f32 %v3546, %v3618
    %v3620 = vpop.f32.mrb[0].mxu0
    %v3621 = vadd.f32 %v3548, %v3620
    %v3622 = vpop.f32.mrb[0].mxu0
    %v3623 = vadd.f32 %v3550, %v3622
    %v3624 = vpop.f32.mrb[0].mxu0
    %v3625 = vadd.f32 %v3552, %v3624
    %3626 = vmatprep.mubr.bf16.mxu0 %v2841
    %3627 = vmatmul.mubr.bf16.gmra.mrb[0].mxu0 %v2840
    %v3628 = vpop.f32.mrb[0].mxu0
    %v3629 = vadd.f32 %v3556, %v3628
    %v3630 = vpop.f32.mrb[0].mxu0
    %v3631 = vadd.f32 %v3558, %v3630
    %v3632 = vpop.f32.mrb[0].mxu0
    %v3633 = vadd.f32 %v3560, %v3632
    %v3634 = vpop.f32.mrb[0].mxu0
    %v3635 = vadd.f32 %v3562, %v3634
    %3636 = vdwg.mxu0
    %v3637 = vpack.c.bf16 %v3603, %v3599
    %v3638 = vpack.c.bf16 %v3605, %v3601
    %v3639 = vpack.c.bf16 %v3613, %v3609
    %v3640 = vpack.c.bf16 %v3615, %v3611
    %v3641 = vpack.c.bf16 %v3623, %v3619
    %v3642 = vpack.c.bf16 %v3625, %v3621
    %v3643 = vpack.c.bf16 %v3633, %v3629
    %v3644 = vpack.c.bf16 %v3635, %v3631
    %3653 = vrot.lane.b32.xlu0 %v3637, 127
    %v3654 = vpop.permute.xlu0 %3653
    %3655 = vrot.lane.b32.xlu0 %v3638, 127
    %v3656 = vpop.permute.xlu0 %3655
    %3657 = vrot.lane.b32.xlu0 %v3639, 127
    %v3658 = vpop.permute.xlu0 %3657
    %3659 = vrot.lane.b32.xlu0 %v3640, 127
    %v3660 = vpop.permute.xlu0 %3659
    %3661 = vrot.lane.b32.xlu0 %v3641, 127
    %v3662 = vpop.permute.xlu0 %3661
    %3663 = vrot.lane.b32.xlu0 %v3642, 127
    %v3664 = vpop.permute.xlu0 %3663
    %3665 = vrot.lane.b32.xlu0 %v3643, 127
    %v3666 = vpop.permute.xlu0 %3665
    %3667 = vrot.lane.b32.xlu0 %v3644, 127
    %v3668 = vpop.permute.xlu0 %3667
    %vm3669 = vcmask 1039360
    %v3670 = vsel %vm3669, %v3654, %v3656
    %v3671 = vsel %vm3669, %v3658, %v3660
    %v3672 = vsel %vm3669, %v3662, %v3664
    %v3673 = vsel %vm3669, %v3666, %v3668
    %3682 = vrot.lane.b32.xlu0 %v3637, 126
    %v3683 = vpop.permute.xlu0 %3682
    %3684 = vrot.lane.b32.xlu0 %v3638, 126
    %v3685 = vpop.permute.xlu0 %3684
    %3686 = vrot.lane.b32.xlu0 %v3639, 126
    %v3687 = vpop.permute.xlu0 %3686
    %3688 = vrot.lane.b32.xlu0 %v3640, 126
    %v3689 = vpop.permute.xlu0 %3688
    %3690 = vrot.lane.b32.xlu0 %v3641, 126
    %v3691 = vpop.permute.xlu0 %3690
    %3692 = vrot.lane.b32.xlu0 %v3642, 126
    %v3693 = vpop.permute.xlu0 %3692
    %3694 = vrot.lane.b32.xlu0 %v3643, 126
    %v3695 = vpop.permute.xlu0 %3694
    %3696 = vrot.lane.b32.xlu0 %v3644, 126
    %v3697 = vpop.permute.xlu0 %3696
    %vm3698 = vcmask 1031168
    %v3699 = vsel %vm3698, %v3683, %v3685
    %v3700 = vsel %vm3698, %v3687, %v3689
    %v3701 = vsel %vm3698, %v3691, %v3693
    %v3702 = vsel %vm3698, %v3695, %v3697
    %3711 = vrot.lane.b32.xlu0 %v3637, 125
    %v3712 = vpop.permute.xlu0 %3711
    %3713 = vrot.lane.b32.xlu0 %v3638, 125
    %v3714 = vpop.permute.xlu0 %3713
    %3715 = vrot.lane.b32.xlu0 %v3639, 125
    %v3716 = vpop.permute.xlu0 %3715
    %3717 = vrot.lane.b32.xlu0 %v3640, 125
    %v3718 = vpop.permute.xlu0 %3717
    %3719 = vrot.lane.b32.xlu0 %v3641, 125
    %v3720 = vpop.permute.xlu0 %3719
    %3721 = vrot.lane.b32.xlu0 %v3642, 125
    %v3722 = vpop.permute.xlu0 %3721
    %3723 = vrot.lane.b32.xlu0 %v3643, 125
    %v3724 = vpop.permute.xlu0 %3723
    %3725 = vrot.lane.b32.xlu0 %v3644, 125
    %v3726 = vpop.permute.xlu0 %3725
    %vm3727 = vcmask 1022976
    %v3728 = vsel %vm3727, %v3712, %v3714
    %v3729 = vsel %vm3727, %v3716, %v3718
    %v3730 = vsel %vm3727, %v3720, %v3722
    %v3731 = vsel %vm3727, %v3724, %v3726
    %3740 = vrot.lane.b32.xlu0 %v3637, 124
    %v3741 = vpop.permute.xlu0 %3740
    %3742 = vrot.lane.b32.xlu0 %v3638, 124
    %v3743 = vpop.permute.xlu0 %3742
    %3744 = vrot.lane.b32.xlu0 %v3639, 124
    %v3745 = vpop.permute.xlu0 %3744
    %3746 = vrot.lane.b32.xlu0 %v3640, 124
    %v3747 = vpop.permute.xlu0 %3746
    %3748 = vrot.lane.b32.xlu0 %v3641, 124
    %v3749 = vpop.permute.xlu0 %3748
    %3750 = vrot.lane.b32.xlu0 %v3642, 124
    %v3751 = vpop.permute.xlu0 %3750
    %3752 = vrot.lane.b32.xlu0 %v3643, 124
    %v3753 = vpop.permute.xlu0 %3752
    %3754 = vrot.lane.b32.xlu0 %v3644, 124
    %v3755 = vpop.permute.xlu0 %3754
    %vm3756 = vcmask 1014784
    %v3757 = vsel %vm3756, %v3741, %v3743
    %v3758 = vsel %vm3756, %v3745, %v3747
    %v3759 = vsel %vm3756, %v3749, %v3751
    %v3760 = vsel %vm3756, %v3753, %v3755
    %3769 = vrot.lane.b32.xlu0 %v3637, 123
    %v3770 = vpop.permute.xlu0 %3769
    %3771 = vrot.lane.b32.xlu0 %v3638, 123
    %v3772 = vpop.permute.xlu0 %3771
    %3773 = vrot.lane.b32.xlu0 %v3639, 123
    %v3774 = vpop.permute.xlu0 %3773
    %3775 = vrot.lane.b32.xlu0 %v3640, 123
    %v3776 = vpop.permute.xlu0 %3775
    %3777 = vrot.lane.b32.xlu0 %v3641, 123
    %v3778 = vpop.permute.xlu0 %3777
    %3779 = vrot.lane.b32.xlu0 %v3642, 123
    %v3780 = vpop.permute.xlu0 %3779
    %3781 = vrot.lane.b32.xlu0 %v3643, 123
    %v3782 = vpop.permute.xlu0 %3781
    %3783 = vrot.lane.b32.xlu0 %v3644, 123
    %v3784 = vpop.permute.xlu0 %3783
    %vm3785 = vcmask 1006592
    %v3786 = vsel %vm3785, %v3770, %v3772
    %v3787 = vsel %vm3785, %v3774, %v3776
    %v3788 = vsel %vm3785, %v3778, %v3780
    %v3789 = vsel %vm3785, %v3782, %v3784
    %3798 = vrot.lane.b32.xlu0 %v3637, 122
    %v3799 = vpop.permute.xlu0 %3798
    %3800 = vrot.lane.b32.xlu0 %v3638, 122
    %v3801 = vpop.permute.xlu0 %3800
    %3802 = vrot.lane.b32.xlu0 %v3639, 122
    %v3803 = vpop.permute.xlu0 %3802
    %3804 = vrot.lane.b32.xlu0 %v3640, 122
    %v3805 = vpop.permute.xlu0 %3804
    %3806 = vrot.lane.b32.xlu0 %v3641, 122
    %v3807 = vpop.permute.xlu0 %3806
    %3808 = vrot.lane.b32.xlu0 %v3642, 122
    %v3809 = vpop.permute.xlu0 %3808
    %3810 = vrot.lane.b32.xlu0 %v3643, 122
    %v3811 = vpop.permute.xlu0 %3810
    %3812 = vrot.lane.b32.xlu0 %v3644, 122
    %v3813 = vpop.permute.xlu0 %3812
    %vm3814 = vcmask 998400
    %v3815 = vsel %vm3814, %v3799, %v3801
    %v3816 = vsel %vm3814, %v3803, %v3805
    %v3817 = vsel %vm3814, %v3807, %v3809
    %v3818 = vsel %vm3814, %v3811, %v3813
    %3827 = vrot.lane.b32.xlu0 %v3637, 121
    %v3828 = vpop.permute.xlu0 %3827
    %3829 = vrot.lane.b32.xlu0 %v3638, 121
    %v3830 = vpop.permute.xlu0 %3829
    %3831 = vrot.lane.b32.xlu0 %v3639, 121
    %v3832 = vpop.permute.xlu0 %3831
    %3833 = vrot.lane.b32.xlu0 %v3640, 121
    %v3834 = vpop.permute.xlu0 %3833
    %3835 = vrot.lane.b32.xlu0 %v3641, 121
    %v3836 = vpop.permute.xlu0 %3835
    %3837 = vrot.lane.b32.xlu0 %v3642, 121
    %v3838 = vpop.permute.xlu0 %3837
    %3839 = vrot.lane.b32.xlu0 %v3643, 121
    %v3840 = vpop.permute.xlu0 %3839
    %3841 = vrot.lane.b32.xlu0 %v3644, 121
    %v3842 = vpop.permute.xlu0 %3841
    %vm3843 = vcmask 990208
    %v3844 = vsel %vm3843, %v3828, %v3830
    %v3845 = vsel %vm3843, %v3832, %v3834
    %v3846 = vsel %vm3843, %v3836, %v3838
    %v3847 = vsel %vm3843, %v3840, %v3842
    %3856 = vrot.lane.b32.xlu0 %v3637, 120
    %v3857 = vpop.permute.xlu0 %3856
    %3858 = vrot.lane.b32.xlu0 %v3638, 120
    %v3859 = vpop.permute.xlu0 %3858
    %3860 = vrot.lane.b32.xlu0 %v3639, 120
    %v3861 = vpop.permute.xlu0 %3860
    %3862 = vrot.lane.b32.xlu0 %v3640, 120
    %v3863 = vpop.permute.xlu0 %3862
    %3864 = vrot.lane.b32.xlu0 %v3641, 120
    %v3865 = vpop.permute.xlu0 %3864
    %3866 = vrot.lane.b32.xlu0 %v3642, 120
    %v3867 = vpop.permute.xlu0 %3866
    %3868 = vrot.lane.b32.xlu0 %v3643, 120
    %v3869 = vpop.permute.xlu0 %3868
    %3870 = vrot.lane.b32.xlu0 %v3644, 120
    %v3871 = vpop.permute.xlu0 %3870
    %vm3872 = vcmask 982016
    %v3873 = vsel %vm3872, %v3857, %v3859
    %v3874 = vsel %vm3872, %v3861, %v3863
    %v3875 = vsel %vm3872, %v3865, %v3867
    %v3876 = vsel %vm3872, %v3869, %v3871
    %3885 = vrot.lane.b32.xlu0 %v3637, 119
    %v3886 = vpop.permute.xlu0 %3885
    %3887 = vrot.lane.b32.xlu0 %v3638, 119
    %v3888 = vpop.permute.xlu0 %3887
    %3889 = vrot.lane.b32.xlu0 %v3639, 119
    %v3890 = vpop.permute.xlu0 %3889
    %3891 = vrot.lane.b32.xlu0 %v3640, 119
    %v3892 = vpop.permute.xlu0 %3891
    %3893 = vrot.lane.b32.xlu0 %v3641, 119
    %v3894 = vpop.permute.xlu0 %3893
    %3895 = vrot.lane.b32.xlu0 %v3642, 119
    %v3896 = vpop.permute.xlu0 %3895
    %3897 = vrot.lane.b32.xlu0 %v3643, 119
    %v3898 = vpop.permute.xlu0 %3897
    %3899 = vrot.lane.b32.xlu0 %v3644, 119
    %v3900 = vpop.permute.xlu0 %3899
    %vm3901 = vcmask 973824
    %v3902 = vsel %vm3901, %v3886, %v3888
    %v3903 = vsel %vm3901, %v3890, %v3892
    %v3904 = vsel %vm3901, %v3894, %v3896
    %v3905 = vsel %vm3901, %v3898, %v3900
    %3914 = vrot.lane.b32.xlu0 %v3637, 118
    %v3915 = vpop.permute.xlu0 %3914
    %3916 = vrot.lane.b32.xlu0 %v3638, 118
    %v3917 = vpop.permute.xlu0 %3916
    %3918 = vrot.lane.b32.xlu0 %v3639, 118
    %v3919 = vpop.permute.xlu0 %3918
    %3920 = vrot.lane.b32.xlu0 %v3640, 118
    %v3921 = vpop.permute.xlu0 %3920
    %3922 = vrot.lane.b32.xlu0 %v3641, 118
    %v3923 = vpop.permute.xlu0 %3922
    %3924 = vrot.lane.b32.xlu0 %v3642, 118
    %v3925 = vpop.permute.xlu0 %3924
    %3926 = vrot.lane.b32.xlu0 %v3643, 118
    %v3927 = vpop.permute.xlu0 %3926
    %3928 = vrot.lane.b32.xlu0 %v3644, 118
    %v3929 = vpop.permute.xlu0 %3928
    %vm3930 = vcmask 965632
    %v3931 = vsel %vm3930, %v3915, %v3917
    %v3932 = vsel %vm3930, %v3919, %v3921
    %v3933 = vsel %vm3930, %v3923, %v3925
    %v3934 = vsel %vm3930, %v3927, %v3929
    %3943 = vrot.lane.b32.xlu0 %v3637, 117
    %v3944 = vpop.permute.xlu0 %3943
    %3945 = vrot.lane.b32.xlu0 %v3638, 117
    %v3946 = vpop.permute.xlu0 %3945
    %3947 = vrot.lane.b32.xlu0 %v3639, 117
    %v3948 = vpop.permute.xlu0 %3947
    %3949 = vrot.lane.b32.xlu0 %v3640, 117
    %v3950 = vpop.permute.xlu0 %3949
    %3951 = vrot.lane.b32.xlu0 %v3641, 117
    %v3952 = vpop.permute.xlu0 %3951
    %3953 = vrot.lane.b32.xlu0 %v3642, 117
    %v3954 = vpop.permute.xlu0 %3953
    %3955 = vrot.lane.b32.xlu0 %v3643, 117
    %v3956 = vpop.permute.xlu0 %3955
    %3957 = vrot.lane.b32.xlu0 %v3644, 117
    %v3958 = vpop.permute.xlu0 %3957
    %vm3959 = vcmask 957440
    %v3960 = vsel %vm3959, %v3944, %v3946
    %v3961 = vsel %vm3959, %v3948, %v3950
    %v3962 = vsel %vm3959, %v3952, %v3954
    %v3963 = vsel %vm3959, %v3956, %v3958
    %3972 = vrot.lane.b32.xlu0 %v3637, 116
    %v3973 = vpop.permute.xlu0 %3972
    %3974 = vrot.lane.b32.xlu0 %v3638, 116
    %v3975 = vpop.permute.xlu0 %3974
    %3976 = vrot.lane.b32.xlu0 %v3639, 116
    %v3977 = vpop.permute.xlu0 %3976
    %3978 = vrot.lane.b32.xlu0 %v3640, 116
    %v3979 = vpop.permute.xlu0 %3978
    %3980 = vrot.lane.b32.xlu0 %v3641, 116
    %v3981 = vpop.permute.xlu0 %3980
    %3982 = vrot.lane.b32.xlu0 %v3642, 116
    %v3983 = vpop.permute.xlu0 %3982
    %3984 = vrot.lane.b32.xlu0 %v3643, 116
    %v3985 = vpop.permute.xlu0 %3984
    %3986 = vrot.lane.b32.xlu0 %v3644, 116
    %v3987 = vpop.permute.xlu0 %3986
    %vm3988 = vcmask 949248
    %v3989 = vsel %vm3988, %v3973, %v3975
    %v3990 = vsel %vm3988, %v3977, %v3979
    %v3991 = vsel %vm3988, %v3981, %v3983
    %v3992 = vsel %vm3988, %v3985, %v3987
    %4001 = vrot.lane.b32.xlu0 %v3637, 115
    %v4002 = vpop.permute.xlu0 %4001
    %4003 = vrot.lane.b32.xlu0 %v3638, 115
    %v4004 = vpop.permute.xlu0 %4003
    %4005 = vrot.lane.b32.xlu0 %v3639, 115
    %v4006 = vpop.permute.xlu0 %4005
    %4007 = vrot.lane.b32.xlu0 %v3640, 115
    %v4008 = vpop.permute.xlu0 %4007
    %4009 = vrot.lane.b32.xlu0 %v3641, 115
    %v4010 = vpop.permute.xlu0 %4009
    %4011 = vrot.lane.b32.xlu0 %v3642, 115
    %v4012 = vpop.permute.xlu0 %4011
    %4013 = vrot.lane.b32.xlu0 %v3643, 115
    %v4014 = vpop.permute.xlu0 %4013
    %4015 = vrot.lane.b32.xlu0 %v3644, 115
    %v4016 = vpop.permute.xlu0 %4015
    %vm4017 = vcmask 941056
    %v4018 = vsel %vm4017, %v4002, %v4004
    %v4019 = vsel %vm4017, %v4006, %v4008
    %v4020 = vsel %vm4017, %v4010, %v4012
    %v4021 = vsel %vm4017, %v4014, %v4016
    %4030 = vrot.lane.b32.xlu0 %v3637, 114
    %v4031 = vpop.permute.xlu0 %4030
    %4032 = vrot.lane.b32.xlu0 %v3638, 114
    %v4033 = vpop.permute.xlu0 %4032
    %4034 = vrot.lane.b32.xlu0 %v3639, 114
    %v4035 = vpop.permute.xlu0 %4034
    %4036 = vrot.lane.b32.xlu0 %v3640, 114
    %v4037 = vpop.permute.xlu0 %4036
    %4038 = vrot.lane.b32.xlu0 %v3641, 114
    %v4039 = vpop.permute.xlu0 %4038
    %4040 = vrot.lane.b32.xlu0 %v3642, 114
    %v4041 = vpop.permute.xlu0 %4040
    %4042 = vrot.lane.b32.xlu0 %v3643, 114
    %v4043 = vpop.permute.xlu0 %4042
    %4044 = vrot.lane.b32.xlu0 %v3644, 114
    %v4045 = vpop.permute.xlu0 %4044
    %vm4046 = vcmask 932864
    %v4047 = vsel %vm4046, %v4031, %v4033
    %v4048 = vsel %vm4046, %v4035, %v4037
    %v4049 = vsel %vm4046, %v4039, %v4041
    %v4050 = vsel %vm4046, %v4043, %v4045
    %v4059 = vld [vmem:[#allocation7] sm:$0xff]
    %v4060 = vld [vmem:[#allocation7 + $0x8] sm:$0xff]
    %v4061 = vld [vmem:[#allocation7 + $0x10] sm:$0xff]
    %v4062 = vld [vmem:[#allocation7 + $0x18] sm:$0xff]
    %v4063 = vld [vmem:[#allocation7 + $0x20] sm:$0xff]
    %v4064 = vld [vmem:[#allocation7 + $0x28] sm:$0xff]
    %v4065 = vld [vmem:[#allocation7 + $0x30] sm:$0xff]
    %v4066 = vld [vmem:[#allocation7 + $0x38] sm:$0xff]
    %4067 = vset.pattern.permute.xlu0 1
    %4068 = vperm.xlu0 %4067, %v2698
    %v4069 = vpop.permute.xlu0 %4068
    %4071 = vset.pattern.permute.xlu0 1
    %4072 = vperm.xlu0 %4071, %v2699
    %v4073 = vpop.permute.xlu0 %4072
    %4075 = vset.pattern.permute.xlu0 1
    %4076 = vperm.xlu0 %4075, %v2700
    %v4077 = vpop.permute.xlu0 %4076
    %4079 = vset.pattern.permute.xlu0 1
    %4080 = vperm.xlu0 %4079, %v2701
    %v4081 = vpop.permute.xlu0 %4080
    %v4091 = vunpack.c.l.b16 %v4059
    %v4092 = vunpack.c.h.b16 %v4059
    %v4093 = vunpack.c.l.b16 %v4060
    %v4094 = vunpack.c.h.b16 %v4060
    %v4095 = vunpack.c.l.b16 %v4061
    %v4096 = vunpack.c.h.b16 %v4061
    %v4097 = vunpack.c.l.b16 %v4062
    %v4098 = vunpack.c.h.b16 %v4062
    %v4099 = vunpack.c.l.b16 %v4063
    %v4100 = vunpack.c.h.b16 %v4063
    %v4101 = vunpack.c.l.b16 %v4064
    %v4102 = vunpack.c.h.b16 %v4064
    %v4103 = vunpack.c.l.b16 %v4065
    %v4104 = vunpack.c.h.b16 %v4065
    %v4105 = vunpack.c.l.b16 %v4066
    %v4106 = vunpack.c.h.b16 %v4066
    %v4107 = vpack.c.b16 %v4095, %v4091
    %v4108 = vpack.c.b16 %v4096, %v4092
    %v4109 = vpack.c.b16 %v4097, %v4093
    %v4110 = vpack.c.b16 %v4098, %v4094
    %v4111 = vpack.c.b16 %v4103, %v4099
    %v4112 = vpack.c.b16 %v4104, %v4100
    %v4113 = vpack.c.b16 %v4105, %v4101
    %v4114 = vpack.c.b16 %v4106, %v4102
    %v4122 = vsel %vm1833, %v4110, 0
    %v4125 = vsel %vm1833, %v4114, 0
    %4127 = vmatprep.subr.bf16.mxu0 %v3638
    %4128 = vmatpush1.bf16.msra.mxu0 %v3637
    %4129 = vmatprep.subr.bf16.mxu0 %v3640
    %4130 = vmatpush1.bf16.msra.mxu0 %v3639
    %4131 = vmatprep.subr.bf16.mxu0 %v3656
    %4132 = vmatpush1.bf16.msra.mxu0 %v3670
    %4133 = vmatprep.subr.bf16.mxu0 %v3660
    %4134 = vmatpush1.bf16.msra.mxu0 %v3671
    %4135 = vmatprep.subr.bf16.mxu0 %v3685
    %4136 = vmatpush1.bf16.msra.mxu0 %v3699
    %4137 = vmatprep.subr.bf16.mxu0 %v3689
    %4138 = vmatpush1.bf16.msra.mxu0 %v3700
    %4139 = vmatprep.subr.bf16.mxu0 %v3714
    %4140 = vmatpush1.bf16.msra.mxu0 %v3728
    %4141 = vmatprep.subr.bf16.mxu0 %v3718
    %4142 = vmatpush1.bf16.msra.mxu0 %v3729
    %4143 = vmatprep.subr.bf16.mxu0 %v3743
    %4144 = vmatpush1.bf16.msra.mxu0 %v3757
    %4145 = vmatprep.subr.bf16.mxu0 %v3747
    %4146 = vmatpush1.bf16.msra.mxu0 %v3758
    %4147 = vmatprep.subr.bf16.mxu0 %v3772
    %4148 = vmatpush1.bf16.msra.mxu0 %v3786
    %4149 = vmatprep.subr.bf16.mxu0 %v3776
    %4150 = vmatpush1.bf16.msra.mxu0 %v3787
    %4151 = vmatprep.subr.bf16.mxu0 %v3801
    %4152 = vmatpush1.bf16.msra.mxu0 %v3815
    %4153 = vmatprep.subr.bf16.mxu0 %v3805
    %4154 = vmatpush1.bf16.msra.mxu0 %v3816
    %4155 = vmatprep.subr.bf16.mxu0 %v3830
    %4156 = vmatpush1.bf16.msra.mxu0 %v3844
    %4157 = vmatprep.subr.bf16.mxu0 %v3834
    %4158 = vmatpush1.bf16.msra.mxu0 %v3845
    %4159 = vmatprep.mubr.bf16.mxu0 %v4108
    %4160 = vmatmul.mubr.bf16.gmra.mrb[0].mxu0 %v4107
    %v4161 = vpop.f32.mrb[0].mxu0
    %v4162 = vadd.f32 %v4069, %v4161
    %v4163 = vpop.f32.mrb[0].mxu0
    %v4164 = vadd.f32 %v4069, %v4163
    %v4165 = vpop.f32.mrb[0].mxu0
    %v4166 = vadd.f32 %v4073, %v4165
    %v4167 = vpop.f32.mrb[0].mxu0
    %v4168 = vadd.f32 %v4073, %v4167
    %4169 = vmatprep.mubr.bf16.mxu0 %v4112
    %4170 = vmatmul.mubr.bf16.gmra.mrb[0].mxu0 %v4111
    %v4171 = vpop.f32.mrb[0].mxu0
    %v4172 = vadd.f32 %v4077, %v4171
    %v4173 = vpop.f32.mrb[0].mxu0
    %v4174 = vadd.f32 %v4077, %v4173
    %v4175 = vpop.f32.mrb[0].mxu0
    %v4176 = vadd.f32 %v4081, %v4175
    %v4177 = vpop.f32.mrb[0].mxu0
    %v4178 = vadd.f32 %v4081, %v4177
    %4179 = vdwg.mxu0
    %4180 = vmatprep.subr.bf16.mxu0 %v3859
    %4181 = vmatpush1.bf16.msra.mxu0 %v3873
    %4182 = vmatprep.subr.bf16.mxu0 %v3863
    %4183 = vmatpush1.bf16.msra.mxu0 %v3874
    %4184 = vmatprep.subr.bf16.mxu0 %v3888
    %4185 = vmatpush1.bf16.msra.mxu0 %v3902
    %4186 = vmatprep.subr.bf16.mxu0 %v3892
    %4187 = vmatpush1.bf16.msra.mxu0 %v3903
    %4188 = vmatprep.subr.bf16.mxu0 %v3917
    %4189 = vmatpush1.bf16.msra.mxu0 %v3931
    %4190 = vmatprep.subr.bf16.mxu0 %v3921
    %4191 = vmatpush1.bf16.msra.mxu0 %v3932
    %4192 = vmatprep.subr.bf16.mxu0 %v3946
    %4193 = vmatpush1.bf16.msra.mxu0 %v3960
    %4194 = vmatprep.subr.bf16.mxu0 %v3950
    %4195 = vmatpush1.bf16.msra.mxu0 %v3961
    %4196 = vmatprep.subr.bf16.mxu0 %v3975
    %4197 = vmatpush1.bf16.msra.mxu0 %v3989
    %4198 = vmatprep.subr.bf16.mxu0 %v3979
    %4199 = vmatpush1.bf16.msra.mxu0 %v3990
    %4200 = vmatprep.subr.bf16.mxu0 %v4004
    %4201 = vmatpush1.bf16.msra.mxu0 %v4018
    %4202 = vmatprep.subr.bf16.mxu0 %v4008
    %4203 = vmatpush1.bf16.msra.mxu0 %v4019
    %4204 = vmatprep.subr.bf16.mxu0 %v4033
    %4205 = vmatpush1.bf16.msra.mxu0 %v4047
    %4206 = vmatprep.subr.bf16.mxu0 %v4037
    %4207 = vmatpush1.bf16.msra.mxu0 %v4048
    %4208 = vmatprep.subr.bf16.mxu0 0
    %4209 = vmatpush1.bf16.msra.mxu0 0
    %4210 = vmatprep.subr.bf16.mxu0 0
    %4211 = vmatpush1.bf16.msra.mxu0 0
    %4212 = vmatprep.mubr.bf16.mxu0 %v4122
    %4213 = vmatmul.mubr.bf16.gmra.mrb[0].mxu0 %v4109
    %v4214 = vpop.f32.mrb[0].mxu0
    %v4215 = vadd.f32 %v4162, %v4214
    %v4216 = vpop.f32.mrb[0].mxu0
    %v4217 = vadd.f32 %v4164, %v4216
    %v4218 = vpop.f32.mrb[0].mxu0
    %v4219 = vadd.f32 %v4166, %v4218
    %v4220 = vpop.f32.mrb[0].mxu0
    %v4221 = vadd.f32 %v4168, %v4220
    %4222 = vmatprep.mubr.bf16.mxu0 %v4125
    %4223 = vmatmul.mubr.bf16.gmra.mrb[0].mxu0 %v4113
    %v4224 = vpop.f32.mrb[0].mxu0
    %v4225 = vadd.f32 %v4172, %v4224
    %v4226 = vpop.f32.mrb[0].mxu0
    %v4227 = vadd.f32 %v4174, %v4226
    %v4228 = vpop.f32.mrb[0].mxu0
    %v4229 = vadd.f32 %v4176, %v4228
    %v4230 = vpop.f32.mrb[0].mxu0
    %v4231 = vadd.f32 %v4178, %v4230
    %4232 = vdwg.mxu0
    %v4233 = vmax.f32 %v4215, 0.0
    %v4234 = vmax.f32 %v4217, 0.0
    %v4235 = vmax.f32 %v4219, 0.0
    %v4236 = vmax.f32 %v4221, 0.0
    %v4237 = vmax.f32 %v4225, 0.0
    %v4238 = vmax.f32 %v4227, 0.0
    %v4239 = vmax.f32 %v4229, 0.0
    %v4240 = vmax.f32 %v4231, 0.0
    %4241 = vmatprep.subr.bf16.mxu0 %v3642
    %4242 = vmatpush1.bf16.msra.mxu0 %v3641
    %4243 = vmatprep.subr.bf16.mxu0 %v3644
    %4244 = vmatpush1.bf16.msra.mxu0 %v3643
    %4245 = vmatprep.subr.bf16.mxu0 %v3664
    %4246 = vmatpush1.bf16.msra.mxu0 %v3672
    %4247 = vmatprep.subr.bf16.mxu0 %v3668
    %4248 = vmatpush1.bf16.msra.mxu0 %v3673
    %4249 = vmatprep.subr.bf16.mxu0 %v3693
    %4250 = vmatpush1.bf16.msra.mxu0 %v3701
    %4251 = vmatprep.subr.bf16.mxu0 %v3697
    %4252 = vmatpush1.bf16.msra.mxu0 %v3702
    %4253 = vmatprep.subr.bf16.mxu0 %v3722
    %4254 = vmatpush1.bf16.msra.mxu0 %v3730
    %4255 = vmatprep.subr.bf16.mxu0 %v3726
    %4256 = vmatpush1.bf16.msra.mxu0 %v3731
    %4257 = vmatprep.subr.bf16.mxu0 %v3751
    %4258 = vmatpush1.bf16.msra.mxu0 %v3759
    %4259 = vmatprep.subr.bf16.mxu0 %v3755
    %4260 = vmatpush1.bf16.msra.mxu0 %v3760
    %4261 = vmatprep.subr.bf16.mxu0 %v3780
    %4262 = vmatpush1.bf16.msra.mxu0 %v3788
    %4263 = vmatprep.subr.bf16.mxu0 %v3784
    %4264 = vmatpush1.bf16.msra.mxu0 %v3789
    %4265 = vmatprep.subr.bf16.mxu0 %v3809
    %4266 = vmatpush1.bf16.msra.mxu0 %v3817
    %4267 = vmatprep.subr.bf16.mxu0 %v3813
    %4268 = vmatpush1.bf16.msra.mxu0 %v3818
    %4269 = vmatprep.subr.bf16.mxu0 %v3838
    %4270 = vmatpush1.bf16.msra.mxu0 %v3846
    %4271 = vmatprep.subr.bf16.mxu0 %v3842
    %4272 = vmatpush1.bf16.msra.mxu0 %v3847
    %4273 = vmatprep.mubr.bf16.mxu0 %v4108
    %4274 = vmatmul.mubr.bf16.gmra.mrb[0].mxu0 %v4107
    %v4275 = vpop.f32.mrb[0].mxu0
    %v4276 = vadd.f32 %v4069, %v4275
    %v4277 = vpop.f32.mrb[0].mxu0
    %v4278 = vadd.f32 %v4069, %v4277
    %v4279 = vpop.f32.mrb[0].mxu0
    %v4280 = vadd.f32 %v4073, %v4279
    %v4281 = vpop.f32.mrb[0].mxu0
    %v4282 = vadd.f32 %v4073, %v4281
    %4283 = vmatprep.mubr.bf16.mxu0 %v4112
    %4284 = vmatmul.mubr.bf16.gmra.mrb[0].mxu0 %v4111
    %v4285 = vpop.f32.mrb[0].mxu0
    %v4286 = vadd.f32 %v4077, %v4285
    %v4287 = vpop.f32.mrb[0].mxu0
    %v4288 = vadd.f32 %v4077, %v4287
    %v4289 = vpop.f32.mrb[0].mxu0
    %v4290 = vadd.f32 %v4081, %v4289
    %v4291 = vpop.f32.mrb[0].mxu0
    %v4292 = vadd.f32 %v4081, %v4291
    %4293 = vdwg.mxu0
    %4294 = vmatprep.subr.bf16.mxu0 %v3867
    %4295 = vmatpush1.bf16.msra.mxu0 %v3875
    %4296 = vmatprep.subr.bf16.mxu0 %v3871
    %4297 = vmatpush1.bf16.msra.mxu0 %v3876
    %4298 = vmatprep.subr.bf16.mxu0 %v3896
    %4299 = vmatpush1.bf16.msra.mxu0 %v3904
    %4300 = vmatprep.subr.bf16.mxu0 %v3900
    %4301 = vmatpush1.bf16.msra.mxu0 %v3905
    %4302 = vmatprep.subr.bf16.mxu0 %v3925
    %4303 = vmatpush1.bf16.msra.mxu0 %v3933
    %4304 = vmatprep.subr.bf16.mxu0 %v3929
    %4305 = vmatpush1.bf16.msra.mxu0 %v3934
    %4306 = vmatprep.subr.bf16.mxu0 %v3954
    %4307 = vmatpush1.bf16.msra.mxu0 %v3962
    %4308 = vmatprep.subr.bf16.mxu0 %v3958
    %4309 = vmatpush1.bf16.msra.mxu0 %v3963
    %4310 = vmatprep.subr.bf16.mxu0 %v3983
    %4311 = vmatpush1.bf16.msra.mxu0 %v3991
    %4312 = vmatprep.subr.bf16.mxu0 %v3987
    %4313 = vmatpush1.bf16.msra.mxu0 %v3992
    %4314 = vmatprep.subr.bf16.mxu0 %v4012
    %4315 = vmatpush1.bf16.msra.mxu0 %v4020
    %4316 = vmatprep.subr.bf16.mxu0 %v4016
    %4317 = vmatpush1.bf16.msra.mxu0 %v4021
    %4318 = vmatprep.subr.bf16.mxu0 %v4041
    %4319 = vmatpush1.bf16.msra.mxu0 %v4049
    %4320 = vmatprep.subr.bf16.mxu0 %v4045
    %4321 = vmatpush1.bf16.msra.mxu0 %v4050
    %4322 = vmatprep.subr.bf16.mxu0 0
    %4323 = vmatpush1.bf16.msra.mxu0 0
    %4324 = vmatprep.subr.bf16.mxu0 0
    %4325 = vmatpush1.bf16.msra.mxu0 0
    %4326 = vmatprep.mubr.bf16.mxu0 %v4122
    %4327 = vmatmul.mubr.bf16.gmra.mrb[0].mxu0 %v4109
    %v4328 = vpop.f32.mrb[0].mxu0
    %v4329 = vadd.f32 %v4276, %v4328
    %v4330 = vpop.f32.mrb[0].mxu0
    %v4331 = vadd.f32 %v4278, %v4330
    %v4332 = vpop.f32.mrb[0].mxu0
    %v4333 = vadd.f32 %v4280, %v4332
    %v4334 = vpop.f32.mrb[0].mxu0
    %v4335 = vadd.f32 %v4282, %v4334
    %4336 = vmatprep.mubr.bf16.mxu0 %v4125
    %4337 = vmatmul.mubr.bf16.gmra.mrb[0].mxu0 %v4113
    %v4338 = vpop.f32.mrb[0].mxu0
    %v4339 = vadd.f32 %v4286, %v4338
    %v4340 = vpop.f32.mrb[0].mxu0
    %v4341 = vadd.f32 %v4288, %v4340
    %v4342 = vpop.f32.mrb[0].mxu0
    %v4343 = vadd.f32 %v4290, %v4342
    %v4344 = vpop.f32.mrb[0].mxu0
    %v4345 = vadd.f32 %v4292, %v4344
    %4346 = vdwg.mxu0
    %v4347 = vmax.f32 %v4329, 0.0
    %v4348 = vmax.f32 %v4331, 0.0
    %v4349 = vmax.f32 %v4333, 0.0
    %v4350 = vmax.f32 %v4335, 0.0
    %v4351 = vmax.f32 %v4339, 0.0
    %v4352 = vmax.f32 %v4341, 0.0
    %v4353 = vmax.f32 %v4343, 0.0
    %v4354 = vmax.f32 %v4345, 0.0
    %v4355 = vld [vmem:[#allocation8] sm:$0xff]
    %v4356 = vld [vmem:[#allocation8 + $0x8] sm:$0xff]
    %v4357 = vld [vmem:[#allocation8 + $0x10] sm:$0xff]
    %v4358 = vld [vmem:[#allocation8 + $0x18] sm:$0xff]
    %v4359 = vld [vmem:[#allocation8 + $0x20] sm:$0xff]
    %v4360 = vld [vmem:[#allocation8 + $0x28] sm:$0xff]
    %v4361 = vld [vmem:[#allocation8 + $0x30] sm:$0xff]
    %v4362 = vld [vmem:[#allocation8 + $0x38] sm:$0xff]
    %v4363 = vmul.f32 %v4233, %v4355
    %v4364 = vmul.f32 %v4234, %v4356
    %v4365 = vmul.f32 %v4235, %v4357
    %v4366 = vmul.f32 %v4236, %v4358
    %v4367 = vmul.f32 %v4237, %v4359
    %v4368 = vmul.f32 %v4238, %v4360
    %v4369 = vmul.f32 %v4239, %v4361
    %v4370 = vmul.f32 %v4240, %v4362
    %v4371 = vmul.f32 %v4347, %v4355
    %v4372 = vmul.f32 %v4348, %v4356
    %v4373 = vmul.f32 %v4349, %v4357
    %v4374 = vmul.f32 %v4350, %v4358
    %v4375 = vmul.f32 %v4351, %v4359
    %v4376 = vmul.f32 %v4352, %v4360
    %v4377 = vmul.f32 %v4353, %v4361
    %v4378 = vmul.f32 %v4354, %v4362
    %v4379 = vadd.f32 %v4363, %v4365
    %v4380 = vadd.f32 %v4379, %v4367
    %v4381 = vadd.f32 %v4380, %v4369
    %v4382 = vrot.slane %v4381, 4
    %v4383 = vadd.f32 %v4381, %v4382
    %v4384 = vrot.slane %v4383, 2
    %v4385 = vadd.f32 %v4383, %v4384
    %v4386 = vrot.slane %v4385, 1
    %v4387 = vadd.f32 %v4385, %v4386
    %vm4388 = vcmask 523264
    %v4389 = vsel %vm4388, %v4364, 0.0
    %v4390 = vsel %vm4388, %v4366, 0.0
    %v4391 = vadd.f32 %v4389, %v4390
    %v4392 = vsel %vm4388, %v4368, 0.0
    %v4393 = vadd.f32 %v4391, %v4392
    %v4394 = vsel %vm4388, %v4370, 0.0
    %v4395 = vadd.f32 %v4393, %v4394
    %v4396 = vrot.slane %v4395, 4
    %v4397 = vadd.f32 %v4395, %v4396
    %v4398 = vrot.slane %v4397, 2
    %v4399 = vadd.f32 %v4397, %v4398
    %v4400 = vrot.slane %v4399, 1
    %v4401 = vadd.f32 %v4399, %v4400
    %v4402 = vadd.f32 %v4371, %v4373
    %v4403 = vadd.f32 %v4402, %v4375
    %v4404 = vadd.f32 %v4403, %v4377
    %v4405 = vrot.slane %v4404, 4
    %v4406 = vadd.f32 %v4404, %v4405
    %v4407 = vrot.slane %v4406, 2
    %v4408 = vadd.f32 %v4406, %v4407
    %v4409 = vrot.slane %v4408, 1
    %v4410 = vadd.f32 %v4408, %v4409
    %v4411 = vsel %vm4388, %v4372, 0.0
    %v4412 = vsel %vm4388, %v4374, 0.0
    %v4413 = vadd.f32 %v4411, %v4412
    %v4414 = vsel %vm4388, %v4376, 0.0
    %v4415 = vadd.f32 %v4413, %v4414
    %v4416 = vsel %vm4388, %v4378, 0.0
    %v4417 = vadd.f32 %v4415, %v4416
    %v4418 = vrot.slane %v4417, 4
    %v4419 = vadd.f32 %v4417, %v4418
    %v4420 = vrot.slane %v4419, 2
    %v4421 = vadd.f32 %v4419, %v4420
    %v4422 = vrot.slane %v4421, 1
    %v4423 = vadd.f32 %v4421, %v4422
    %vm4428 = vcmask 1041409
    %v4429 = vsel %vm4428, %v4410, %v4387
    %v4430 = vsel %vm4428, %v4423, %v4401
    %v4433 = vsel %vm555, %v4429, 0.0
    %vm4434 = vcmask 517120
    %v4435 = vsel %vm4434, %v4430, 0.0
    %v4436 = vadd.f32 %v4433, %v4435
    %4437 = vadd.xlane.f32.xlu0 %v4436
    %v4438 = vpop.xlane.xlu0 %4437
    %s4439 = scalar_lea.vmem [#allocation8], 64
    %v4440 = vld [vmem:[%s4439] sm:$0xff]
    %v4441 = vld [vmem:[%s4439 + $0x8] sm:$0xff]
    %v4442 = vld [vmem:[%s4439 + $0x10] sm:$0xff]
    %v4443 = vld [vmem:[%s4439 + $0x18] sm:$0xff]
    %v4444 = vld [vmem:[%s4439 + $0x20] sm:$0xff]
    %v4445 = vld [vmem:[%s4439 + $0x28] sm:$0xff]
    %v4446 = vld [vmem:[%s4439 + $0x30] sm:$0xff]
    %v4447 = vld [vmem:[%s4439 + $0x38] sm:$0xff]
    %v4448 = vmul.f32 %v4233, %v4440
    %v4449 = vmul.f32 %v4234, %v4441
    %v4450 = vmul.f32 %v4235, %v4442
    %v4451 = vmul.f32 %v4236, %v4443
    %v4452 = vmul.f32 %v4237, %v4444
    %v4453 = vmul.f32 %v4238, %v4445
    %v4454 = vmul.f32 %v4239, %v4446
    %v4455 = vmul.f32 %v4240, %v4447
    %v4456 = vmul.f32 %v4347, %v4440
    %v4457 = vmul.f32 %v4348, %v4441
    %v4458 = vmul.f32 %v4349, %v4442
    %v4459 = vmul.f32 %v4350, %v4443
    %v4460 = vmul.f32 %v4351, %v4444
    %v4461 = vmul.f32 %v4352, %v4445
    %v4462 = vmul.f32 %v4353, %v4446
    %v4463 = vmul.f32 %v4354, %v4447
    %v4464 = vadd.f32 %v4448, %v4450
    %v4465 = vadd.f32 %v4464, %v4452
    %v4466 = vadd.f32 %v4465, %v4454
    %v4467 = vrot.slane %v4466, 4
    %v4468 = vadd.f32 %v4466, %v4467
    %v4469 = vrot.slane %v4468, 2
    %v4470 = vadd.f32 %v4468, %v4469
    %v4471 = vrot.slane %v4470, 1
    %v4472 = vadd.f32 %v4470, %v4471
    %v4473 = vsel %vm4388, %v4449, 0.0
    %v4474 = vsel %vm4388, %v4451, 0.0
    %v4475 = vadd.f32 %v4473, %v4474
    %v4476 = vsel %vm4388, %v4453, 0.0
    %v4477 = vadd.f32 %v4475, %v4476
    %v4478 = vsel %vm4388, %v4455, 0.0
    %v4479 = vadd.f32 %v4477, %v4478
    %v4480 = vrot.slane %v4479, 4
    %v4481 = vadd.f32 %v4479, %v4480
    %v4482 = vrot.slane %v4481, 2
    %v4483 = vadd.f32 %v4481, %v4482
    %v4484 = vrot.slane %v4483, 1
    %v4485 = vadd.f32 %v4483, %v4484
    %v4486 = vadd.f32 %v4456, %v4458
    %v4487 = vadd.f32 %v4486, %v4460
    %v4488 = vadd.f32 %v4487, %v4462
    %v4489 = vrot.slane %v4488, 4
    %v4490 = vadd.f32 %v4488, %v4489
    %v4491 = vrot.slane %v4490, 2
    %v4492 = vadd.f32 %v4490, %v4491
    %v4493 = vrot.slane %v4492, 1
    %v4494 = vadd.f32 %v4492, %v4493
    %v4495 = vsel %vm4388, %v4457, 0.0
    %v4496 = vsel %vm4388, %v4459, 0.0
    %v4497 = vadd.f32 %v4495, %v4496
    %v4498 = vsel %vm4388, %v4461, 0.0
    %v4499 = vadd.f32 %v4497, %v4498
    %v4500 = vsel %vm4388, %v4463, 0.0
    %v4501 = vadd.f32 %v4499, %v4500
    %v4502 = vrot.slane %v4501, 4
    %v4503 = vadd.f32 %v4501, %v4502
    %v4504 = vrot.slane %v4503, 2
    %v4505 = vadd.f32 %v4503, %v4504
    %v4506 = vrot.slane %v4505, 1
    %v4507 = vadd.f32 %v4505, %v4506
    %v4512 = vsel %vm4428, %v4494, %v4472
    %v4513 = vsel %vm4428, %v4507, %v4485
    %v4516 = vsel %vm555, %v4512, 0.0
    %v4517 = vsel %vm4434, %v4513, 0.0
    %v4518 = vadd.f32 %v4516, %v4517
    %4519 = vadd.xlane.f32.xlu0 %v4518
    %v4520 = vpop.xlane.xlu0 %4519
    %vm4521 = vcmask 7168
    %v4522 = vsel %vm4521, %v4438, %v4520
    %vm4523 = vcmask 15360
    %v4524 = vsel %vm4523, %v4522, 0.0
    %4525 = vst [vmem:[#allocation10] sm:$0x3] %v4524
    // Predicated region
    $region42: #{tpu_custom_call.1} parent=1 // pred_check
      _
    $region43: #{tpu_custom_call.1} parent=1 // pred_check_branch
      %4527 = sbr.rel (0) target = $region45
    $region44: #{tpu_custom_call.1} parent=1 // pred_region
      %s4529 = ssub.s32 32, 32
      %4530 = vsyncadd [#allocation4], %s4529
      %s4532 = sshll.u32 [#allocation10], 4
      %s4533 = int_to_ptr.vmem [resolvable:$true] %s4532
      %4535 = dma.vmem_to_hbm [thread:$0]  %s4533, 32, %s6, [#allocation4]
    $region45: #{tpu_custom_call.1} parent=1 // pred_fallthru
      _
    // Predicated region
    $region46: #{tpu_custom_call.1} parent=1 // pred_check
      _
    $region47: #{tpu_custom_call.1} parent=1 // pred_check_branch
      %4537 = sbr.rel (0) target = $region49
    $region48: #{tpu_custom_call.1} parent=1 // pred_region
      %4538 = dma.done [#allocation4], 32
    $region49: #{tpu_custom_call.1} parent=1 // pred_fallthru
      _
    %4539 = vsyncpa [#allocation3], 1
    %4540 = vsyncpa [#allocation6], 1
    %4541 = vsyncpa [#allocation9], 1
    %4542 = vsyncpa [#allocation4], 1

</llo_original>
